<compile_context>
chip_gen: v7x
topology: tpu7x:2x2x1
jax: 0.10.0
libtpu: 0.0.40
codegen_flags: <defaults>
</compile_context>

<pallas_src>
import jax
import jax.numpy as jnp
from jax import lax
from jax.experimental import pallas as pl
from jax.experimental.pallas import tpu as pltpu


def _round_up(x: int, m: int) -> int:
    return ((x + m - 1) // m) * m


def _make_scatter_kernel(num_tiles, tile_s, sub, c_in_pad, c_out_pad, key_col):
    n_sub0 = tile_s // sub          # sub-chunks per fetched block

    def kernel(blk_ref, sublo_ref, subhi_ref, feat0_ref, feat1_ref, out_ref):
        # blk/sublo/subhi: (B*num_tiles,) int32 in SMEM (scalar prefetch)
        # feat0_ref/feat1_ref: (TILE_S, C_in_pad) — blocks blk and blk+1 of the
        #   sorted, key-packed pillar slab (data-dependent fetch).
        # out_ref: (C_out_pad, TILE_S) canvas tile for (b, t).
        b = pl.program_id(0)
        t = pl.program_id(1)
        flat = b * num_tiles + t
        sub_lo = sublo_ref[flat]
        sub_hi = subhi_ref[flat]

        tile_base = flat * tile_s                      # first cell key of this tile
        # Constant lane-id pattern, hoisted out of the sub-chunk loop.
        lane_ids = lax.broadcasted_iota(jnp.int32, (sub, tile_s), 1)

        # Zero-init canvas tile; empty tiles are just this lane-dense store.
        out_ref[...] = jnp.zeros_like(out_ref)

        # Walk the 2*TILE_S-row window in SUB-row sub-chunks; only sub-chunks
        # that overlap this tile's pillar run do any work.
        for j in range(2 * n_sub0):
            if j < n_sub0:
                src, off = feat0_ref, j * sub
            else:
                src, off = feat1_ref, (j - n_sub0) * sub

            @pl.when(jnp.logical_and(j >= sub_lo, j < sub_hi))
            def _(src=src, off=off):
                rows = src[pl.ds(off, sub), :]                       # (SUB, C_in_pad)
                keys = pltpu.bitcast(rows[:, key_col:key_col + 1], jnp.int32)
                keys_rel = keys - tile_base                          # (SUB, 1)
                onehot = (keys_rel == lane_ids).astype(jnp.float32)  # (SUB, TILE_S)
                # out[c, r] += sum_p rows[p, c] * onehot[p, r]   (MXU, exact f32)
                part = lax.dot_general(
                    rows, onehot,
                    dimension_numbers=(((0,), (0,)), ((), ())),
                    preferred_element_type=jnp.float32,
                    precision=lax.Precision.HIGHEST)
                out_ref[...] += part[:c_out_pad, :].astype(out_ref.dtype)

    return kernel


def pointpillar_scatter(pillar_features, coords, *, batch_size,
                        num_bev_features, nx, ny, nz=1, tile_s=512):
    """Pallas implementation of PointPillarScatter.forward (scatter-to-BEV)."""
    assert nz == 1
    P, C = pillar_features.shape
    assert C == num_bev_features
    out_dtype = pillar_features.dtype
    coords = coords.astype(jnp.int32)

    S = nz * ny * nx
    TILE_S = min(tile_s, _round_up(S, 128))     # lane-dense spatial tile (keep 512 on v5e;
    #                                             can raise on v7x after the chunk-fetch change)
    S_pad = _round_up(S, TILE_S)
    num_tiles = S_pad // TILE_S
    SUB = 128                                    # gated sub-chunk depth (MXU K)
    C_out_pad = _round_up(C, 8)                  # sublane-aligned output channels
    C_in_pad = _round_up(C + 1, 8)               # +1 spare column carries the bitcast key
    key_col = C_in_pad - 1
    P_pad = (P // TILE_S + 2) * TILE_S           # room to fetch blocks blk and blk+1

    # ---- wrapper-side prep: sort pillars by (batch, flat cell), pack key column
    flat_idx = coords[:, 1] + coords[:, 2] * nx + coords[:, 3]
    key = coords[:, 0] * S_pad + flat_idx
    order = jnp.argsort(key)
    key_sorted = key[order].astype(jnp.int32)
    feat_sorted = pillar_features[order].astype(jnp.float32)   # exact upcast if bf16/f16

    sentinel = jnp.int32(batch_size * S_pad)                   # matches no tile cell
    key_f32 = lax.bitcast_convert_type(key_sorted, jnp.float32)
    sentinel_f32 = lax.bitcast_convert_type(sentinel, jnp.float32)

    packed = jnp.concatenate(
        [feat_sorted,
         jnp.zeros((P, C_in_pad - 1 - C), jnp.float32),
         key_f32[:, None]], axis=1)                            # (P, C_in_pad)
    pad_rows = jnp.zeros((P_pad - P, C_in_pad), jnp.float32)
    pad_rows = pad_rows.at[:, key_col].set(sentinel_f32)
    feat_packed = jnp.concatenate([packed, pad_rows], axis=0)  # (P_pad, C_in_pad)

    # Per-(batch, tile) run bounds -> fetch block index + gated sub-chunk range.
    bt_lo = jnp.arange(batch_size * num_tiles, dtype=jnp.int32) * TILE_S
    starts = jnp.searchsorted(key_sorted, bt_lo, side='left').astype(jnp.int32)
    ends = jnp.searchsorted(key_sorted, bt_lo + TILE_S, side='left').astype(jnp.int32)
    cnt = ends - starts
    blk = starts // TILE_S
    rel = starts - blk * TILE_S
    sub_lo = rel // SUB
    sub_hi = jnp.where(cnt > 0, (rel + cnt + SUB - 1) // SUB, sub_lo)

    cost = pl.CostEstimate(
        flops=2 * batch_size * num_tiles * 2 * SUB * TILE_S * C_in_pad,
        transcendentals=0,
        bytes_accessed=(batch_size * C_out_pad * S_pad * 4
                        + batch_size * num_tiles * 2 * TILE_S * C_in_pad * 4))

    out = pl.pallas_call(
        _make_scatter_kernel(num_tiles, TILE_S, SUB, C_in_pad, C_out_pad, key_col),
        out_shape=jax.ShapeDtypeStruct((batch_size, C_out_pad, S_pad), out_dtype),
        grid_spec=pltpu.PrefetchScalarGridSpec(
            num_scalar_prefetch=3,          # blk, sub_lo, sub_hi -> SMEM
            grid=(batch_size, num_tiles),
            in_specs=[
                # Data-dependent chunk fetch: two consecutive TILE_S-row blocks
                # of the sorted pillar slab cover any per-tile run.
                pl.BlockSpec((TILE_S, C_in_pad),
                             lambda b, t, blk_r, lo_r, hi_r:
                             (blk_r[b * num_tiles + t], 0)),
                pl.BlockSpec((TILE_S, C_in_pad),
                             lambda b, t, blk_r, lo_r, hi_r:
                             (blk_r[b * num_tiles + t] + 1, 0)),
            ],
            out_specs=pl.BlockSpec((None, C_out_pad, TILE_S),
                                   lambda b, t, blk_r, lo_r, hi_r: (b, 0, t)),
        ),
        compiler_params=pltpu.CompilerParams(
            dimension_semantics=("parallel", "parallel")),
        cost_estimate=cost,
    )(blk, sub_lo, sub_hi, feat_packed, feat_packed)

    # Glue: slice channel/spatial padding, view as NCHW (B, C*nz, ny, nx).
    spatial_features = out[:, :C, :S].reshape(batch_size, C * nz, ny, nx)
    return spatial_features


# ----------------------------------------------------------------------------
# Test helpers
# ----------------------------------------------------------------------------
def _reference(pillar_features, coords, batch_size, C, nx, ny, nz):
    S = nz * ny * nx
    ref = jnp.zeros((batch_size, C, S), pillar_features.dtype)
    idx = coords[:, 1] + coords[:, 2] * nx + coords[:, 3]
    ref = ref.at[coords[:, 0], :, idx].set(pillar_features)
    return ref.reshape(batch_size, C * nz, ny, nx)


def _make_case(key, batch_size, C, nx, ny, pillars_per_batch, y_limit=None):
    """Unique (y, x) coords per batch; optional per-batch y range restriction."""
    k_feat, k_coord = jax.random.split(key)
    coords_list = []
    for b in range(batch_size):
        kb = jax.random.fold_in(k_coord, b)
        ylim = ny if y_limit is None else y_limit[b]
        cells = nx * ylim
        n = min(pillars_per_batch, cells)
        flat = jax.random.permutation(kb, cells)[:n]
        y = (flat // nx).astype(jnp.int32)
        x = (flat % nx).astype(jnp.int32)
        z = jnp.zeros_like(x)
        bcol = jnp.full_like(x, b)
        coords_list.append(jnp.stack([bcol, z, y, x], axis=1))
    coords = jnp.concatenate(coords_list, axis=0).astype(jnp.int32)
    P = coords.shape[0]
    feats = jax.random.normal(k_feat, (P, C), dtype=jnp.float32)
    return feats, coords


if __name__ == "__main__":
    root = jax.random.PRNGKey(0)
    k1, k2 = jax.random.split(root)

    cases = [
        # Small config: B=2, C=4, 16x16 grid, 16 pillars/batch (single tile).
        dict(batch_size=2, C=4, nx=16, ny=16, ppb=16, y_limit=None),
        # Multi-tile config: B=2, C=8, 32x32 grid, 320 pillars/batch.
        # Batch 0 confined to y<16 -> its second tile is empty (fast path);
        # batch 1 spans both tiles and its run straddles the TILE_S-row block
        # boundary -> exercises the two-block data-dependent fetch.
        dict(batch_size=2, C=8, nx=32, ny=32, ppb=320, y_limit=(16, 32)),
    ]

    for case_key, cfg in zip((k1, k2), cases):
        feats, coords = _make_case(case_key, cfg['batch_size'], cfg['C'],
                                   cfg['nx'], cfg['ny'], cfg['ppb'],
                                   cfg['y_limit'])
        out = pointpillar_scatter(feats, coords,
                                  batch_size=cfg['batch_size'],
                                  num_bev_features=cfg['C'],
                                  nx=cfg['nx'], ny=cfg['ny'], nz=1)
        out = jax.block_until_ready(out)

        ref = _reference(feats, coords, cfg['batch_size'], cfg['C'],
                         cfg['nx'], cfg['ny'], 1)
        assert out.shape == ref.shape, (out.shape, ref.shape)
        assert out.dtype == feats.dtype
        assert jnp.allclose(out, ref), "Pallas scatter mismatch vs reference"

    print("KERNEL_OK")
</pallas_src>

<mosaic_0001>
module attributes {stable_mosaic.version = 11 : i64} {
  func.func @kernel(%arg0: i32, %arg1: i32, %arg2: memref<2xi32, #tpu.memory_space<smem>>, %arg3: memref<2xi32, #tpu.memory_space<smem>>, %arg4: memref<2xi32, #tpu.memory_space<smem>>, %arg5: memref<256x8xf32, #tpu.memory_space<vmem>>, %arg6: memref<256x8xf32, #tpu.memory_space<vmem>>, %arg7: memref<1x8x256xf32, #tpu.memory_space<vmem>>) attributes {dimension_semantics = [#tpu.dimension_semantics<parallel>, #tpu.dimension_semantics<parallel>], iteration_bounds = array<i64: 2, 1>, scalar_prefetch = 3 : i64, scratch_operands = 0 : i64, tpu.core_type = #tpu.core_type<tc>, window_params = [{transform_indices = @transform_0, window_bounds = array<i64: 256, 8>}, {transform_indices = @transform_1, window_bounds = array<i64: 256, 8>}, {transform_indices = @transform_2, window_bounds = array<i64: 1, 8, 256>}]} {
    %c1_i32 = arith.constant 1 : i32
    %0 = arith.muli %arg0, %c1_i32 : i32
    %1 = arith.addi %0, %arg1 : i32
    %2 = arith.index_cast %1 : i32 to index
    %3 = memref.load %arg3[%2] : memref<2xi32, #tpu.memory_space<smem>>
    %4 = arith.index_cast %1 : i32 to index
    %5 = memref.load %arg4[%4] : memref<2xi32, #tpu.memory_space<smem>>
    %c256_i32 = arith.constant 256 : i32
    %6 = arith.muli %1, %c256_i32 : i32
    %7 = tpu.iota {dimensions = array<i32: 1>} : vector<128x256xi32>
    %cst = arith.constant 0.000000e+00 : f32
    %8 = vector.broadcast %cst : f32 to vector<8x256xf32>
    %c0 = arith.constant 0 : index
    %c0_0 = arith.constant 0 : index
    %c0_1 = arith.constant 0 : index
    %9 = vector.load %arg7[%c0, %c0_0, %c0_1] : memref<1x8x256xf32, #tpu.memory_space<vmem>>, vector<1x8x256xf32>
    %10 = vector.shape_cast %9 : vector<1x8x256xf32> to vector<8x256xf32>
    %11 = vector.shape_cast %8 : vector<8x256xf32> to vector<1x8x256xf32>
    tpu.vector_store %arg7[%c0, %c0_0, %c0_1], %11 {strides = array<i32>} : memref<1x8x256xf32, #tpu.memory_space<vmem>>, vector<1x8x256xf32>,
    %c0_i32 = arith.constant 0 : i32
    %12 = arith.cmpi sle, %3, %c0_i32 : i32
    %c0_i32_2 = arith.constant 0 : i32
    %13 = arith.cmpi sgt, %5, %c0_i32_2 : i32
    %14 = arith.andi %12, %13 : i1
    %15 = arith.extui %14 : i1 to i32
    %c0_i32_3 = arith.constant 0 : i32
    %16 = arith.cmpi ne, %15, %c0_i32_3 : i32
    scf.if %16 {
      %c0_11 = arith.constant 0 : index
      %c0_12 = arith.constant 0 : index
      %32 = vector.load %arg5[%c0_11, %c0_12] : memref<256x8xf32, #tpu.memory_space<vmem>>, vector<128x8xf32>
      %33 = vector.extract_strided_slice %32 {offsets = [0, 7], sizes = [128, 1], strides = [1, 1]} : vector<128x8xf32> to vector<128x1xf32>
      %34 = tpu.bitcast %33 : vector<128x1xf32> -> vector<128x1xi32>
      %35 = vector.broadcast %6 : i32 to vector<128x1xi32>
      %36 = arith.subi %34, %35 : vector<128x1xi32>
      %37 = vector.broadcast %36 : vector<128x1xi32> to vector<128x256xi32>
      %38 = arith.cmpi eq, %37, %7 : vector<128x256xi32>
      %39 = arith.extui %38 : vector<128x256xi1> to vector<128x256xi32>
      %40 = arith.sitofp %39 : vector<128x256xi32> to vector<128x256xf32>
      %cst_13 = arith.constant dense<0.000000e+00> : vector<8x256xf32>
      %41 = tpu.matmul %32, %40, %cst_13 {dimension_numbers = #tpu.dot_dimension_numbers<[0], [0], [1], [1], [0, 1, 1, 1], [], []>, precision = #tpu.contract_precision<fp32>} : vector<128x8xf32>, vector<128x256xf32>, vector<8x256xf32> -> vector<8x256xf32>
      %c0_14 = arith.constant 0 : index
      %c0_15 = arith.constant 0 : index
      %c0_16 = arith.constant 0 : index
      %42 = vector.load %arg7[%c0_14, %c0_15, %c0_16] : memref<1x8x256xf32, #tpu.memory_space<vmem>>, vector<1x8x256xf32>
      %43 = vector.shape_cast %42 : vector<1x8x256xf32> to vector<8x256xf32>
      %44 = arith.addf %43, %41 : vector<8x256xf32>
      %c0_17 = arith.constant 0 : index
      %c0_18 = arith.constant 0 : index
      %c0_19 = arith.constant 0 : index
      %45 = vector.load %arg7[%c0_17, %c0_18, %c0_19] : memref<1x8x256xf32, #tpu.memory_space<vmem>>, vector<1x8x256xf32>
      %46 = vector.shape_cast %45 : vector<1x8x256xf32> to vector<8x256xf32>
      %47 = vector.shape_cast %44 : vector<8x256xf32> to vector<1x8x256xf32>
      tpu.vector_store %arg7[%c0_17, %c0_18, %c0_19], %47 {strides = array<i32>} : memref<1x8x256xf32, #tpu.memory_space<vmem>>, vector<1x8x256xf32>,
    } else {
    }
    %c1_i32_4 = arith.constant 1 : i32
    %17 = arith.cmpi sle, %3, %c1_i32_4 : i32
    %c1_i32_5 = arith.constant 1 : i32
    %18 = arith.cmpi sgt, %5, %c1_i32_5 : i32
    %19 = arith.andi %17, %18 : i1
    %20 = arith.extui %19 : i1 to i32
    %c0_i32_6 = arith.constant 0 : i32
    %21 = arith.cmpi ne, %20, %c0_i32_6 : i32
    scf.if %21 {
      %c128 = arith.constant 128 : index
      %c0_11 = arith.constant 0 : index
      %32 = vector.load %arg5[%c128, %c0_11] : memref<256x8xf32, #tpu.memory_space<vmem>>, vector<128x8xf32>
      %33 = vector.extract_strided_slice %32 {offsets = [0, 7], sizes = [128, 1], strides = [1, 1]} : vector<128x8xf32> to vector<128x1xf32>
      %34 = tpu.bitcast %33 : vector<128x1xf32> -> vector<128x1xi32>
      %35 = vector.broadcast %6 : i32 to vector<128x1xi32>
      %36 = arith.subi %34, %35 : vector<128x1xi32>
      %37 = vector.broadcast %36 : vector<128x1xi32> to vector<128x256xi32>
      %38 = arith.cmpi eq, %37, %7 : vector<128x256xi32>
      %39 = arith.extui %38 : vector<128x256xi1> to vector<128x256xi32>
      %40 = arith.sitofp %39 : vector<128x256xi32> to vector<128x256xf32>
      %cst_12 = arith.constant dense<0.000000e+00> : vector<8x256xf32>
      %41 = tpu.matmul %32, %40, %cst_12 {dimension_numbers = #tpu.dot_dimension_numbers<[0], [0], [1], [1], [0, 1, 1, 1], [], []>, precision = #tpu.contract_precision<fp32>} : vector<128x8xf32>, vector<128x256xf32>, vector<8x256xf32> -> vector<8x256xf32>
      %c0_13 = arith.constant 0 : index
      %c0_14 = arith.constant 0 : index
      %c0_15 = arith.constant 0 : index
      %42 = vector.load %arg7[%c0_13, %c0_14, %c0_15] : memref<1x8x256xf32, #tpu.memory_space<vmem>>, vector<1x8x256xf32>
      %43 = vector.shape_cast %42 : vector<1x8x256xf32> to vector<8x256xf32>
      %44 = arith.addf %43, %41 : vector<8x256xf32>
      %c0_16 = arith.constant 0 : index
      %c0_17 = arith.constant 0 : index
      %c0_18 = arith.constant 0 : index
      %45 = vector.load %arg7[%c0_16, %c0_17, %c0_18] : memref<1x8x256xf32, #tpu.memory_space<vmem>>, vector<1x8x256xf32>
      %46 = vector.shape_cast %45 : vector<1x8x256xf32> to vector<8x256xf32>
      %47 = vector.shape_cast %44 : vector<8x256xf32> to vector<1x8x256xf32>
      tpu.vector_store %arg7[%c0_16, %c0_17, %c0_18], %47 {strides = array<i32>} : memref<1x8x256xf32, #tpu.memory_space<vmem>>, vector<1x8x256xf32>,
    } else {
    }
    %c2_i32 = arith.constant 2 : i32
    %22 = arith.cmpi sle, %3, %c2_i32 : i32
    %c2_i32_7 = arith.constant 2 : i32
    %23 = arith.cmpi sgt, %5, %c2_i32_7 : i32
    %24 = arith.andi %22, %23 : i1
    %25 = arith.extui %24 : i1 to i32
    %c0_i32_8 = arith.constant 0 : i32
    %26 = arith.cmpi ne, %25, %c0_i32_8 : i32
    scf.if %26 {
      %c0_11 = arith.constant 0 : index
      %c0_12 = arith.constant 0 : index
      %32 = vector.load %arg6[%c0_11, %c0_12] : memref<256x8xf32, #tpu.memory_space<vmem>>, vector<128x8xf32>
      %33 = vector.extract_strided_slice %32 {offsets = [0, 7], sizes = [128, 1], strides = [1, 1]} : vector<128x8xf32> to vector<128x1xf32>
      %34 = tpu.bitcast %33 : vector<128x1xf32> -> vector<128x1xi32>
      %35 = vector.broadcast %6 : i32 to vector<128x1xi32>
      %36 = arith.subi %34, %35 : vector<128x1xi32>
      %37 = vector.broadcast %36 : vector<128x1xi32> to vector<128x256xi32>
      %38 = arith.cmpi eq, %37, %7 : vector<128x256xi32>
      %39 = arith.extui %38 : vector<128x256xi1> to vector<128x256xi32>
      %40 = arith.sitofp %39 : vector<128x256xi32> to vector<128x256xf32>
      %cst_13 = arith.constant dense<0.000000e+00> : vector<8x256xf32>
      %41 = tpu.matmul %32, %40, %cst_13 {dimension_numbers = #tpu.dot_dimension_numbers<[0], [0], [1], [1], [0, 1, 1, 1], [], []>, precision = #tpu.contract_precision<fp32>} : vector<128x8xf32>, vector<128x256xf32>, vector<8x256xf32> -> vector<8x256xf32>
      %c0_14 = arith.constant 0 : index
      %c0_15 = arith.constant 0 : index
      %c0_16 = arith.constant 0 : index
      %42 = vector.load %arg7[%c0_14, %c0_15, %c0_16] : memref<1x8x256xf32, #tpu.memory_space<vmem>>, vector<1x8x256xf32>
      %43 = vector.shape_cast %42 : vector<1x8x256xf32> to vector<8x256xf32>
      %44 = arith.addf %43, %41 : vector<8x256xf32>
      %c0_17 = arith.constant 0 : index
      %c0_18 = arith.constant 0 : index
      %c0_19 = arith.constant 0 : index
      %45 = vector.load %arg7[%c0_17, %c0_18, %c0_19] : memref<1x8x256xf32, #tpu.memory_space<vmem>>, vector<1x8x256xf32>
      %46 = vector.shape_cast %45 : vector<1x8x256xf32> to vector<8x256xf32>
      %47 = vector.shape_cast %44 : vector<8x256xf32> to vector<1x8x256xf32>
      tpu.vector_store %arg7[%c0_17, %c0_18, %c0_19], %47 {strides = array<i32>} : memref<1x8x256xf32, #tpu.memory_space<vmem>>, vector<1x8x256xf32>,
    } else {
    }
    %c3_i32 = arith.constant 3 : i32
    %27 = arith.cmpi sle, %3, %c3_i32 : i32
    %c3_i32_9 = arith.constant 3 : i32
    %28 = arith.cmpi sgt, %5, %c3_i32_9 : i32
    %29 = arith.andi %27, %28 : i1
    %30 = arith.extui %29 : i1 to i32
    %c0_i32_10 = arith.constant 0 : i32
    %31 = arith.cmpi ne, %30, %c0_i32_10 : i32
    scf.if %31 {
      %c128 = arith.constant 128 : index
      %c0_11 = arith.constant 0 : index
      %32 = vector.load %arg6[%c128, %c0_11] : memref<256x8xf32, #tpu.memory_space<vmem>>, vector<128x8xf32>
      %33 = vector.extract_strided_slice %32 {offsets = [0, 7], sizes = [128, 1], strides = [1, 1]} : vector<128x8xf32> to vector<128x1xf32>
      %34 = tpu.bitcast %33 : vector<128x1xf32> -> vector<128x1xi32>
      %35 = vector.broadcast %6 : i32 to vector<128x1xi32>
      %36 = arith.subi %34, %35 : vector<128x1xi32>
      %37 = vector.broadcast %36 : vector<128x1xi32> to vector<128x256xi32>
      %38 = arith.cmpi eq, %37, %7 : vector<128x256xi32>
      %39 = arith.extui %38 : vector<128x256xi1> to vector<128x256xi32>
      %40 = arith.sitofp %39 : vector<128x256xi32> to vector<128x256xf32>
      %cst_12 = arith.constant dense<0.000000e+00> : vector<8x256xf32>
      %41 = tpu.matmul %32, %40, %cst_12 {dimension_numbers = #tpu.dot_dimension_numbers<[0], [0], [1], [1], [0, 1, 1, 1], [], []>, precision = #tpu.contract_precision<fp32>} : vector<128x8xf32>, vector<128x256xf32>, vector<8x256xf32> -> vector<8x256xf32>
      %c0_13 = arith.constant 0 : index
      %c0_14 = arith.constant 0 : index
      %c0_15 = arith.constant 0 : index
      %42 = vector.load %arg7[%c0_13, %c0_14, %c0_15] : memref<1x8x256xf32, #tpu.memory_space<vmem>>, vector<1x8x256xf32>
      %43 = vector.shape_cast %42 : vector<1x8x256xf32> to vector<8x256xf32>
      %44 = arith.addf %43, %41 : vector<8x256xf32>
      %c0_16 = arith.constant 0 : index
      %c0_17 = arith.constant 0 : index
      %c0_18 = arith.constant 0 : index
      %45 = vector.load %arg7[%c0_16, %c0_17, %c0_18] : memref<1x8x256xf32, #tpu.memory_space<vmem>>, vector<1x8x256xf32>
      %46 = vector.shape_cast %45 : vector<1x8x256xf32> to vector<8x256xf32>
      %47 = vector.shape_cast %44 : vector<8x256xf32> to vector<1x8x256xf32>
      tpu.vector_store %arg7[%c0_16, %c0_17, %c0_18], %47 {strides = array<i32>} : memref<1x8x256xf32, #tpu.memory_space<vmem>>, vector<1x8x256xf32>,
    } else {
    }
    return
  }
  func.func @transform_0(%arg0: i32, %arg1: i32, %arg2: memref<2xi32, #tpu.memory_space<smem>>, %arg3: memref<2xi32, #tpu.memory_space<smem>>, %arg4: memref<2xi32, #tpu.memory_space<smem>>) -> (i32, i32) {
    %c1_i32 = arith.constant 1 : i32
    %0 = arith.muli %arg0, %c1_i32 : i32
    %1 = arith.addi %0, %arg1 : i32
    %2 = arith.index_cast %1 : i32 to index
    %3 = memref.load %arg2[%2] : memref<2xi32, #tpu.memory_space<smem>>
    %c0_i32 = arith.constant 0 : i32
    %c0_i32_0 = arith.constant 0 : i32
    return %3, %c0_i32 : i32, i32
  }
  func.func @transform_1(%arg0: i32, %arg1: i32, %arg2: memref<2xi32, #tpu.memory_space<smem>>, %arg3: memref<2xi32, #tpu.memory_space<smem>>, %arg4: memref<2xi32, #tpu.memory_space<smem>>) -> (i32, i32) {
    %c1_i32 = arith.constant 1 : i32
    %0 = arith.muli %arg0, %c1_i32 : i32
    %1 = arith.addi %0, %arg1 : i32
    %2 = arith.index_cast %1 : i32 to index
    %3 = memref.load %arg2[%2] : memref<2xi32, #tpu.memory_space<smem>>
    %c1_i32_0 = arith.constant 1 : i32
    %4 = arith.addi %3, %c1_i32_0 : i32
    %c0_i32 = arith.constant 0 : i32
    %c0_i32_1 = arith.constant 0 : i32
    return %4, %c0_i32 : i32, i32
  }
  func.func @transform_2(%arg0: i32, %arg1: i32, %arg2: memref<2xi32, #tpu.memory_space<smem>>, %arg3: memref<2xi32, #tpu.memory_space<smem>>, %arg4: memref<2xi32, #tpu.memory_space<smem>>) -> (i32, i32, i32) {
    %c0_i32 = arith.constant 0 : i32
    %c0_i32_0 = arith.constant 0 : i32
    return %arg0, %c0_i32, %arg1 : i32, i32, i32
  }
}

</mosaic_0001>

<llo_original>
// kernel: tpu_custom_call.1
$region0: #{tpu_custom_call.1}
  #allocation0 [shape = 'u32[]', space=smem, size = 0x4, offset = 0x4, fixed_abs, tag = 'smem constant byte address 0x4 - core index']
  #allocation1 [shape = 'u32[144,128]{1,0:T(1,128)}', space=vmem, size = 0x12000, scoped, tag = 'internal scratch']
  #allocation2 [shape = 's32[1]{0}', space=sflag, size = 0x4, scoped, tag = 'scoped memory for tpu_custom_call.1']
  #allocation3 [shape = 'u8[512]{0}', space=smem, size = 0x200, scoped, tag = 'prefetched SMEM operand 0']
  #allocation4 [shape = 'u8[512]{0}', space=smem, size = 0x200, scoped, tag = 'prefetched SMEM operand 1']
  #allocation5 [shape = 'u8[512]{0}', space=smem, size = 0x200, scoped, tag = 'prefetched SMEM operand 2']
  %s0 = inlined_call_operand.vmem [shape: s32[2], index: 0, kind: input, shape index: {}]
  %s1 = inlined_call_operand.vmem [shape: s32[2], index: 1, kind: input, shape index: {}]
  %s2 = inlined_call_operand.vmem [shape: s32[2], index: 2, kind: input, shape index: {}]
  %s3 = inlined_call_operand.vmem [shape: f32[512,8], index: 3, kind: input, shape index: {}]
  %s4 = inlined_call_operand.vmem [shape: f32[512,8], index: 4, kind: input, shape index: {}]
  %s5 = inlined_call_operand.hbm [shape: f32[2,8,256], index: 5, kind: output, shape index: {}]
  %s6 = sld [smem:[#allocation0]]
  $region57: #{tpu_custom_call.1} parent=0
    _
  %s8 = ssub.s32 1, %s6
  %s9 = scalar_select 0, %s8, %s6
  %s10 = sshll.u32 %s0, 4
  %s11 = int_to_ptr.vmem [resolvable:$true] %s10
  %13 = dma.vmem_to_smem %s11, 16, [#allocation3], [#allocation2]
  %s14 = sshll.u32 %s1, 4
  %s15 = int_to_ptr.vmem [resolvable:$true] %s14
  %17 = dma.vmem_to_smem %s15, 16, [#allocation4], [#allocation2]
  %s18 = sshll.u32 %s2, 4
  %s19 = int_to_ptr.vmem [resolvable:$true] %s18
  %21 = dma.vmem_to_smem %s19, 16, [#allocation5], [#allocation2]
  %22 = dma.done [#allocation2], 48
  %23 = sfence
  $region1: #{tpu_custom_call.1} parent=0
    #allocation6 [shape = 'u8[16384]{0}', space=vmem, size = 0x4000, scoped, tag = 'output window, operand 0']
    #allocation7 [shape = 's32[2]{0}', space=sflag, size = 0x8, scoped, tag = 'scoped memory for tpu_custom_call.1']
    %24 = vsyncpa [#allocation7], 0
    %s25 = scalar_lea.sflag [#allocation7], 1
    %26 = vsyncpa %s25, 0
    loop: start=0, step=1, limit=4
    $region2: #{tpu_custom_call.1} parent=1 // loop_pre_header
      _
    $region3: #{tpu_custom_call.1} parent=1 // loop_header
      %s28 = sphi 0, %s32
      %p29 = scmp.ge.s32.totalorder %s28, 4
      %s35 = sphi 0, %s47
      %s36 = sphi 0, %s43
      %s37 = sphi 0, %s35
      %s38 = sphi 0, %s36
      %s39 = sphi 0, %s37
      %s40 = sphi 0, %s38
      %s54 = sphi 0, %s56
      %s57 = sphi 0, %s54
      %s58 = sphi 0, %s57
      %s74 = sphi 0, %s58
      %s86 = sphi 0, %s88
      %s89 = sphi 0, %s86
      %s90 = sphi 0, %s89
      %s106 = sphi 0, %s90
      %s114 = sphi 0, %s116
      %s117 = sphi 0, %s114
      %s118 = sphi 0, %s117
      %s134 = sphi 0, %s118
    $region4: #{tpu_custom_call.1} parent=1 // loop_header_branch
      %31 = sbr.rel (%p29) target = $region8
    $region5: #{tpu_custom_call.1} parent=1 // loop_body
      %s33 = ssub.s32 %s28, 1
      %s34 = ssub.s32 %s28, 2
      %s41 = sadd.s32 1, %s36
      %p42 = scmp.ge.s32.totalorder %s41, 1
      %s43 = scalar_select %p42, 0, %s41
      %s44 = sadd.s32 1, %s35
      %s45 = scalar_select %p42, %s44, %s35
      %p46 = scmp.ge.s32.totalorder %s45, 2
      %s47 = scalar_select %p46, 0, %s45
      %s48 = sadd.s32 %s35, %s36
      %s49 = sld [smem:[#allocation3 + %s48]]
      %s50 = sadd.s32 %s47, %s43
      %s51 = sld [smem:[#allocation3 + %s50]]
      %s52 = ssub.s32 %s49, %s51
      %p53 = scmp.eq.s32.totalorder %s52, 0
      %s55 = sadd.s32 %s54, 1
      %s56 = scalar_select %p53, %s54, %s55
      %p59 = pneg %p53
      %p60 = scmp.eq.s32.totalorder %s28, 1
      %p61 = por %p59, %p60
      %p62 = scmp.ne.s32.totalorder %s54, %s57
      %p63 = scmp.eq.s32.totalorder %s28, 0
      %p64 = por %p62, %p63
      %p65 = scmp.ne.s32.totalorder %s54, %s57
      %p66 = scmp.eq.s32.totalorder %s33, 1
      %p67 = por %p65, %p66
      %p68 = scmp.ne.s32.totalorder %s57, %s58
      %p69 = scmp.eq.s32.totalorder %s33, 0
      %p70 = por %p68, %p69
      %p71 = scmp.ne.s32.totalorder %s57, %s58
      %p72 = scmp.eq.s32.totalorder %s34, 1
      %p73 = por %p71, %p72
      %p75 = scmp.ne.s32.totalorder %s58, %s74
      %p76 = scmp.eq.s32.totalorder %s34, 0
      %p77 = por %p75, %p76
      %s78 = sadd.s32 %s35, %s36
      %s79 = sld [smem:[#allocation3 + %s78]]
      %s80 = sadd.s32 %s79, 1
      %s81 = sadd.s32 %s47, %s43
      %s82 = sld [smem:[#allocation3 + %s81]]
      %s83 = sadd.s32 %s82, 1
      %s84 = ssub.s32 %s80, %s83
      %p85 = scmp.eq.s32.totalorder %s84, 0
      %s87 = sadd.s32 %s86, 1
      %s88 = scalar_select %p85, %s86, %s87
      %p91 = pneg %p85
      %p92 = scmp.eq.s32.totalorder %s28, 1
      %p93 = por %p91, %p92
      %p94 = scmp.ne.s32.totalorder %s86, %s89
      %p95 = scmp.eq.s32.totalorder %s28, 0
      %p96 = por %p94, %p95
      %p97 = scmp.ne.s32.totalorder %s86, %s89
      %p98 = scmp.eq.s32.totalorder %s33, 1
      %p99 = por %p97, %p98
      %p100 = scmp.ne.s32.totalorder %s89, %s90
      %p101 = scmp.eq.s32.totalorder %s33, 0
      %p102 = por %p100, %p101
      %p103 = scmp.ne.s32.totalorder %s89, %s90
      %p104 = scmp.eq.s32.totalorder %s34, 1
      %p105 = por %p103, %p104
      %p107 = scmp.ne.s32.totalorder %s90, %s106
      %p108 = scmp.eq.s32.totalorder %s34, 0
      %p109 = por %p107, %p108
      %s110 = ssub.s32 %s35, %s47
      %s111 = ssub.s32 %s36, %s43
      %s112 = sor.u32 %s110, %s111
      %p113 = scmp.eq.s32.totalorder %s112, 0
      %s115 = sadd.s32 %s114, 1
      %s116 = scalar_select %p113, %s114, %s115
      %p119 = pneg %p113
      %p120 = scmp.eq.s32.totalorder %s28, 1
      %p121 = por %p119, %p120
      %p122 = scmp.ne.s32.totalorder %s114, %s117
      %p123 = scmp.eq.s32.totalorder %s28, 0
      %p124 = por %p122, %p123
      %p125 = scmp.ne.s32.totalorder %s114, %s117
      %p126 = scmp.eq.s32.totalorder %s33, 1
      %p127 = por %p125, %p126
      %p128 = scmp.ne.s32.totalorder %s117, %s118
      %p129 = scmp.eq.s32.totalorder %s33, 0
      %p130 = por %p128, %p129
      %p131 = scmp.ne.s32.totalorder %s117, %s118
      %p132 = scmp.eq.s32.totalorder %s34, 1
      %p133 = por %p131, %p132
      %p135 = scmp.ne.s32.totalorder %s118, %s134
      %p136 = scmp.eq.s32.totalorder %s34, 0
      %p137 = por %p135, %p136
      %p138 = scmp.le.s32.totalorder 1, %s28
      %p139 = scmp.lt.s32.totalorder %s28, 3
      %p140 = pnand %p138, %p139
      %p141 = pneg %p140
      // Predicated region
      $region9: #{tpu_custom_call.1} parent=5 // pred_check
        _
      $region10: #{tpu_custom_call.1} parent=5 // pred_check_branch
        %143 = sbr.rel (%p140) target = $region12
      $region11: #{tpu_custom_call.1} parent=5 // pred_region
        %s144 = ssub.s32 %s28, 1
      $region12: #{tpu_custom_call.1} parent=5 // pred_fallthru
        _
      %p145 = scmp.lt.s32.totalorder %s28, 2
      // Predicated region
      $region13: #{tpu_custom_call.1} parent=5 // pred_check
        %p146 = pneg %p145
      $region14: #{tpu_custom_call.1} parent=5 // pred_check_branch
        %148 = sbr.rel (%p146) target = $region16
      $region15: #{tpu_custom_call.1} parent=5 // pred_region
        // Predicated region
        $region17: #{tpu_custom_call.1} parent=15 // pred_check
          %p149 = pneg %p64
        $region18: #{tpu_custom_call.1} parent=15 // pred_check_branch
          %151 = sbr.rel (%p149) target = $region20
        $region19: #{tpu_custom_call.1} parent=15 // pred_region
          %s152 = sadd.s32 %s35, %s36
          %s153 = sld [smem:[#allocation3 + %s152]]
          %s154 = smul.u32 32, %s153
          %p155 = scmp.lt.s32.totalorder %s154, 63
          %s156 = scalar_select %p155, %s154, 63
          %s157 = smul.addr %s156, 8
          %s158 = scalar_lea.vmem %s3, %s157
          %s159 = sadd.s32 %s35, %s36
          %s160 = sld [smem:[#allocation3 + %s159]]
          %s161 = smul.u32 32, %s160
        $region20: #{tpu_custom_call.1} parent=15 // pred_fallthru
          _
        // Predicated region
        $region21: #{tpu_custom_call.1} parent=15 // pred_check
          %p162 = pneg %p96
        $region22: #{tpu_custom_call.1} parent=15 // pred_check_branch
          %164 = sbr.rel (%p162) target = $region24
        $region23: #{tpu_custom_call.1} parent=15 // pred_region
          %s165 = sadd.s32 %s35, %s36
          %s166 = sld [smem:[#allocation3 + %s165]]
          %s167 = sadd.s32 %s166, 1
          %s168 = smul.u32 32, %s167
          %p169 = scmp.lt.s32.totalorder %s168, 63
          %s170 = scalar_select %p169, %s168, 63
          %s171 = smul.addr %s170, 8
          %s172 = scalar_lea.vmem %s4, %s171
          %s173 = sadd.s32 %s35, %s36
          %s174 = sld [smem:[#allocation3 + %s173]]
          %s175 = sadd.s32 %s174, 1
          %s176 = smul.u32 32, %s175
        $region24: #{tpu_custom_call.1} parent=15 // pred_fallthru
          _
      $region16: #{tpu_custom_call.1} parent=5 // pred_fallthru
        _
      %p177 = scmp.le.s32.totalorder 1, %s28
      %p178 = scmp.lt.s32.totalorder %s28, 3
      %p179 = pnand %p177, %p178
      %p180 = pneg %p179
      // Predicated region
      $region25: #{tpu_custom_call.1} parent=5 // pred_check
        _
      $region26: #{tpu_custom_call.1} parent=5 // pred_check_branch
        %182 = sbr.rel (%p179) target = $region28
      $region27: #{tpu_custom_call.1} parent=5 // pred_region
        %s183 = ssub.s32 %s28, 1
        %s184 = sadd.s32 %s37, %s38
        %s185 = sld [smem:[#allocation3 + %s184]]
        %s186 = smul.u32 32, %s185
        %p187 = scmp.lt.s32.totalorder %s186, 63
        %s188 = scalar_select %p187, %s186, 63
        %s189 = smul.addr %s188, 8
        %s190 = scalar_lea.vmem %s3, %s189
        %p191 = pneg %p70
        %p192 = pneg %p67
        %s193 = sadd.s32 %s37, %s38
        %s194 = sld [smem:[#allocation3 + %s193]]
        %s195 = sadd.s32 %s194, 1
        %s196 = smul.u32 32, %s195
        %p197 = scmp.lt.s32.totalorder %s196, 63
        %s198 = scalar_select %p197, %s196, 63
        %s199 = smul.addr %s198, 8
        %s200 = scalar_lea.vmem %s4, %s199
        %p201 = pneg %p102
        %p202 = pneg %p99
        %p203 = pneg %p130
        %p204 = pneg %p127
        %s205 = sand.u32 %s117, 1
        %s206 = scalar_lea.sflag [#allocation7], %s205
        %s207 = sand.u32 %s117, 1
        %s208 = smul.addr %s207, 16
        %s209 = scalar_lea.vmem [#allocation6], %s208
        %s210 = sadd.s32 %s37, %s38
        %s211 = sld [smem:[#allocation3 + %s210]]
        %s212 = smul.u32 32, %s211
        %p213 = scmp.lt.s32.totalorder %s212, 63
        %s214 = scalar_select %p213, %s212, 63
        %s215 = smul.addr %s214, 8
        %s216 = scalar_lea.vmem %s3, %s215
        %s217 = sadd.s32 %s37, %s38
        %s218 = sld [smem:[#allocation3 + %s217]]
        %s219 = smul.u32 32, %s218
        %s220 = sadd.s32 %s37, %s38
        %s221 = sld [smem:[#allocation3 + %s220]]
        %s222 = sadd.s32 %s221, 1
        %s223 = smul.u32 32, %s222
        %p224 = scmp.lt.s32.totalorder %s223, 63
        %s225 = scalar_select %p224, %s223, 63
        %s226 = smul.addr %s225, 8
        %s227 = scalar_lea.vmem %s4, %s226
        %s228 = sadd.s32 %s37, %s38
        %s229 = sld [smem:[#allocation3 + %s228]]
        %s230 = sadd.s32 %s229, 1
        %s231 = smul.u32 32, %s230
        %s232 = smul.u32 2, %s38
        %s233 = sadd.s32 %s37, %s38
        %s234 = sld [smem:[#allocation4 + %s233]]
        %s235 = sld [smem:[#allocation5 + %s233]]
        %s236 = smul.u32 %s233, 256
        %v237 = vlaneseq
        %v238 = vand.u32 %v237, 127
        %v239 = vadd.s32 %v238, 128
        %240 = vst [vmem:[%s209] sm:$0xff] 0.0
        %241 = vst [vmem:[%s209 + $0x8] sm:$0xff] 0.0
        %p242 = scmp.le.s32.totalorder %s234, 0
        %p243 = scmp.gt.s32.totalorder %s235, 0
        %p244 = pnand %p242, %p243
        %p245 = pneg %p244
        // Predicated region
        $region29: #{tpu_custom_call.1} parent=27 // pred_check
          _
        $region30: #{tpu_custom_call.1} parent=27 // pred_check_branch
          %247 = sbr.rel (%p244) target = $region32
        $region31: #{tpu_custom_call.1} parent=27 // pred_region
          %v248 = vld [vmem:[%s216] sm:$0xff]
          %v249 = vld [vmem:[%s216 + $0x8] sm:$0xff]
          %v250 = vld [vmem:[%s216 + $0x10] sm:$0xff]
          %v251 = vld [vmem:[%s216 + $0x18] sm:$0xff]
          %v252 = vld [vmem:[%s216 + $0x20] sm:$0xff]
          %v253 = vld [vmem:[%s216 + $0x28] sm:$0xff]
          %v254 = vld [vmem:[%s216 + $0x30] sm:$0xff]
          %v255 = vld [vmem:[%s216 + $0x38] sm:$0xff]
          %v256 = vld [vmem:[%s216 + $0x40] sm:$0xff]
          %v257 = vld [vmem:[%s216 + $0x48] sm:$0xff]
          %v258 = vld [vmem:[%s216 + $0x50] sm:$0xff]
          %v259 = vld [vmem:[%s216 + $0x58] sm:$0xff]
          %v260 = vld [vmem:[%s216 + $0x60] sm:$0xff]
          %v261 = vld [vmem:[%s216 + $0x68] sm:$0xff]
          %v262 = vld [vmem:[%s216 + $0x70] sm:$0xff]
          %v263 = vld [vmem:[%s216 + $0x78] sm:$0xff]
          %v280 = vstv %s236
          %v281 = vsub.s32 %v248, %v280
          %v282 = vsub.s32 %v249, %v280
          %v283 = vsub.s32 %v250, %v280
          %v284 = vsub.s32 %v251, %v280
          %v285 = vsub.s32 %v252, %v280
          %v286 = vsub.s32 %v253, %v280
          %v287 = vsub.s32 %v254, %v280
          %v288 = vsub.s32 %v255, %v280
          %v289 = vsub.s32 %v256, %v280
          %v290 = vsub.s32 %v257, %v280
          %v291 = vsub.s32 %v258, %v280
          %v292 = vsub.s32 %v259, %v280
          %v293 = vsub.s32 %v260, %v280
          %v294 = vsub.s32 %v261, %v280
          %v295 = vsub.s32 %v262, %v280
          %v296 = vsub.s32 %v263, %v280
          %297 = vset.pattern.permute.xlu0 7
          %298 = vperm.xlu0 %297, %v281
          %v299 = vpop.permute.xlu0 %298
          %300 = vset.pattern.permute.xlu0 7
          %301 = vperm.xlu0 %300, %v282
          %v302 = vpop.permute.xlu0 %301
          %303 = vset.pattern.permute.xlu0 7
          %304 = vperm.xlu0 %303, %v283
          %v305 = vpop.permute.xlu0 %304
          %306 = vset.pattern.permute.xlu0 7
          %307 = vperm.xlu0 %306, %v284
          %v308 = vpop.permute.xlu0 %307
          %309 = vset.pattern.permute.xlu0 7
          %310 = vperm.xlu0 %309, %v285
          %v311 = vpop.permute.xlu0 %310
          %312 = vset.pattern.permute.xlu0 7
          %313 = vperm.xlu0 %312, %v286
          %v314 = vpop.permute.xlu0 %313
          %315 = vset.pattern.permute.xlu0 7
          %316 = vperm.xlu0 %315, %v287
          %v317 = vpop.permute.xlu0 %316
          %318 = vset.pattern.permute.xlu0 7
          %319 = vperm.xlu0 %318, %v288
          %v320 = vpop.permute.xlu0 %319
          %321 = vset.pattern.permute.xlu0 7
          %322 = vperm.xlu0 %321, %v289
          %v323 = vpop.permute.xlu0 %322
          %324 = vset.pattern.permute.xlu0 7
          %325 = vperm.xlu0 %324, %v290
          %v326 = vpop.permute.xlu0 %325
          %327 = vset.pattern.permute.xlu0 7
          %328 = vperm.xlu0 %327, %v291
          %v329 = vpop.permute.xlu0 %328
          %330 = vset.pattern.permute.xlu0 7
          %331 = vperm.xlu0 %330, %v292
          %v332 = vpop.permute.xlu0 %331
          %333 = vset.pattern.permute.xlu0 7
          %334 = vperm.xlu0 %333, %v293
          %v335 = vpop.permute.xlu0 %334
          %336 = vset.pattern.permute.xlu0 7
          %337 = vperm.xlu0 %336, %v294
          %v338 = vpop.permute.xlu0 %337
          %339 = vset.pattern.permute.xlu0 7
          %340 = vperm.xlu0 %339, %v295
          %v341 = vpop.permute.xlu0 %340
          %342 = vset.pattern.permute.xlu0 7
          %343 = vperm.xlu0 %342, %v296
          %v344 = vpop.permute.xlu0 %343
          %vm345 = vcmp.eq.s32.totalorder %v299, %v238
          %vm346 = vcmp.eq.s32.totalorder %v299, %v239
          %vm347 = vcmp.eq.s32.totalorder %v302, %v238
          %vm348 = vcmp.eq.s32.totalorder %v302, %v239
          %vm349 = vcmp.eq.s32.totalorder %v305, %v238
          %vm350 = vcmp.eq.s32.totalorder %v305, %v239
          %vm351 = vcmp.eq.s32.totalorder %v308, %v238
          %vm352 = vcmp.eq.s32.totalorder %v308, %v239
          %vm353 = vcmp.eq.s32.totalorder %v311, %v238
          %vm354 = vcmp.eq.s32.totalorder %v311, %v239
          %vm355 = vcmp.eq.s32.totalorder %v314, %v238
          %vm356 = vcmp.eq.s32.totalorder %v314, %v239
          %vm357 = vcmp.eq.s32.totalorder %v317, %v238
          %vm358 = vcmp.eq.s32.totalorder %v317, %v239
          %vm359 = vcmp.eq.s32.totalorder %v320, %v238
          %vm360 = vcmp.eq.s32.totalorder %v320, %v239
          %vm361 = vcmp.eq.s32.totalorder %v323, %v238
          %vm362 = vcmp.eq.s32.totalorder %v323, %v239
          %vm363 = vcmp.eq.s32.totalorder %v326, %v238
          %vm364 = vcmp.eq.s32.totalorder %v326, %v239
          %vm365 = vcmp.eq.s32.totalorder %v329, %v238
          %vm366 = vcmp.eq.s32.totalorder %v329, %v239
          %vm367 = vcmp.eq.s32.totalorder %v332, %v238
          %vm368 = vcmp.eq.s32.totalorder %v332, %v239
          %vm369 = vcmp.eq.s32.totalorder %v335, %v238
          %vm370 = vcmp.eq.s32.totalorder %v335, %v239
          %vm371 = vcmp.eq.s32.totalorder %v338, %v238
          %vm372 = vcmp.eq.s32.totalorder %v338, %v239
          %vm373 = vcmp.eq.s32.totalorder %v341, %v238
          %vm374 = vcmp.eq.s32.totalorder %v341, %v239
          %vm375 = vcmp.eq.s32.totalorder %v344, %v238
          %vm376 = vcmp.eq.s32.totalorder %v344, %v239
          %v377 = vsel %vm345, 1, 0
          %v378 = vsel %vm346, 1, 0
          %v379 = vsel %vm347, 1, 0
          %v380 = vsel %vm348, 1, 0
          %v381 = vsel %vm349, 1, 0
          %v382 = vsel %vm350, 1, 0
          %v383 = vsel %vm351, 1, 0
          %v384 = vsel %vm352, 1, 0
          %v385 = vsel %vm353, 1, 0
          %v386 = vsel %vm354, 1, 0
          %v387 = vsel %vm355, 1, 0
          %v388 = vsel %vm356, 1, 0
          %v389 = vsel %vm357, 1, 0
          %v390 = vsel %vm358, 1, 0
          %v391 = vsel %vm359, 1, 0
          %v392 = vsel %vm360, 1, 0
          %v393 = vsel %vm361, 1, 0
          %v394 = vsel %vm362, 1, 0
          %v395 = vsel %vm363, 1, 0
          %v396 = vsel %vm364, 1, 0
          %v397 = vsel %vm365, 1, 0
          %v398 = vsel %vm366, 1, 0
          %v399 = vsel %vm367, 1, 0
          %v400 = vsel %vm368, 1, 0
          %v401 = vsel %vm369, 1, 0
          %v402 = vsel %vm370, 1, 0
          %v403 = vsel %vm371, 1, 0
          %v404 = vsel %vm372, 1, 0
          %v405 = vsel %vm373, 1, 0
          %v406 = vsel %vm374, 1, 0
          %v407 = vsel %vm375, 1, 0
          %v408 = vsel %vm376, 1, 0
          %v409 = vcvt.s32.f32 %v377
          %v410 = vcvt.s32.f32 %v378
          %v411 = vcvt.s32.f32 %v379
          %v412 = vcvt.s32.f32 %v380
          %v413 = vcvt.s32.f32 %v381
          %v414 = vcvt.s32.f32 %v382
          %v415 = vcvt.s32.f32 %v383
          %v416 = vcvt.s32.f32 %v384
          %v417 = vcvt.s32.f32 %v385
          %v418 = vcvt.s32.f32 %v386
          %v419 = vcvt.s32.f32 %v387
          %v420 = vcvt.s32.f32 %v388
          %v421 = vcvt.s32.f32 %v389
          %v422 = vcvt.s32.f32 %v390
          %v423 = vcvt.s32.f32 %v391
          %v424 = vcvt.s32.f32 %v392
          %v425 = vcvt.s32.f32 %v393
          %v426 = vcvt.s32.f32 %v394
          %v427 = vcvt.s32.f32 %v395
          %v428 = vcvt.s32.f32 %v396
          %v429 = vcvt.s32.f32 %v397
          %v430 = vcvt.s32.f32 %v398
          %v431 = vcvt.s32.f32 %v399
          %v432 = vcvt.s32.f32 %v400
          %v433 = vcvt.s32.f32 %v401
          %v434 = vcvt.s32.f32 %v402
          %v435 = vcvt.s32.f32 %v403
          %v436 = vcvt.s32.f32 %v404
          %v437 = vcvt.s32.f32 %v405
          %v438 = vcvt.s32.f32 %v406
          %v439 = vcvt.s32.f32 %v407
          %v440 = vcvt.s32.f32 %v408
          %441 = vxpose.xlu0.b32.start [1/16] %v248, 128
          %442 = vxpose.xlu0.b32.cont [2/16] %v249, 128
          %443 = vxpose.xlu0.b32.cont [3/16] %v250, 128
          %444 = vxpose.xlu0.b32.cont [4/16] %v251, 128
          %445 = vxpose.xlu0.b32.cont [5/16] %v252, 128
          %446 = vxpose.xlu0.b32.cont [6/16] %v253, 128
          %447 = vxpose.xlu0.b32.cont [7/16] %v254, 128
          %448 = vxpose.xlu0.b32.cont [8/16] %v255, 128
          %449 = vxpose.xlu0.b32.cont [9/16] %v256, 128
          %450 = vxpose.xlu0.b32.cont [10/16] %v257, 128
          %451 = vxpose.xlu0.b32.cont [11/16] %v258, 128
          %452 = vxpose.xlu0.b32.cont [12/16] %v259, 128
          %453 = vxpose.xlu0.b32.cont [13/16] %v260, 128
          %454 = vxpose.xlu0.b32.cont [14/16] %v261, 128
          %455 = vxpose.xlu0.b32.cont [15/16] %v262, 128
          %456 = vxpose.xlu0.b32.end [16/16] %v263, 128
          %v457 = vpop.trf.xlu0
          %v458 = vpop.trf.xlu0
          %v459 = vpop.trf.xlu0
          %v460 = vpop.trf.xlu0
          %v461 = vpop.trf.xlu0
          %v462 = vpop.trf.xlu0
          %v463 = vpop.trf.xlu0
          %v464 = vpop.trf.xlu0
          %v465 = vpop.trf.xlu0
          %v466 = vpop.trf.xlu0
          %v467 = vpop.trf.xlu0
          %v468 = vpop.trf.xlu0
          %v469 = vpop.trf.xlu0
          %v470 = vpop.trf.xlu0
          %v471 = vpop.trf.xlu0
          %v472 = vpop.trf.xlu0
          %v473 = vand.u32 %v410, 4294901760
          %474 = vmatprep.subr.mxu0 %v473
          %v475 = vand.u32 %v409, 4294901760
          %476 = vmatpush1.msra.mxu0 %v475
          %v477 = vand.u32 %v412, 4294901760
          %478 = vmatprep.subr.mxu0 %v477
          %v479 = vand.u32 %v411, 4294901760
          %480 = vmatpush1.msra.mxu0 %v479
          %v481 = vand.u32 %v414, 4294901760
          %482 = vmatprep.subr.mxu0 %v481
          %v483 = vand.u32 %v413, 4294901760
          %484 = vmatpush1.msra.mxu0 %v483
          %v485 = vand.u32 %v416, 4294901760
          %486 = vmatprep.subr.mxu0 %v485
          %v487 = vand.u32 %v415, 4294901760
          %488 = vmatpush1.msra.mxu0 %v487
          %v489 = vand.u32 %v418, 4294901760
          %490 = vmatprep.subr.mxu0 %v489
          %v491 = vand.u32 %v417, 4294901760
          %492 = vmatpush1.msra.mxu0 %v491
          %v493 = vand.u32 %v420, 4294901760
          %494 = vmatprep.subr.mxu0 %v493
          %v495 = vand.u32 %v419, 4294901760
          %496 = vmatpush1.msra.mxu0 %v495
          %v497 = vand.u32 %v422, 4294901760
          %498 = vmatprep.subr.mxu0 %v497
          %v499 = vand.u32 %v421, 4294901760
          %500 = vmatpush1.msra.mxu0 %v499
          %v501 = vand.u32 %v424, 4294901760
          %502 = vmatprep.subr.mxu0 %v501
          %v503 = vand.u32 %v423, 4294901760
          %504 = vmatpush1.msra.mxu0 %v503
          %v505 = vand.u32 %v426, 4294901760
          %506 = vmatprep.subr.mxu0 %v505
          %v507 = vand.u32 %v425, 4294901760
          %508 = vmatpush1.msra.mxu0 %v507
          %v509 = vand.u32 %v428, 4294901760
          %510 = vmatprep.subr.mxu0 %v509
          %v511 = vand.u32 %v427, 4294901760
          %512 = vmatpush1.msra.mxu0 %v511
          %v513 = vand.u32 %v430, 4294901760
          %514 = vmatprep.subr.mxu0 %v513
          %v515 = vand.u32 %v429, 4294901760
          %516 = vmatpush1.msra.mxu0 %v515
          %v517 = vand.u32 %v432, 4294901760
          %518 = vmatprep.subr.mxu0 %v517
          %v519 = vand.u32 %v431, 4294901760
          %520 = vmatpush1.msra.mxu0 %v519
          %v521 = vand.u32 %v434, 4294901760
          %522 = vmatprep.subr.mxu0 %v521
          %v523 = vand.u32 %v433, 4294901760
          %524 = vmatpush1.msra.mxu0 %v523
          %v525 = vand.u32 %v436, 4294901760
          %526 = vmatprep.subr.mxu0 %v525
          %v527 = vand.u32 %v435, 4294901760
          %528 = vmatpush1.msra.mxu0 %v527
          %v529 = vand.u32 %v438, 4294901760
          %530 = vmatprep.subr.mxu0 %v529
          %v531 = vand.u32 %v437, 4294901760
          %532 = vmatpush1.msra.mxu0 %v531
          %v533 = vand.u32 %v440, 4294901760
          %534 = vmatprep.subr.mxu0 %v533
          %v535 = vand.u32 %v439, 4294901760
          %536 = vmatpush1.msra.mxu0 %v535
          %537 = vmatprep.subr.mxu0 0.0
          %538 = vmatpush1.msra.mxu0 0.0
          %539 = vmatprep.subr.mxu0 0.0
          %540 = vmatpush1.msra.mxu0 0.0
          %541 = vmatprep.subr.mxu0 0.0
          %542 = vmatpush1.msra.mxu0 0.0
          %543 = vmatprep.subr.mxu0 0.0
          %544 = vmatpush1.msra.mxu0 0.0
          %545 = vmatprep.subr.mxu0 0.0
          %546 = vmatpush1.msra.mxu0 0.0
          %547 = vmatprep.subr.mxu0 0.0
          %548 = vmatpush1.msra.mxu0 0.0
          %549 = vmatprep.subr.mxu0 0.0
          %550 = vmatpush1.msra.mxu0 0.0
          %551 = vmatprep.subr.mxu0 0.0
          %552 = vmatpush1.msra.mxu0 0.0
          %553 = vmatprep.subr.mxu0 0.0
          %554 = vmatpush1.msra.mxu0 0.0
          %555 = vmatprep.subr.mxu0 0.0
          %556 = vmatpush1.msra.mxu0 0.0
          %557 = vmatprep.subr.mxu0 0.0
          %558 = vmatpush1.msra.mxu0 0.0
          %559 = vmatprep.subr.mxu0 0.0
          %560 = vmatpush1.msra.mxu0 0.0
          %561 = vmatprep.subr.mxu0 0.0
          %562 = vmatpush1.msra.mxu0 0.0
          %563 = vmatprep.subr.mxu0 0.0
          %564 = vmatpush1.msra.mxu0 0.0
          %565 = vmatprep.subr.mxu0 0.0
          %566 = vmatpush1.msra.mxu0 0.0
          %567 = vmatprep.subr.mxu0 0.0
          %568 = vmatpush1.msra.mxu0 0.0
          %569 = vmatprep.mubr.f32.mxu0 0.0
          %v570 = vand.u32 %v457, 4294901760
          %v571 = vsub.f32 %v457, %v570
          %v572 = vand.u32 %v571, 4294901760
          %v573 = vsub.f32 %v571, %v572
          %v574 = vand.u32 %v573, 4294901760
          %575 = vmatmul.mubr.f32.gmra.mrb[0].mxu0 %v574
          %v576 = vpop.f32.mrb[0].mxu0
          %v577 = vadd.f32 0.0, %v576
          %v578 = vpop.f32.mrb[0].mxu0
          %v579 = vadd.f32 0.0, %v578
          %580 = vdwg.mxu0
          %v581 = vand.u32 %v410, 4294901760
          %v582 = vsub.f32 %v410, %v581
          %v583 = vand.u32 %v582, 4294901760
          %v584 = vsub.f32 %v582, %v583
          %v585 = vand.u32 %v584, 4294901760
          %586 = vmatprep.subr.mxu0 %v585
          %v587 = vand.u32 %v409, 4294901760
          %v588 = vsub.f32 %v409, %v587
          %v589 = vand.u32 %v588, 4294901760
          %v590 = vsub.f32 %v588, %v589
          %v591 = vand.u32 %v590, 4294901760
          %592 = vmatpush1.msra.mxu0 %v591
          %v593 = vand.u32 %v412, 4294901760
          %v594 = vsub.f32 %v412, %v593
          %v595 = vand.u32 %v594, 4294901760
          %v596 = vsub.f32 %v594, %v595
          %v597 = vand.u32 %v596, 4294901760
          %598 = vmatprep.subr.mxu0 %v597
          %v599 = vand.u32 %v411, 4294901760
          %v600 = vsub.f32 %v411, %v599
          %v601 = vand.u32 %v600, 4294901760
          %v602 = vsub.f32 %v600, %v601
          %v603 = vand.u32 %v602, 4294901760
          %604 = vmatpush1.msra.mxu0 %v603
          %v605 = vand.u32 %v414, 4294901760
          %v606 = vsub.f32 %v414, %v605
          %v607 = vand.u32 %v606, 4294901760
          %v608 = vsub.f32 %v606, %v607
          %v609 = vand.u32 %v608, 4294901760
          %610 = vmatprep.subr.mxu0 %v609
          %v611 = vand.u32 %v413, 4294901760
          %v612 = vsub.f32 %v413, %v611
          %v613 = vand.u32 %v612, 4294901760
          %v614 = vsub.f32 %v612, %v613
          %v615 = vand.u32 %v614, 4294901760
          %616 = vmatpush1.msra.mxu0 %v615
          %v617 = vand.u32 %v416, 4294901760
          %v618 = vsub.f32 %v416, %v617
          %v619 = vand.u32 %v618, 4294901760
          %v620 = vsub.f32 %v618, %v619
          %v621 = vand.u32 %v620, 4294901760
          %622 = vmatprep.subr.mxu0 %v621
          %v623 = vand.u32 %v415, 4294901760
          %v624 = vsub.f32 %v415, %v623
          %v625 = vand.u32 %v624, 4294901760
          %v626 = vsub.f32 %v624, %v625
          %v627 = vand.u32 %v626, 4294901760
          %628 = vmatpush1.msra.mxu0 %v627
          %v629 = vand.u32 %v418, 4294901760
          %v630 = vsub.f32 %v418, %v629
          %v631 = vand.u32 %v630, 4294901760
          %v632 = vsub.f32 %v630, %v631
          %v633 = vand.u32 %v632, 4294901760
          %634 = vmatprep.subr.mxu0 %v633
          %v635 = vand.u32 %v417, 4294901760
          %v636 = vsub.f32 %v417, %v635
          %v637 = vand.u32 %v636, 4294901760
          %v638 = vsub.f32 %v636, %v637
          %v639 = vand.u32 %v638, 4294901760
          %640 = vmatpush1.msra.mxu0 %v639
          %v641 = vand.u32 %v420, 4294901760
          %v642 = vsub.f32 %v420, %v641
          %v643 = vand.u32 %v642, 4294901760
          %v644 = vsub.f32 %v642, %v643
          %v645 = vand.u32 %v644, 4294901760
          %646 = vmatprep.subr.mxu0 %v645
          %v647 = vand.u32 %v419, 4294901760
          %v648 = vsub.f32 %v419, %v647
          %v649 = vand.u32 %v648, 4294901760
          %v650 = vsub.f32 %v648, %v649
          %v651 = vand.u32 %v650, 4294901760
          %652 = vmatpush1.msra.mxu0 %v651
          %v653 = vand.u32 %v422, 4294901760
          %v654 = vsub.f32 %v422, %v653
          %v655 = vand.u32 %v654, 4294901760
          %v656 = vsub.f32 %v654, %v655
          %v657 = vand.u32 %v656, 4294901760
          %658 = vmatprep.subr.mxu0 %v657
          %v659 = vand.u32 %v421, 4294901760
          %v660 = vsub.f32 %v421, %v659
          %v661 = vand.u32 %v660, 4294901760
          %v662 = vsub.f32 %v660, %v661
          %v663 = vand.u32 %v662, 4294901760
          %664 = vmatpush1.msra.mxu0 %v663
          %v665 = vand.u32 %v424, 4294901760
          %v666 = vsub.f32 %v424, %v665
          %v667 = vand.u32 %v666, 4294901760
          %v668 = vsub.f32 %v666, %v667
          %v669 = vand.u32 %v668, 4294901760
          %670 = vmatprep.subr.mxu0 %v669
          %v671 = vand.u32 %v423, 4294901760
          %v672 = vsub.f32 %v423, %v671
          %v673 = vand.u32 %v672, 4294901760
          %v674 = vsub.f32 %v672, %v673
          %v675 = vand.u32 %v674, 4294901760
          %676 = vmatpush1.msra.mxu0 %v675
          %v677 = vand.u32 %v426, 4294901760
          %v678 = vsub.f32 %v426, %v677
          %v679 = vand.u32 %v678, 4294901760
          %v680 = vsub.f32 %v678, %v679
          %v681 = vand.u32 %v680, 4294901760
          %682 = vmatprep.subr.mxu0 %v681
          %v683 = vand.u32 %v425, 4294901760
          %v684 = vsub.f32 %v425, %v683
          %v685 = vand.u32 %v684, 4294901760
          %v686 = vsub.f32 %v684, %v685
          %v687 = vand.u32 %v686, 4294901760
          %688 = vmatpush1.msra.mxu0 %v687
          %v689 = vand.u32 %v428, 4294901760
          %v690 = vsub.f32 %v428, %v689
          %v691 = vand.u32 %v690, 4294901760
          %v692 = vsub.f32 %v690, %v691
          %v693 = vand.u32 %v692, 4294901760
          %694 = vmatprep.subr.mxu0 %v693
          %v695 = vand.u32 %v427, 4294901760
          %v696 = vsub.f32 %v427, %v695
          %v697 = vand.u32 %v696, 4294901760
          %v698 = vsub.f32 %v696, %v697
          %v699 = vand.u32 %v698, 4294901760
          %700 = vmatpush1.msra.mxu0 %v699
          %v701 = vand.u32 %v430, 4294901760
          %v702 = vsub.f32 %v430, %v701
          %v703 = vand.u32 %v702, 4294901760
          %v704 = vsub.f32 %v702, %v703
          %v705 = vand.u32 %v704, 4294901760
          %706 = vmatprep.subr.mxu0 %v705
          %v707 = vand.u32 %v429, 4294901760
          %v708 = vsub.f32 %v429, %v707
          %v709 = vand.u32 %v708, 4294901760
          %v710 = vsub.f32 %v708, %v709
          %v711 = vand.u32 %v710, 4294901760
          %712 = vmatpush1.msra.mxu0 %v711
          %v713 = vand.u32 %v432, 4294901760
          %v714 = vsub.f32 %v432, %v713
          %v715 = vand.u32 %v714, 4294901760
          %v716 = vsub.f32 %v714, %v715
          %v717 = vand.u32 %v716, 4294901760
          %718 = vmatprep.subr.mxu0 %v717
          %v719 = vand.u32 %v431, 4294901760
          %v720 = vsub.f32 %v431, %v719
          %v721 = vand.u32 %v720, 4294901760
          %v722 = vsub.f32 %v720, %v721
          %v723 = vand.u32 %v722, 4294901760
          %724 = vmatpush1.msra.mxu0 %v723
          %v725 = vand.u32 %v434, 4294901760
          %v726 = vsub.f32 %v434, %v725
          %v727 = vand.u32 %v726, 4294901760
          %v728 = vsub.f32 %v726, %v727
          %v729 = vand.u32 %v728, 4294901760
          %730 = vmatprep.subr.mxu0 %v729
          %v731 = vand.u32 %v433, 4294901760
          %v732 = vsub.f32 %v433, %v731
          %v733 = vand.u32 %v732, 4294901760
          %v734 = vsub.f32 %v732, %v733
          %v735 = vand.u32 %v734, 4294901760
          %736 = vmatpush1.msra.mxu0 %v735
          %v737 = vand.u32 %v436, 4294901760
          %v738 = vsub.f32 %v436, %v737
          %v739 = vand.u32 %v738, 4294901760
          %v740 = vsub.f32 %v738, %v739
          %v741 = vand.u32 %v740, 4294901760
          %742 = vmatprep.subr.mxu0 %v741
          %v743 = vand.u32 %v435, 4294901760
          %v744 = vsub.f32 %v435, %v743
          %v745 = vand.u32 %v744, 4294901760
          %v746 = vsub.f32 %v744, %v745
          %v747 = vand.u32 %v746, 4294901760
          %748 = vmatpush1.msra.mxu0 %v747
          %v749 = vand.u32 %v438, 4294901760
          %v750 = vsub.f32 %v438, %v749
          %v751 = vand.u32 %v750, 4294901760
          %v752 = vsub.f32 %v750, %v751
          %v753 = vand.u32 %v752, 4294901760
          %754 = vmatprep.subr.mxu0 %v753
          %v755 = vand.u32 %v437, 4294901760
          %v756 = vsub.f32 %v437, %v755
          %v757 = vand.u32 %v756, 4294901760
          %v758 = vsub.f32 %v756, %v757
          %v759 = vand.u32 %v758, 4294901760
          %760 = vmatpush1.msra.mxu0 %v759
          %v761 = vand.u32 %v440, 4294901760
          %v762 = vsub.f32 %v440, %v761
          %v763 = vand.u32 %v762, 4294901760
          %v764 = vsub.f32 %v762, %v763
          %v765 = vand.u32 %v764, 4294901760
          %766 = vmatprep.subr.mxu0 %v765
          %v767 = vand.u32 %v439, 4294901760
          %v768 = vsub.f32 %v439, %v767
          %v769 = vand.u32 %v768, 4294901760
          %v770 = vsub.f32 %v768, %v769
          %v771 = vand.u32 %v770, 4294901760
          %772 = vmatpush1.msra.mxu0 %v771
          %773 = vmatprep.subr.mxu0 0.0
          %774 = vmatpush1.msra.mxu0 0.0
          %775 = vmatprep.subr.mxu0 0.0
          %776 = vmatpush1.msra.mxu0 0.0
          %777 = vmatprep.subr.mxu0 0.0
          %778 = vmatpush1.msra.mxu0 0.0
          %779 = vmatprep.subr.mxu0 0.0
          %780 = vmatpush1.msra.mxu0 0.0
          %781 = vmatprep.subr.mxu0 0.0
          %782 = vmatpush1.msra.mxu0 0.0
          %783 = vmatprep.subr.mxu0 0.0
          %784 = vmatpush1.msra.mxu0 0.0
          %785 = vmatprep.subr.mxu0 0.0
          %786 = vmatpush1.msra.mxu0 0.0
          %787 = vmatprep.subr.mxu0 0.0
          %788 = vmatpush1.msra.mxu0 0.0
          %789 = vmatprep.subr.mxu0 0.0
          %790 = vmatpush1.msra.mxu0 0.0
          %791 = vmatprep.subr.mxu0 0.0
          %792 = vmatpush1.msra.mxu0 0.0
          %793 = vmatprep.subr.mxu0 0.0
          %794 = vmatpush1.msra.mxu0 0.0
          %795 = vmatprep.subr.mxu0 0.0
          %796 = vmatpush1.msra.mxu0 0.0
          %797 = vmatprep.subr.mxu0 0.0
          %798 = vmatpush1.msra.mxu0 0.0
          %799 = vmatprep.subr.mxu0 0.0
          %800 = vmatpush1.msra.mxu0 0.0
          %801 = vmatprep.subr.mxu0 0.0
          %802 = vmatpush1.msra.mxu0 0.0
          %803 = vmatprep.subr.mxu0 0.0
          %804 = vmatpush1.msra.mxu0 0.0
          %805 = vmatprep.mubr.f32.mxu0 0.0
          %v806 = vand.u32 %v457, 4294901760
          %807 = vmatmul.mubr.f32.gmra.mrb[0].mxu0 %v806
          %v808 = vpop.f32.mrb[0].mxu0
          %v809 = vadd.f32 %v577, %v808
          %v810 = vpop.f32.mrb[0].mxu0
          %v811 = vadd.f32 %v579, %v810
          %812 = vdwg.mxu0
          %v813 = vand.u32 %v410, 4294901760
          %v814 = vsub.f32 %v410, %v813
          %815 = vmatprep.subr.mxu0 %v814
          %v816 = vand.u32 %v409, 4294901760
          %v817 = vsub.f32 %v409, %v816
          %818 = vmatpush1.msra.mxu0 %v817
          %v819 = vand.u32 %v412, 4294901760
          %v820 = vsub.f32 %v412, %v819
          %821 = vmatprep.subr.mxu0 %v820
          %v822 = vand.u32 %v411, 4294901760
          %v823 = vsub.f32 %v411, %v822
          %824 = vmatpush1.msra.mxu0 %v823
          %v825 = vand.u32 %v414, 4294901760
          %v826 = vsub.f32 %v414, %v825
          %827 = vmatprep.subr.mxu0 %v826
          %v828 = vand.u32 %v413, 4294901760
          %v829 = vsub.f32 %v413, %v828
          %830 = vmatpush1.msra.mxu0 %v829
          %v831 = vand.u32 %v416, 4294901760
          %v832 = vsub.f32 %v416, %v831
          %833 = vmatprep.subr.mxu0 %v832
          %v834 = vand.u32 %v415, 4294901760
          %v835 = vsub.f32 %v415, %v834
          %836 = vmatpush1.msra.mxu0 %v835
          %v837 = vand.u32 %v418, 4294901760
          %v838 = vsub.f32 %v418, %v837
          %839 = vmatprep.subr.mxu0 %v838
          %v840 = vand.u32 %v417, 4294901760
          %v841 = vsub.f32 %v417, %v840
          %842 = vmatpush1.msra.mxu0 %v841
          %v843 = vand.u32 %v420, 4294901760
          %v844 = vsub.f32 %v420, %v843
          %845 = vmatprep.subr.mxu0 %v844
          %v846 = vand.u32 %v419, 4294901760
          %v847 = vsub.f32 %v419, %v846
          %848 = vmatpush1.msra.mxu0 %v847
          %v849 = vand.u32 %v422, 4294901760
          %v850 = vsub.f32 %v422, %v849
          %851 = vmatprep.subr.mxu0 %v850
          %v852 = vand.u32 %v421, 4294901760
          %v853 = vsub.f32 %v421, %v852
          %854 = vmatpush1.msra.mxu0 %v853
          %v855 = vand.u32 %v424, 4294901760
          %v856 = vsub.f32 %v424, %v855
          %857 = vmatprep.subr.mxu0 %v856
          %v858 = vand.u32 %v423, 4294901760
          %v859 = vsub.f32 %v423, %v858
          %860 = vmatpush1.msra.mxu0 %v859
          %v861 = vand.u32 %v426, 4294901760
          %v862 = vsub.f32 %v426, %v861
          %863 = vmatprep.subr.mxu0 %v862
          %v864 = vand.u32 %v425, 4294901760
          %v865 = vsub.f32 %v425, %v864
          %866 = vmatpush1.msra.mxu0 %v865
          %v867 = vand.u32 %v428, 4294901760
          %v868 = vsub.f32 %v428, %v867
          %869 = vmatprep.subr.mxu0 %v868
          %v870 = vand.u32 %v427, 4294901760
          %v871 = vsub.f32 %v427, %v870
          %872 = vmatpush1.msra.mxu0 %v871
          %v873 = vand.u32 %v430, 4294901760
          %v874 = vsub.f32 %v430, %v873
          %875 = vmatprep.subr.mxu0 %v874
          %v876 = vand.u32 %v429, 4294901760
          %v877 = vsub.f32 %v429, %v876
          %878 = vmatpush1.msra.mxu0 %v877
          %v879 = vand.u32 %v432, 4294901760
          %v880 = vsub.f32 %v432, %v879
          %881 = vmatprep.subr.mxu0 %v880
          %v882 = vand.u32 %v431, 4294901760
          %v883 = vsub.f32 %v431, %v882
          %884 = vmatpush1.msra.mxu0 %v883
          %v885 = vand.u32 %v434, 4294901760
          %v886 = vsub.f32 %v434, %v885
          %887 = vmatprep.subr.mxu0 %v886
          %v888 = vand.u32 %v433, 4294901760
          %v889 = vsub.f32 %v433, %v888
          %890 = vmatpush1.msra.mxu0 %v889
          %v891 = vand.u32 %v436, 4294901760
          %v892 = vsub.f32 %v436, %v891
          %893 = vmatprep.subr.mxu0 %v892
          %v894 = vand.u32 %v435, 4294901760
          %v895 = vsub.f32 %v435, %v894
          %896 = vmatpush1.msra.mxu0 %v895
          %v897 = vand.u32 %v438, 4294901760
          %v898 = vsub.f32 %v438, %v897
          %899 = vmatprep.subr.mxu0 %v898
          %v900 = vand.u32 %v437, 4294901760
          %v901 = vsub.f32 %v437, %v900
          %902 = vmatpush1.msra.mxu0 %v901
          %v903 = vand.u32 %v440, 4294901760
          %v904 = vsub.f32 %v440, %v903
          %905 = vmatprep.subr.mxu0 %v904
          %v906 = vand.u32 %v439, 4294901760
          %v907 = vsub.f32 %v439, %v906
          %908 = vmatpush1.msra.mxu0 %v907
          %909 = vmatprep.subr.mxu0 0.0
          %910 = vmatpush1.msra.mxu0 0.0
          %911 = vmatprep.subr.mxu0 0.0
          %912 = vmatpush1.msra.mxu0 0.0
          %913 = vmatprep.subr.mxu0 0.0
          %914 = vmatpush1.msra.mxu0 0.0
          %915 = vmatprep.subr.mxu0 0.0
          %916 = vmatpush1.msra.mxu0 0.0
          %917 = vmatprep.subr.mxu0 0.0
          %918 = vmatpush1.msra.mxu0 0.0
          %919 = vmatprep.subr.mxu0 0.0
          %920 = vmatpush1.msra.mxu0 0.0
          %921 = vmatprep.subr.mxu0 0.0
          %922 = vmatpush1.msra.mxu0 0.0
          %923 = vmatprep.subr.mxu0 0.0
          %924 = vmatpush1.msra.mxu0 0.0
          %925 = vmatprep.subr.mxu0 0.0
          %926 = vmatpush1.msra.mxu0 0.0
          %927 = vmatprep.subr.mxu0 0.0
          %928 = vmatpush1.msra.mxu0 0.0
          %929 = vmatprep.subr.mxu0 0.0
          %930 = vmatpush1.msra.mxu0 0.0
          %931 = vmatprep.subr.mxu0 0.0
          %932 = vmatpush1.msra.mxu0 0.0
          %933 = vmatprep.subr.mxu0 0.0
          %934 = vmatpush1.msra.mxu0 0.0
          %935 = vmatprep.subr.mxu0 0.0
          %936 = vmatpush1.msra.mxu0 0.0
          %937 = vmatprep.subr.mxu0 0.0
          %938 = vmatpush1.msra.mxu0 0.0
          %939 = vmatprep.subr.mxu0 0.0
          %940 = vmatpush1.msra.mxu0 0.0
          %941 = vmatprep.mubr.f32.mxu0 0.0
          %v942 = vand.u32 %v457, 4294901760
          %v943 = vsub.f32 %v457, %v942
          %944 = vmatmul.mubr.f32.gmra.mrb[0].mxu0 %v943
          %v945 = vpop.f32.mrb[0].mxu0
          %v946 = vadd.f32 %v809, %v945
          %v947 = vpop.f32.mrb[0].mxu0
          %v948 = vadd.f32 %v811, %v947
          %949 = vdwg.mxu0
          %v950 = vand.u32 %v410, 4294901760
          %951 = vmatprep.subr.mxu0 %v950
          %v952 = vand.u32 %v409, 4294901760
          %953 = vmatpush1.msra.mxu0 %v952
          %v954 = vand.u32 %v412, 4294901760
          %955 = vmatprep.subr.mxu0 %v954
          %v956 = vand.u32 %v411, 4294901760
          %957 = vmatpush1.msra.mxu0 %v956
          %v958 = vand.u32 %v414, 4294901760
          %959 = vmatprep.subr.mxu0 %v958
          %v960 = vand.u32 %v413, 4294901760
          %961 = vmatpush1.msra.mxu0 %v960
          %v962 = vand.u32 %v416, 4294901760
          %963 = vmatprep.subr.mxu0 %v962
          %v964 = vand.u32 %v415, 4294901760
          %965 = vmatpush1.msra.mxu0 %v964
          %v966 = vand.u32 %v418, 4294901760
          %967 = vmatprep.subr.mxu0 %v966
          %v968 = vand.u32 %v417, 4294901760
          %969 = vmatpush1.msra.mxu0 %v968
          %v970 = vand.u32 %v420, 4294901760
          %971 = vmatprep.subr.mxu0 %v970
          %v972 = vand.u32 %v419, 4294901760
          %973 = vmatpush1.msra.mxu0 %v972
          %v974 = vand.u32 %v422, 4294901760
          %975 = vmatprep.subr.mxu0 %v974
          %v976 = vand.u32 %v421, 4294901760
          %977 = vmatpush1.msra.mxu0 %v976
          %v978 = vand.u32 %v424, 4294901760
          %979 = vmatprep.subr.mxu0 %v978
          %v980 = vand.u32 %v423, 4294901760
          %981 = vmatpush1.msra.mxu0 %v980
          %v982 = vand.u32 %v426, 4294901760
          %983 = vmatprep.subr.mxu0 %v982
          %v984 = vand.u32 %v425, 4294901760
          %985 = vmatpush1.msra.mxu0 %v984
          %v986 = vand.u32 %v428, 4294901760
          %987 = vmatprep.subr.mxu0 %v986
          %v988 = vand.u32 %v427, 4294901760
          %989 = vmatpush1.msra.mxu0 %v988
          %v990 = vand.u32 %v430, 4294901760
          %991 = vmatprep.subr.mxu0 %v990
          %v992 = vand.u32 %v429, 4294901760
          %993 = vmatpush1.msra.mxu0 %v992
          %v994 = vand.u32 %v432, 4294901760
          %995 = vmatprep.subr.mxu0 %v994
          %v996 = vand.u32 %v431, 4294901760
          %997 = vmatpush1.msra.mxu0 %v996
          %v998 = vand.u32 %v434, 4294901760
          %999 = vmatprep.subr.mxu0 %v998
          %v1000 = vand.u32 %v433, 4294901760
          %1001 = vmatpush1.msra.mxu0 %v1000
          %v1002 = vand.u32 %v436, 4294901760
          %1003 = vmatprep.subr.mxu0 %v1002
          %v1004 = vand.u32 %v435, 4294901760
          %1005 = vmatpush1.msra.mxu0 %v1004
          %v1006 = vand.u32 %v438, 4294901760
          %1007 = vmatprep.subr.mxu0 %v1006
          %v1008 = vand.u32 %v437, 4294901760
          %1009 = vmatpush1.msra.mxu0 %v1008
          %v1010 = vand.u32 %v440, 4294901760
          %1011 = vmatprep.subr.mxu0 %v1010
          %v1012 = vand.u32 %v439, 4294901760
          %1013 = vmatpush1.msra.mxu0 %v1012
          %1014 = vmatprep.subr.mxu0 0.0
          %1015 = vmatpush1.msra.mxu0 0.0
          %1016 = vmatprep.subr.mxu0 0.0
          %1017 = vmatpush1.msra.mxu0 0.0
          %1018 = vmatprep.subr.mxu0 0.0
          %1019 = vmatpush1.msra.mxu0 0.0
          %1020 = vmatprep.subr.mxu0 0.0
          %1021 = vmatpush1.msra.mxu0 0.0
          %1022 = vmatprep.subr.mxu0 0.0
          %1023 = vmatpush1.msra.mxu0 0.0
          %1024 = vmatprep.subr.mxu0 0.0
          %1025 = vmatpush1.msra.mxu0 0.0
          %1026 = vmatprep.subr.mxu0 0.0
          %1027 = vmatpush1.msra.mxu0 0.0
          %1028 = vmatprep.subr.mxu0 0.0
          %1029 = vmatpush1.msra.mxu0 0.0
          %1030 = vmatprep.subr.mxu0 0.0
          %1031 = vmatpush1.msra.mxu0 0.0
          %1032 = vmatprep.subr.mxu0 0.0
          %1033 = vmatpush1.msra.mxu0 0.0
          %1034 = vmatprep.subr.mxu0 0.0
          %1035 = vmatpush1.msra.mxu0 0.0
          %1036 = vmatprep.subr.mxu0 0.0
          %1037 = vmatpush1.msra.mxu0 0.0
          %1038 = vmatprep.subr.mxu0 0.0
          %1039 = vmatpush1.msra.mxu0 0.0
          %1040 = vmatprep.subr.mxu0 0.0
          %1041 = vmatpush1.msra.mxu0 0.0
          %1042 = vmatprep.subr.mxu0 0.0
          %1043 = vmatpush1.msra.mxu0 0.0
          %1044 = vmatprep.subr.mxu0 0.0
          %1045 = vmatpush1.msra.mxu0 0.0
          %1046 = vmatprep.mubr.f32.mxu0 0.0
          %v1047 = vand.u32 %v457, 4294901760
          %v1048 = vsub.f32 %v457, %v1047
          %v1049 = vand.u32 %v1048, 4294901760
          %1050 = vmatmul.mubr.f32.gmra.mrb[0].mxu0 %v1049
          %v1051 = vpop.f32.mrb[0].mxu0
          %v1052 = vadd.f32 %v946, %v1051
          %v1053 = vpop.f32.mrb[0].mxu0
          %v1054 = vadd.f32 %v948, %v1053
          %1055 = vdwg.mxu0
          %v1056 = vand.u32 %v410, 4294901760
          %v1057 = vsub.f32 %v410, %v1056
          %v1058 = vand.u32 %v1057, 4294901760
          %1059 = vmatprep.subr.mxu0 %v1058
          %v1060 = vand.u32 %v409, 4294901760
          %v1061 = vsub.f32 %v409, %v1060
          %v1062 = vand.u32 %v1061, 4294901760
          %1063 = vmatpush1.msra.mxu0 %v1062
          %v1064 = vand.u32 %v412, 4294901760
          %v1065 = vsub.f32 %v412, %v1064
          %v1066 = vand.u32 %v1065, 4294901760
          %1067 = vmatprep.subr.mxu0 %v1066
          %v1068 = vand.u32 %v411, 4294901760
          %v1069 = vsub.f32 %v411, %v1068
          %v1070 = vand.u32 %v1069, 4294901760
          %1071 = vmatpush1.msra.mxu0 %v1070
          %v1072 = vand.u32 %v414, 4294901760
          %v1073 = vsub.f32 %v414, %v1072
          %v1074 = vand.u32 %v1073, 4294901760
          %1075 = vmatprep.subr.mxu0 %v1074
          %v1076 = vand.u32 %v413, 4294901760
          %v1077 = vsub.f32 %v413, %v1076
          %v1078 = vand.u32 %v1077, 4294901760
          %1079 = vmatpush1.msra.mxu0 %v1078
          %v1080 = vand.u32 %v416, 4294901760
          %v1081 = vsub.f32 %v416, %v1080
          %v1082 = vand.u32 %v1081, 4294901760
          %1083 = vmatprep.subr.mxu0 %v1082
          %v1084 = vand.u32 %v415, 4294901760
          %v1085 = vsub.f32 %v415, %v1084
          %v1086 = vand.u32 %v1085, 4294901760
          %1087 = vmatpush1.msra.mxu0 %v1086
          %v1088 = vand.u32 %v418, 4294901760
          %v1089 = vsub.f32 %v418, %v1088
          %v1090 = vand.u32 %v1089, 4294901760
          %1091 = vmatprep.subr.mxu0 %v1090
          %v1092 = vand.u32 %v417, 4294901760
          %v1093 = vsub.f32 %v417, %v1092
          %v1094 = vand.u32 %v1093, 4294901760
          %1095 = vmatpush1.msra.mxu0 %v1094
          %v1096 = vand.u32 %v420, 4294901760
          %v1097 = vsub.f32 %v420, %v1096
          %v1098 = vand.u32 %v1097, 4294901760
          %1099 = vmatprep.subr.mxu0 %v1098
          %v1100 = vand.u32 %v419, 4294901760
          %v1101 = vsub.f32 %v419, %v1100
          %v1102 = vand.u32 %v1101, 4294901760
          %1103 = vmatpush1.msra.mxu0 %v1102
          %v1104 = vand.u32 %v422, 4294901760
          %v1105 = vsub.f32 %v422, %v1104
          %v1106 = vand.u32 %v1105, 4294901760
          %1107 = vmatprep.subr.mxu0 %v1106
          %v1108 = vand.u32 %v421, 4294901760
          %v1109 = vsub.f32 %v421, %v1108
          %v1110 = vand.u32 %v1109, 4294901760
          %1111 = vmatpush1.msra.mxu0 %v1110
          %v1112 = vand.u32 %v424, 4294901760
          %v1113 = vsub.f32 %v424, %v1112
          %v1114 = vand.u32 %v1113, 4294901760
          %1115 = vmatprep.subr.mxu0 %v1114
          %v1116 = vand.u32 %v423, 4294901760
          %v1117 = vsub.f32 %v423, %v1116
          %v1118 = vand.u32 %v1117, 4294901760
          %1119 = vmatpush1.msra.mxu0 %v1118
          %v1120 = vand.u32 %v426, 4294901760
          %v1121 = vsub.f32 %v426, %v1120
          %v1122 = vand.u32 %v1121, 4294901760
          %1123 = vmatprep.subr.mxu0 %v1122
          %v1124 = vand.u32 %v425, 4294901760
          %v1125 = vsub.f32 %v425, %v1124
          %v1126 = vand.u32 %v1125, 4294901760
          %1127 = vmatpush1.msra.mxu0 %v1126
          %v1128 = vand.u32 %v428, 4294901760
          %v1129 = vsub.f32 %v428, %v1128
          %v1130 = vand.u32 %v1129, 4294901760
          %1131 = vmatprep.subr.mxu0 %v1130
          %v1132 = vand.u32 %v427, 4294901760
          %v1133 = vsub.f32 %v427, %v1132
          %v1134 = vand.u32 %v1133, 4294901760
          %1135 = vmatpush1.msra.mxu0 %v1134
          %v1136 = vand.u32 %v430, 4294901760
          %v1137 = vsub.f32 %v430, %v1136
          %v1138 = vand.u32 %v1137, 4294901760
          %1139 = vmatprep.subr.mxu0 %v1138
          %v1140 = vand.u32 %v429, 4294901760
          %v1141 = vsub.f32 %v429, %v1140
          %v1142 = vand.u32 %v1141, 4294901760
          %1143 = vmatpush1.msra.mxu0 %v1142
          %v1144 = vand.u32 %v432, 4294901760
          %v1145 = vsub.f32 %v432, %v1144
          %v1146 = vand.u32 %v1145, 4294901760
          %1147 = vmatprep.subr.mxu0 %v1146
          %v1148 = vand.u32 %v431, 4294901760
          %v1149 = vsub.f32 %v431, %v1148
          %v1150 = vand.u32 %v1149, 4294901760
          %1151 = vmatpush1.msra.mxu0 %v1150
          %v1152 = vand.u32 %v434, 4294901760
          %v1153 = vsub.f32 %v434, %v1152
          %v1154 = vand.u32 %v1153, 4294901760
          %1155 = vmatprep.subr.mxu0 %v1154
          %v1156 = vand.u32 %v433, 4294901760
          %v1157 = vsub.f32 %v433, %v1156
          %v1158 = vand.u32 %v1157, 4294901760
          %1159 = vmatpush1.msra.mxu0 %v1158
          %v1160 = vand.u32 %v436, 4294901760
          %v1161 = vsub.f32 %v436, %v1160
          %v1162 = vand.u32 %v1161, 4294901760
          %1163 = vmatprep.subr.mxu0 %v1162
          %v1164 = vand.u32 %v435, 4294901760
          %v1165 = vsub.f32 %v435, %v1164
          %v1166 = vand.u32 %v1165, 4294901760
          %1167 = vmatpush1.msra.mxu0 %v1166
          %v1168 = vand.u32 %v438, 4294901760
          %v1169 = vsub.f32 %v438, %v1168
          %v1170 = vand.u32 %v1169, 4294901760
          %1171 = vmatprep.subr.mxu0 %v1170
          %v1172 = vand.u32 %v437, 4294901760
          %v1173 = vsub.f32 %v437, %v1172
          %v1174 = vand.u32 %v1173, 4294901760
          %1175 = vmatpush1.msra.mxu0 %v1174
          %v1176 = vand.u32 %v440, 4294901760
          %v1177 = vsub.f32 %v440, %v1176
          %v1178 = vand.u32 %v1177, 4294901760
          %1179 = vmatprep.subr.mxu0 %v1178
          %v1180 = vand.u32 %v439, 4294901760
          %v1181 = vsub.f32 %v439, %v1180
          %v1182 = vand.u32 %v1181, 4294901760
          %1183 = vmatpush1.msra.mxu0 %v1182
          %1184 = vmatprep.subr.mxu0 0.0
          %1185 = vmatpush1.msra.mxu0 0.0
          %1186 = vmatprep.subr.mxu0 0.0
          %1187 = vmatpush1.msra.mxu0 0.0
          %1188 = vmatprep.subr.mxu0 0.0
          %1189 = vmatpush1.msra.mxu0 0.0
          %1190 = vmatprep.subr.mxu0 0.0
          %1191 = vmatpush1.msra.mxu0 0.0
          %1192 = vmatprep.subr.mxu0 0.0
          %1193 = vmatpush1.msra.mxu0 0.0
          %1194 = vmatprep.subr.mxu0 0.0
          %1195 = vmatpush1.msra.mxu0 0.0
          %1196 = vmatprep.subr.mxu0 0.0
          %1197 = vmatpush1.msra.mxu0 0.0
          %1198 = vmatprep.subr.mxu0 0.0
          %1199 = vmatpush1.msra.mxu0 0.0
          %1200 = vmatprep.subr.mxu0 0.0
          %1201 = vmatpush1.msra.mxu0 0.0
          %1202 = vmatprep.subr.mxu0 0.0
          %1203 = vmatpush1.msra.mxu0 0.0
          %1204 = vmatprep.subr.mxu0 0.0
          %1205 = vmatpush1.msra.mxu0 0.0
          %1206 = vmatprep.subr.mxu0 0.0
          %1207 = vmatpush1.msra.mxu0 0.0
          %1208 = vmatprep.subr.mxu0 0.0
          %1209 = vmatpush1.msra.mxu0 0.0
          %1210 = vmatprep.subr.mxu0 0.0
          %1211 = vmatpush1.msra.mxu0 0.0
          %1212 = vmatprep.subr.mxu0 0.0
          %1213 = vmatpush1.msra.mxu0 0.0
          %1214 = vmatprep.subr.mxu0 0.0
          %1215 = vmatpush1.msra.mxu0 0.0
          %1216 = vmatprep.mubr.f32.mxu0 0.0
          %v1217 = vand.u32 %v457, 4294901760
          %1218 = vmatmul.mubr.f32.gmra.mrb[0].mxu0 %v1217
          %v1219 = vpop.f32.mrb[0].mxu0
          %v1220 = vadd.f32 %v1052, %v1219
          %v1221 = vpop.f32.mrb[0].mxu0
          %v1222 = vadd.f32 %v1054, %v1221
          %1223 = vdwg.mxu0
          %v1224 = vand.u32 %v410, 4294901760
          %1225 = vmatprep.subr.mxu0 %v1224
          %v1226 = vand.u32 %v409, 4294901760
          %1227 = vmatpush1.msra.mxu0 %v1226
          %v1228 = vand.u32 %v412, 4294901760
          %1229 = vmatprep.subr.mxu0 %v1228
          %v1230 = vand.u32 %v411, 4294901760
          %1231 = vmatpush1.msra.mxu0 %v1230
          %v1232 = vand.u32 %v414, 4294901760
          %1233 = vmatprep.subr.mxu0 %v1232
          %v1234 = vand.u32 %v413, 4294901760
          %1235 = vmatpush1.msra.mxu0 %v1234
          %v1236 = vand.u32 %v416, 4294901760
          %1237 = vmatprep.subr.mxu0 %v1236
          %v1238 = vand.u32 %v415, 4294901760
          %1239 = vmatpush1.msra.mxu0 %v1238
          %v1240 = vand.u32 %v418, 4294901760
          %1241 = vmatprep.subr.mxu0 %v1240
          %v1242 = vand.u32 %v417, 4294901760
          %1243 = vmatpush1.msra.mxu0 %v1242
          %v1244 = vand.u32 %v420, 4294901760
          %1245 = vmatprep.subr.mxu0 %v1244
          %v1246 = vand.u32 %v419, 4294901760
          %1247 = vmatpush1.msra.mxu0 %v1246
          %v1248 = vand.u32 %v422, 4294901760
          %1249 = vmatprep.subr.mxu0 %v1248
          %v1250 = vand.u32 %v421, 4294901760
          %1251 = vmatpush1.msra.mxu0 %v1250
          %v1252 = vand.u32 %v424, 4294901760
          %1253 = vmatprep.subr.mxu0 %v1252
          %v1254 = vand.u32 %v423, 4294901760
          %1255 = vmatpush1.msra.mxu0 %v1254
          %v1256 = vand.u32 %v426, 4294901760
          %1257 = vmatprep.subr.mxu0 %v1256
          %v1258 = vand.u32 %v425, 4294901760
          %1259 = vmatpush1.msra.mxu0 %v1258
          %v1260 = vand.u32 %v428, 4294901760
          %1261 = vmatprep.subr.mxu0 %v1260
          %v1262 = vand.u32 %v427, 4294901760
          %1263 = vmatpush1.msra.mxu0 %v1262
          %v1264 = vand.u32 %v430, 4294901760
          %1265 = vmatprep.subr.mxu0 %v1264
          %v1266 = vand.u32 %v429, 4294901760
          %1267 = vmatpush1.msra.mxu0 %v1266
          %v1268 = vand.u32 %v432, 4294901760
          %1269 = vmatprep.subr.mxu0 %v1268
          %v1270 = vand.u32 %v431, 4294901760
          %1271 = vmatpush1.msra.mxu0 %v1270
          %v1272 = vand.u32 %v434, 4294901760
          %1273 = vmatprep.subr.mxu0 %v1272
          %v1274 = vand.u32 %v433, 4294901760
          %1275 = vmatpush1.msra.mxu0 %v1274
          %v1276 = vand.u32 %v436, 4294901760
          %1277 = vmatprep.subr.mxu0 %v1276
          %v1278 = vand.u32 %v435, 4294901760
          %1279 = vmatpush1.msra.mxu0 %v1278
          %v1280 = vand.u32 %v438, 4294901760
          %1281 = vmatprep.subr.mxu0 %v1280
          %v1282 = vand.u32 %v437, 4294901760
          %1283 = vmatpush1.msra.mxu0 %v1282
          %v1284 = vand.u32 %v440, 4294901760
          %1285 = vmatprep.subr.mxu0 %v1284
          %v1286 = vand.u32 %v439, 4294901760
          %1287 = vmatpush1.msra.mxu0 %v1286
          %1288 = vmatprep.subr.mxu0 0.0
          %1289 = vmatpush1.msra.mxu0 0.0
          %1290 = vmatprep.subr.mxu0 0.0
          %1291 = vmatpush1.msra.mxu0 0.0
          %1292 = vmatprep.subr.mxu0 0.0
          %1293 = vmatpush1.msra.mxu0 0.0
          %1294 = vmatprep.subr.mxu0 0.0
          %1295 = vmatpush1.msra.mxu0 0.0
          %1296 = vmatprep.subr.mxu0 0.0
          %1297 = vmatpush1.msra.mxu0 0.0
          %1298 = vmatprep.subr.mxu0 0.0
          %1299 = vmatpush1.msra.mxu0 0.0
          %1300 = vmatprep.subr.mxu0 0.0
          %1301 = vmatpush1.msra.mxu0 0.0
          %1302 = vmatprep.subr.mxu0 0.0
          %1303 = vmatpush1.msra.mxu0 0.0
          %1304 = vmatprep.subr.mxu0 0.0
          %1305 = vmatpush1.msra.mxu0 0.0
          %1306 = vmatprep.subr.mxu0 0.0
          %1307 = vmatpush1.msra.mxu0 0.0
          %1308 = vmatprep.subr.mxu0 0.0
          %1309 = vmatpush1.msra.mxu0 0.0
          %1310 = vmatprep.subr.mxu0 0.0
          %1311 = vmatpush1.msra.mxu0 0.0
          %1312 = vmatprep.subr.mxu0 0.0
          %1313 = vmatpush1.msra.mxu0 0.0
          %1314 = vmatprep.subr.mxu0 0.0
          %1315 = vmatpush1.msra.mxu0 0.0
          %1316 = vmatprep.subr.mxu0 0.0
          %1317 = vmatpush1.msra.mxu0 0.0
          %1318 = vmatprep.subr.mxu0 0.0
          %1319 = vmatpush1.msra.mxu0 0.0
          %1320 = vmatprep.mubr.f32.mxu0 0.0
          %v1321 = vand.u32 %v457, 4294901760
          %1322 = vmatmul.mubr.f32.gmra.mrb[0].mxu0 %v1321
          %v1323 = vpop.f32.mrb[0].mxu0
          %v1324 = vadd.f32 %v1220, %v1323
          %v1325 = vpop.f32.mrb[0].mxu0
          %v1326 = vadd.f32 %v1222, %v1325
          %1327 = vdwg.mxu0
          %v1328 = vld [vmem:[%s209] sm:$0xff]
          %v1329 = vld [vmem:[%s209 + $0x8] sm:$0xff]
          %v1330 = vadd.f32 %v1328, %v1324
          %v1331 = vadd.f32 %v1329, %v1326
          %1332 = vst [vmem:[%s209] sm:$0xff] %v1330
          %1333 = vst [vmem:[%s209 + $0x8] sm:$0xff] %v1331
        $region32: #{tpu_custom_call.1} parent=27 // pred_fallthru
          _
        %p1334 = scmp.le.s32.totalorder %s234, 1
        %p1335 = scmp.gt.s32.totalorder %s235, 1
        %p1336 = pnand %p1334, %p1335
        %p1337 = pneg %p1336
        // Predicated region
        $region33: #{tpu_custom_call.1} parent=27 // pred_check
          _
        $region34: #{tpu_custom_call.1} parent=27 // pred_check_branch
          %1339 = sbr.rel (%p1336) target = $region36
        $region35: #{tpu_custom_call.1} parent=27 // pred_region
          %v1340 = vld [vmem:[%s216 + $0x80] sm:$0xff]
          %v1341 = vld [vmem:[%s216 + $0x88] sm:$0xff]
          %v1342 = vld [vmem:[%s216 + $0x90] sm:$0xff]
          %v1343 = vld [vmem:[%s216 + $0x98] sm:$0xff]
          %v1344 = vld [vmem:[%s216 + $0xa0] sm:$0xff]
          %v1345 = vld [vmem:[%s216 + $0xa8] sm:$0xff]
          %v1346 = vld [vmem:[%s216 + $0xb0] sm:$0xff]
          %v1347 = vld [vmem:[%s216 + $0xb8] sm:$0xff]
          %v1348 = vld [vmem:[%s216 + $0xc0] sm:$0xff]
          %v1349 = vld [vmem:[%s216 + $0xc8] sm:$0xff]
          %v1350 = vld [vmem:[%s216 + $0xd0] sm:$0xff]
          %v1351 = vld [vmem:[%s216 + $0xd8] sm:$0xff]
          %v1352 = vld [vmem:[%s216 + $0xe0] sm:$0xff]
          %v1353 = vld [vmem:[%s216 + $0xe8] sm:$0xff]
          %v1354 = vld [vmem:[%s216 + $0xf0] sm:$0xff]
          %v1355 = vld [vmem:[%s216 + $0xf8] sm:$0xff]
          %v1372 = vstv %s236
          %v1373 = vsub.s32 %v1340, %v1372
          %v1374 = vsub.s32 %v1341, %v1372
          %v1375 = vsub.s32 %v1342, %v1372
          %v1376 = vsub.s32 %v1343, %v1372
          %v1377 = vsub.s32 %v1344, %v1372
          %v1378 = vsub.s32 %v1345, %v1372
          %v1379 = vsub.s32 %v1346, %v1372
          %v1380 = vsub.s32 %v1347, %v1372
          %v1381 = vsub.s32 %v1348, %v1372
          %v1382 = vsub.s32 %v1349, %v1372
          %v1383 = vsub.s32 %v1350, %v1372
          %v1384 = vsub.s32 %v1351, %v1372
          %v1385 = vsub.s32 %v1352, %v1372
          %v1386 = vsub.s32 %v1353, %v1372
          %v1387 = vsub.s32 %v1354, %v1372
          %v1388 = vsub.s32 %v1355, %v1372
          %1389 = vset.pattern.permute.xlu0 7
          %1390 = vperm.xlu0 %1389, %v1373
          %v1391 = vpop.permute.xlu0 %1390
          %1392 = vset.pattern.permute.xlu0 7
          %1393 = vperm.xlu0 %1392, %v1374
          %v1394 = vpop.permute.xlu0 %1393
          %1395 = vset.pattern.permute.xlu0 7
          %1396 = vperm.xlu0 %1395, %v1375
          %v1397 = vpop.permute.xlu0 %1396
          %1398 = vset.pattern.permute.xlu0 7
          %1399 = vperm.xlu0 %1398, %v1376
          %v1400 = vpop.permute.xlu0 %1399
          %1401 = vset.pattern.permute.xlu0 7
          %1402 = vperm.xlu0 %1401, %v1377
          %v1403 = vpop.permute.xlu0 %1402
          %1404 = vset.pattern.permute.xlu0 7
          %1405 = vperm.xlu0 %1404, %v1378
          %v1406 = vpop.permute.xlu0 %1405
          %1407 = vset.pattern.permute.xlu0 7
          %1408 = vperm.xlu0 %1407, %v1379
          %v1409 = vpop.permute.xlu0 %1408
          %1410 = vset.pattern.permute.xlu0 7
          %1411 = vperm.xlu0 %1410, %v1380
          %v1412 = vpop.permute.xlu0 %1411
          %1413 = vset.pattern.permute.xlu0 7
          %1414 = vperm.xlu0 %1413, %v1381
          %v1415 = vpop.permute.xlu0 %1414
          %1416 = vset.pattern.permute.xlu0 7
          %1417 = vperm.xlu0 %1416, %v1382
          %v1418 = vpop.permute.xlu0 %1417
          %1419 = vset.pattern.permute.xlu0 7
          %1420 = vperm.xlu0 %1419, %v1383
          %v1421 = vpop.permute.xlu0 %1420
          %1422 = vset.pattern.permute.xlu0 7
          %1423 = vperm.xlu0 %1422, %v1384
          %v1424 = vpop.permute.xlu0 %1423
          %1425 = vset.pattern.permute.xlu0 7
          %1426 = vperm.xlu0 %1425, %v1385
          %v1427 = vpop.permute.xlu0 %1426
          %1428 = vset.pattern.permute.xlu0 7
          %1429 = vperm.xlu0 %1428, %v1386
          %v1430 = vpop.permute.xlu0 %1429
          %1431 = vset.pattern.permute.xlu0 7
          %1432 = vperm.xlu0 %1431, %v1387
          %v1433 = vpop.permute.xlu0 %1432
          %1434 = vset.pattern.permute.xlu0 7
          %1435 = vperm.xlu0 %1434, %v1388
          %v1436 = vpop.permute.xlu0 %1435
          %vm1437 = vcmp.eq.s32.totalorder %v1391, %v238
          %vm1438 = vcmp.eq.s32.totalorder %v1391, %v239
          %vm1439 = vcmp.eq.s32.totalorder %v1394, %v238
          %vm1440 = vcmp.eq.s32.totalorder %v1394, %v239
          %vm1441 = vcmp.eq.s32.totalorder %v1397, %v238
          %vm1442 = vcmp.eq.s32.totalorder %v1397, %v239
          %vm1443 = vcmp.eq.s32.totalorder %v1400, %v238
          %vm1444 = vcmp.eq.s32.totalorder %v1400, %v239
          %vm1445 = vcmp.eq.s32.totalorder %v1403, %v238
          %vm1446 = vcmp.eq.s32.totalorder %v1403, %v239
          %vm1447 = vcmp.eq.s32.totalorder %v1406, %v238
          %vm1448 = vcmp.eq.s32.totalorder %v1406, %v239
          %vm1449 = vcmp.eq.s32.totalorder %v1409, %v238
          %vm1450 = vcmp.eq.s32.totalorder %v1409, %v239
          %vm1451 = vcmp.eq.s32.totalorder %v1412, %v238
          %vm1452 = vcmp.eq.s32.totalorder %v1412, %v239
          %vm1453 = vcmp.eq.s32.totalorder %v1415, %v238
          %vm1454 = vcmp.eq.s32.totalorder %v1415, %v239
          %vm1455 = vcmp.eq.s32.totalorder %v1418, %v238
          %vm1456 = vcmp.eq.s32.totalorder %v1418, %v239
          %vm1457 = vcmp.eq.s32.totalorder %v1421, %v238
          %vm1458 = vcmp.eq.s32.totalorder %v1421, %v239
          %vm1459 = vcmp.eq.s32.totalorder %v1424, %v238
          %vm1460 = vcmp.eq.s32.totalorder %v1424, %v239
          %vm1461 = vcmp.eq.s32.totalorder %v1427, %v238
          %vm1462 = vcmp.eq.s32.totalorder %v1427, %v239
          %vm1463 = vcmp.eq.s32.totalorder %v1430, %v238
          %vm1464 = vcmp.eq.s32.totalorder %v1430, %v239
          %vm1465 = vcmp.eq.s32.totalorder %v1433, %v238
          %vm1466 = vcmp.eq.s32.totalorder %v1433, %v239
          %vm1467 = vcmp.eq.s32.totalorder %v1436, %v238
          %vm1468 = vcmp.eq.s32.totalorder %v1436, %v239
          %v1469 = vsel %vm1437, 1, 0
          %v1470 = vsel %vm1438, 1, 0
          %v1471 = vsel %vm1439, 1, 0
          %v1472 = vsel %vm1440, 1, 0
          %v1473 = vsel %vm1441, 1, 0
          %v1474 = vsel %vm1442, 1, 0
          %v1475 = vsel %vm1443, 1, 0
          %v1476 = vsel %vm1444, 1, 0
          %v1477 = vsel %vm1445, 1, 0
          %v1478 = vsel %vm1446, 1, 0
          %v1479 = vsel %vm1447, 1, 0
          %v1480 = vsel %vm1448, 1, 0
          %v1481 = vsel %vm1449, 1, 0
          %v1482 = vsel %vm1450, 1, 0
          %v1483 = vsel %vm1451, 1, 0
          %v1484 = vsel %vm1452, 1, 0
          %v1485 = vsel %vm1453, 1, 0
          %v1486 = vsel %vm1454, 1, 0
          %v1487 = vsel %vm1455, 1, 0
          %v1488 = vsel %vm1456, 1, 0
          %v1489 = vsel %vm1457, 1, 0
          %v1490 = vsel %vm1458, 1, 0
          %v1491 = vsel %vm1459, 1, 0
          %v1492 = vsel %vm1460, 1, 0
          %v1493 = vsel %vm1461, 1, 0
          %v1494 = vsel %vm1462, 1, 0
          %v1495 = vsel %vm1463, 1, 0
          %v1496 = vsel %vm1464, 1, 0
          %v1497 = vsel %vm1465, 1, 0
          %v1498 = vsel %vm1466, 1, 0
          %v1499 = vsel %vm1467, 1, 0
          %v1500 = vsel %vm1468, 1, 0
          %v1501 = vcvt.s32.f32 %v1469
          %v1502 = vcvt.s32.f32 %v1470
          %v1503 = vcvt.s32.f32 %v1471
          %v1504 = vcvt.s32.f32 %v1472
          %v1505 = vcvt.s32.f32 %v1473
          %v1506 = vcvt.s32.f32 %v1474
          %v1507 = vcvt.s32.f32 %v1475
          %v1508 = vcvt.s32.f32 %v1476
          %v1509 = vcvt.s32.f32 %v1477
          %v1510 = vcvt.s32.f32 %v1478
          %v1511 = vcvt.s32.f32 %v1479
          %v1512 = vcvt.s32.f32 %v1480
          %v1513 = vcvt.s32.f32 %v1481
          %v1514 = vcvt.s32.f32 %v1482
          %v1515 = vcvt.s32.f32 %v1483
          %v1516 = vcvt.s32.f32 %v1484
          %v1517 = vcvt.s32.f32 %v1485
          %v1518 = vcvt.s32.f32 %v1486
          %v1519 = vcvt.s32.f32 %v1487
          %v1520 = vcvt.s32.f32 %v1488
          %v1521 = vcvt.s32.f32 %v1489
          %v1522 = vcvt.s32.f32 %v1490
          %v1523 = vcvt.s32.f32 %v1491
          %v1524 = vcvt.s32.f32 %v1492
          %v1525 = vcvt.s32.f32 %v1493
          %v1526 = vcvt.s32.f32 %v1494
          %v1527 = vcvt.s32.f32 %v1495
          %v1528 = vcvt.s32.f32 %v1496
          %v1529 = vcvt.s32.f32 %v1497
          %v1530 = vcvt.s32.f32 %v1498
          %v1531 = vcvt.s32.f32 %v1499
          %v1532 = vcvt.s32.f32 %v1500
          %1533 = vxpose.xlu0.b32.start [1/16] %v1340, 128
          %1534 = vxpose.xlu0.b32.cont [2/16] %v1341, 128
          %1535 = vxpose.xlu0.b32.cont [3/16] %v1342, 128
          %1536 = vxpose.xlu0.b32.cont [4/16] %v1343, 128
          %1537 = vxpose.xlu0.b32.cont [5/16] %v1344, 128
          %1538 = vxpose.xlu0.b32.cont [6/16] %v1345, 128
          %1539 = vxpose.xlu0.b32.cont [7/16] %v1346, 128
          %1540 = vxpose.xlu0.b32.cont [8/16] %v1347, 128
          %1541 = vxpose.xlu0.b32.cont [9/16] %v1348, 128
          %1542 = vxpose.xlu0.b32.cont [10/16] %v1349, 128
          %1543 = vxpose.xlu0.b32.cont [11/16] %v1350, 128
          %1544 = vxpose.xlu0.b32.cont [12/16] %v1351, 128
          %1545 = vxpose.xlu0.b32.cont [13/16] %v1352, 128
          %1546 = vxpose.xlu0.b32.cont [14/16] %v1353, 128
          %1547 = vxpose.xlu0.b32.cont [15/16] %v1354, 128
          %1548 = vxpose.xlu0.b32.end [16/16] %v1355, 128
          %v1549 = vpop.trf.xlu0
          %v1550 = vpop.trf.xlu0
          %v1551 = vpop.trf.xlu0
          %v1552 = vpop.trf.xlu0
          %v1553 = vpop.trf.xlu0
          %v1554 = vpop.trf.xlu0
          %v1555 = vpop.trf.xlu0
          %v1556 = vpop.trf.xlu0
          %v1557 = vpop.trf.xlu0
          %v1558 = vpop.trf.xlu0
          %v1559 = vpop.trf.xlu0
          %v1560 = vpop.trf.xlu0
          %v1561 = vpop.trf.xlu0
          %v1562 = vpop.trf.xlu0
          %v1563 = vpop.trf.xlu0
          %v1564 = vpop.trf.xlu0
          %v1565 = vand.u32 %v1502, 4294901760
          %1566 = vmatprep.subr.mxu0 %v1565
          %v1567 = vand.u32 %v1501, 4294901760
          %1568 = vmatpush1.msra.mxu0 %v1567
          %v1569 = vand.u32 %v1504, 4294901760
          %1570 = vmatprep.subr.mxu0 %v1569
          %v1571 = vand.u32 %v1503, 4294901760
          %1572 = vmatpush1.msra.mxu0 %v1571
          %v1573 = vand.u32 %v1506, 4294901760
          %1574 = vmatprep.subr.mxu0 %v1573
          %v1575 = vand.u32 %v1505, 4294901760
          %1576 = vmatpush1.msra.mxu0 %v1575
          %v1577 = vand.u32 %v1508, 4294901760
          %1578 = vmatprep.subr.mxu0 %v1577
          %v1579 = vand.u32 %v1507, 4294901760
          %1580 = vmatpush1.msra.mxu0 %v1579
          %v1581 = vand.u32 %v1510, 4294901760
          %1582 = vmatprep.subr.mxu0 %v1581
          %v1583 = vand.u32 %v1509, 4294901760
          %1584 = vmatpush1.msra.mxu0 %v1583
          %v1585 = vand.u32 %v1512, 4294901760
          %1586 = vmatprep.subr.mxu0 %v1585
          %v1587 = vand.u32 %v1511, 4294901760
          %1588 = vmatpush1.msra.mxu0 %v1587
          %v1589 = vand.u32 %v1514, 4294901760
          %1590 = vmatprep.subr.mxu0 %v1589
          %v1591 = vand.u32 %v1513, 4294901760
          %1592 = vmatpush1.msra.mxu0 %v1591
          %v1593 = vand.u32 %v1516, 4294901760
          %1594 = vmatprep.subr.mxu0 %v1593
          %v1595 = vand.u32 %v1515, 4294901760
          %1596 = vmatpush1.msra.mxu0 %v1595
          %v1597 = vand.u32 %v1518, 4294901760
          %1598 = vmatprep.subr.mxu0 %v1597
          %v1599 = vand.u32 %v1517, 4294901760
          %1600 = vmatpush1.msra.mxu0 %v1599
          %v1601 = vand.u32 %v1520, 4294901760
          %1602 = vmatprep.subr.mxu0 %v1601
          %v1603 = vand.u32 %v1519, 4294901760
          %1604 = vmatpush1.msra.mxu0 %v1603
          %v1605 = vand.u32 %v1522, 4294901760
          %1606 = vmatprep.subr.mxu0 %v1605
          %v1607 = vand.u32 %v1521, 4294901760
          %1608 = vmatpush1.msra.mxu0 %v1607
          %v1609 = vand.u32 %v1524, 4294901760
          %1610 = vmatprep.subr.mxu0 %v1609
          %v1611 = vand.u32 %v1523, 4294901760
          %1612 = vmatpush1.msra.mxu0 %v1611
          %v1613 = vand.u32 %v1526, 4294901760
          %1614 = vmatprep.subr.mxu0 %v1613
          %v1615 = vand.u32 %v1525, 4294901760
          %1616 = vmatpush1.msra.mxu0 %v1615
          %v1617 = vand.u32 %v1528, 4294901760
          %1618 = vmatprep.subr.mxu0 %v1617
          %v1619 = vand.u32 %v1527, 4294901760
          %1620 = vmatpush1.msra.mxu0 %v1619
          %v1621 = vand.u32 %v1530, 4294901760
          %1622 = vmatprep.subr.mxu0 %v1621
          %v1623 = vand.u32 %v1529, 4294901760
          %1624 = vmatpush1.msra.mxu0 %v1623
          %v1625 = vand.u32 %v1532, 4294901760
          %1626 = vmatprep.subr.mxu0 %v1625
          %v1627 = vand.u32 %v1531, 4294901760
          %1628 = vmatpush1.msra.mxu0 %v1627
          %1629 = vmatprep.subr.mxu0 0.0
          %1630 = vmatpush1.msra.mxu0 0.0
          %1631 = vmatprep.subr.mxu0 0.0
          %1632 = vmatpush1.msra.mxu0 0.0
          %1633 = vmatprep.subr.mxu0 0.0
          %1634 = vmatpush1.msra.mxu0 0.0
          %1635 = vmatprep.subr.mxu0 0.0
          %1636 = vmatpush1.msra.mxu0 0.0
          %1637 = vmatprep.subr.mxu0 0.0
          %1638 = vmatpush1.msra.mxu0 0.0
          %1639 = vmatprep.subr.mxu0 0.0
          %1640 = vmatpush1.msra.mxu0 0.0
          %1641 = vmatprep.subr.mxu0 0.0
          %1642 = vmatpush1.msra.mxu0 0.0
          %1643 = vmatprep.subr.mxu0 0.0
          %1644 = vmatpush1.msra.mxu0 0.0
          %1645 = vmatprep.subr.mxu0 0.0
          %1646 = vmatpush1.msra.mxu0 0.0
          %1647 = vmatprep.subr.mxu0 0.0
          %1648 = vmatpush1.msra.mxu0 0.0
          %1649 = vmatprep.subr.mxu0 0.0
          %1650 = vmatpush1.msra.mxu0 0.0
          %1651 = vmatprep.subr.mxu0 0.0
          %1652 = vmatpush1.msra.mxu0 0.0
          %1653 = vmatprep.subr.mxu0 0.0
          %1654 = vmatpush1.msra.mxu0 0.0
          %1655 = vmatprep.subr.mxu0 0.0
          %1656 = vmatpush1.msra.mxu0 0.0
          %1657 = vmatprep.subr.mxu0 0.0
          %1658 = vmatpush1.msra.mxu0 0.0
          %1659 = vmatprep.subr.mxu0 0.0
          %1660 = vmatpush1.msra.mxu0 0.0
          %1661 = vmatprep.mubr.f32.mxu0 0.0
          %v1662 = vand.u32 %v1549, 4294901760
          %v1663 = vsub.f32 %v1549, %v1662
          %v1664 = vand.u32 %v1663, 4294901760
          %v1665 = vsub.f32 %v1663, %v1664
          %v1666 = vand.u32 %v1665, 4294901760
          %1667 = vmatmul.mubr.f32.gmra.mrb[0].mxu0 %v1666
          %v1668 = vpop.f32.mrb[0].mxu0
          %v1669 = vadd.f32 0.0, %v1668
          %v1670 = vpop.f32.mrb[0].mxu0
          %v1671 = vadd.f32 0.0, %v1670
          %1672 = vdwg.mxu0
          %v1673 = vand.u32 %v1502, 4294901760
          %v1674 = vsub.f32 %v1502, %v1673
          %v1675 = vand.u32 %v1674, 4294901760
          %v1676 = vsub.f32 %v1674, %v1675
          %v1677 = vand.u32 %v1676, 4294901760
          %1678 = vmatprep.subr.mxu0 %v1677
          %v1679 = vand.u32 %v1501, 4294901760
          %v1680 = vsub.f32 %v1501, %v1679
          %v1681 = vand.u32 %v1680, 4294901760
          %v1682 = vsub.f32 %v1680, %v1681
          %v1683 = vand.u32 %v1682, 4294901760
          %1684 = vmatpush1.msra.mxu0 %v1683
          %v1685 = vand.u32 %v1504, 4294901760
          %v1686 = vsub.f32 %v1504, %v1685
          %v1687 = vand.u32 %v1686, 4294901760
          %v1688 = vsub.f32 %v1686, %v1687
          %v1689 = vand.u32 %v1688, 4294901760
          %1690 = vmatprep.subr.mxu0 %v1689
          %v1691 = vand.u32 %v1503, 4294901760
          %v1692 = vsub.f32 %v1503, %v1691
          %v1693 = vand.u32 %v1692, 4294901760
          %v1694 = vsub.f32 %v1692, %v1693
          %v1695 = vand.u32 %v1694, 4294901760
          %1696 = vmatpush1.msra.mxu0 %v1695
          %v1697 = vand.u32 %v1506, 4294901760
          %v1698 = vsub.f32 %v1506, %v1697
          %v1699 = vand.u32 %v1698, 4294901760
          %v1700 = vsub.f32 %v1698, %v1699
          %v1701 = vand.u32 %v1700, 4294901760
          %1702 = vmatprep.subr.mxu0 %v1701
          %v1703 = vand.u32 %v1505, 4294901760
          %v1704 = vsub.f32 %v1505, %v1703
          %v1705 = vand.u32 %v1704, 4294901760
          %v1706 = vsub.f32 %v1704, %v1705
          %v1707 = vand.u32 %v1706, 4294901760
          %1708 = vmatpush1.msra.mxu0 %v1707
          %v1709 = vand.u32 %v1508, 4294901760
          %v1710 = vsub.f32 %v1508, %v1709
          %v1711 = vand.u32 %v1710, 4294901760
          %v1712 = vsub.f32 %v1710, %v1711
          %v1713 = vand.u32 %v1712, 4294901760
          %1714 = vmatprep.subr.mxu0 %v1713
          %v1715 = vand.u32 %v1507, 4294901760
          %v1716 = vsub.f32 %v1507, %v1715
          %v1717 = vand.u32 %v1716, 4294901760
          %v1718 = vsub.f32 %v1716, %v1717
          %v1719 = vand.u32 %v1718, 4294901760
          %1720 = vmatpush1.msra.mxu0 %v1719
          %v1721 = vand.u32 %v1510, 4294901760
          %v1722 = vsub.f32 %v1510, %v1721
          %v1723 = vand.u32 %v1722, 4294901760
          %v1724 = vsub.f32 %v1722, %v1723
          %v1725 = vand.u32 %v1724, 4294901760
          %1726 = vmatprep.subr.mxu0 %v1725
          %v1727 = vand.u32 %v1509, 4294901760
          %v1728 = vsub.f32 %v1509, %v1727
          %v1729 = vand.u32 %v1728, 4294901760
          %v1730 = vsub.f32 %v1728, %v1729
          %v1731 = vand.u32 %v1730, 4294901760
          %1732 = vmatpush1.msra.mxu0 %v1731
          %v1733 = vand.u32 %v1512, 4294901760
          %v1734 = vsub.f32 %v1512, %v1733
          %v1735 = vand.u32 %v1734, 4294901760
          %v1736 = vsub.f32 %v1734, %v1735
          %v1737 = vand.u32 %v1736, 4294901760
          %1738 = vmatprep.subr.mxu0 %v1737
          %v1739 = vand.u32 %v1511, 4294901760
          %v1740 = vsub.f32 %v1511, %v1739
          %v1741 = vand.u32 %v1740, 4294901760
          %v1742 = vsub.f32 %v1740, %v1741
          %v1743 = vand.u32 %v1742, 4294901760
          %1744 = vmatpush1.msra.mxu0 %v1743
          %v1745 = vand.u32 %v1514, 4294901760
          %v1746 = vsub.f32 %v1514, %v1745
          %v1747 = vand.u32 %v1746, 4294901760
          %v1748 = vsub.f32 %v1746, %v1747
          %v1749 = vand.u32 %v1748, 4294901760
          %1750 = vmatprep.subr.mxu0 %v1749
          %v1751 = vand.u32 %v1513, 4294901760
          %v1752 = vsub.f32 %v1513, %v1751
          %v1753 = vand.u32 %v1752, 4294901760
          %v1754 = vsub.f32 %v1752, %v1753
          %v1755 = vand.u32 %v1754, 4294901760
          %1756 = vmatpush1.msra.mxu0 %v1755
          %v1757 = vand.u32 %v1516, 4294901760
          %v1758 = vsub.f32 %v1516, %v1757
          %v1759 = vand.u32 %v1758, 4294901760
          %v1760 = vsub.f32 %v1758, %v1759
          %v1761 = vand.u32 %v1760, 4294901760
          %1762 = vmatprep.subr.mxu0 %v1761
          %v1763 = vand.u32 %v1515, 4294901760
          %v1764 = vsub.f32 %v1515, %v1763
          %v1765 = vand.u32 %v1764, 4294901760
          %v1766 = vsub.f32 %v1764, %v1765
          %v1767 = vand.u32 %v1766, 4294901760
          %1768 = vmatpush1.msra.mxu0 %v1767
          %v1769 = vand.u32 %v1518, 4294901760
          %v1770 = vsub.f32 %v1518, %v1769
          %v1771 = vand.u32 %v1770, 4294901760
          %v1772 = vsub.f32 %v1770, %v1771
          %v1773 = vand.u32 %v1772, 4294901760
          %1774 = vmatprep.subr.mxu0 %v1773
          %v1775 = vand.u32 %v1517, 4294901760
          %v1776 = vsub.f32 %v1517, %v1775
          %v1777 = vand.u32 %v1776, 4294901760
          %v1778 = vsub.f32 %v1776, %v1777
          %v1779 = vand.u32 %v1778, 4294901760
          %1780 = vmatpush1.msra.mxu0 %v1779
          %v1781 = vand.u32 %v1520, 4294901760
          %v1782 = vsub.f32 %v1520, %v1781
          %v1783 = vand.u32 %v1782, 4294901760
          %v1784 = vsub.f32 %v1782, %v1783
          %v1785 = vand.u32 %v1784, 4294901760
          %1786 = vmatprep.subr.mxu0 %v1785
          %v1787 = vand.u32 %v1519, 4294901760
          %v1788 = vsub.f32 %v1519, %v1787
          %v1789 = vand.u32 %v1788, 4294901760
          %v1790 = vsub.f32 %v1788, %v1789
          %v1791 = vand.u32 %v1790, 4294901760
          %1792 = vmatpush1.msra.mxu0 %v1791
          %v1793 = vand.u32 %v1522, 4294901760
          %v1794 = vsub.f32 %v1522, %v1793
          %v1795 = vand.u32 %v1794, 4294901760
          %v1796 = vsub.f32 %v1794, %v1795
          %v1797 = vand.u32 %v1796, 4294901760
          %1798 = vmatprep.subr.mxu0 %v1797
          %v1799 = vand.u32 %v1521, 4294901760
          %v1800 = vsub.f32 %v1521, %v1799
          %v1801 = vand.u32 %v1800, 4294901760
          %v1802 = vsub.f32 %v1800, %v1801
          %v1803 = vand.u32 %v1802, 4294901760
          %1804 = vmatpush1.msra.mxu0 %v1803
          %v1805 = vand.u32 %v1524, 4294901760
          %v1806 = vsub.f32 %v1524, %v1805
          %v1807 = vand.u32 %v1806, 4294901760
          %v1808 = vsub.f32 %v1806, %v1807
          %v1809 = vand.u32 %v1808, 4294901760
          %1810 = vmatprep.subr.mxu0 %v1809
          %v1811 = vand.u32 %v1523, 4294901760
          %v1812 = vsub.f32 %v1523, %v1811
          %v1813 = vand.u32 %v1812, 4294901760
          %v1814 = vsub.f32 %v1812, %v1813
          %v1815 = vand.u32 %v1814, 4294901760
          %1816 = vmatpush1.msra.mxu0 %v1815
          %v1817 = vand.u32 %v1526, 4294901760
          %v1818 = vsub.f32 %v1526, %v1817
          %v1819 = vand.u32 %v1818, 4294901760
          %v1820 = vsub.f32 %v1818, %v1819
          %v1821 = vand.u32 %v1820, 4294901760
          %1822 = vmatprep.subr.mxu0 %v1821
          %v1823 = vand.u32 %v1525, 4294901760
          %v1824 = vsub.f32 %v1525, %v1823
          %v1825 = vand.u32 %v1824, 4294901760
          %v1826 = vsub.f32 %v1824, %v1825
          %v1827 = vand.u32 %v1826, 4294901760
          %1828 = vmatpush1.msra.mxu0 %v1827
          %v1829 = vand.u32 %v1528, 4294901760
          %v1830 = vsub.f32 %v1528, %v1829
          %v1831 = vand.u32 %v1830, 4294901760
          %v1832 = vsub.f32 %v1830, %v1831
          %v1833 = vand.u32 %v1832, 4294901760
          %1834 = vmatprep.subr.mxu0 %v1833
          %v1835 = vand.u32 %v1527, 4294901760
          %v1836 = vsub.f32 %v1527, %v1835
          %v1837 = vand.u32 %v1836, 4294901760
          %v1838 = vsub.f32 %v1836, %v1837
          %v1839 = vand.u32 %v1838, 4294901760
          %1840 = vmatpush1.msra.mxu0 %v1839
          %v1841 = vand.u32 %v1530, 4294901760
          %v1842 = vsub.f32 %v1530, %v1841
          %v1843 = vand.u32 %v1842, 4294901760
          %v1844 = vsub.f32 %v1842, %v1843
          %v1845 = vand.u32 %v1844, 4294901760
          %1846 = vmatprep.subr.mxu0 %v1845
          %v1847 = vand.u32 %v1529, 4294901760
          %v1848 = vsub.f32 %v1529, %v1847
          %v1849 = vand.u32 %v1848, 4294901760
          %v1850 = vsub.f32 %v1848, %v1849
          %v1851 = vand.u32 %v1850, 4294901760
          %1852 = vmatpush1.msra.mxu0 %v1851
          %v1853 = vand.u32 %v1532, 4294901760
          %v1854 = vsub.f32 %v1532, %v1853
          %v1855 = vand.u32 %v1854, 4294901760
          %v1856 = vsub.f32 %v1854, %v1855
          %v1857 = vand.u32 %v1856, 4294901760
          %1858 = vmatprep.subr.mxu0 %v1857
          %v1859 = vand.u32 %v1531, 4294901760
          %v1860 = vsub.f32 %v1531, %v1859
          %v1861 = vand.u32 %v1860, 4294901760
          %v1862 = vsub.f32 %v1860, %v1861
          %v1863 = vand.u32 %v1862, 4294901760
          %1864 = vmatpush1.msra.mxu0 %v1863
          %1865 = vmatprep.subr.mxu0 0.0
          %1866 = vmatpush1.msra.mxu0 0.0
          %1867 = vmatprep.subr.mxu0 0.0
          %1868 = vmatpush1.msra.mxu0 0.0
          %1869 = vmatprep.subr.mxu0 0.0
          %1870 = vmatpush1.msra.mxu0 0.0
          %1871 = vmatprep.subr.mxu0 0.0
          %1872 = vmatpush1.msra.mxu0 0.0
          %1873 = vmatprep.subr.mxu0 0.0
          %1874 = vmatpush1.msra.mxu0 0.0
          %1875 = vmatprep.subr.mxu0 0.0
          %1876 = vmatpush1.msra.mxu0 0.0
          %1877 = vmatprep.subr.mxu0 0.0
          %1878 = vmatpush1.msra.mxu0 0.0
          %1879 = vmatprep.subr.mxu0 0.0
          %1880 = vmatpush1.msra.mxu0 0.0
          %1881 = vmatprep.subr.mxu0 0.0
          %1882 = vmatpush1.msra.mxu0 0.0
          %1883 = vmatprep.subr.mxu0 0.0
          %1884 = vmatpush1.msra.mxu0 0.0
          %1885 = vmatprep.subr.mxu0 0.0
          %1886 = vmatpush1.msra.mxu0 0.0
          %1887 = vmatprep.subr.mxu0 0.0
          %1888 = vmatpush1.msra.mxu0 0.0
          %1889 = vmatprep.subr.mxu0 0.0
          %1890 = vmatpush1.msra.mxu0 0.0
          %1891 = vmatprep.subr.mxu0 0.0
          %1892 = vmatpush1.msra.mxu0 0.0
          %1893 = vmatprep.subr.mxu0 0.0
          %1894 = vmatpush1.msra.mxu0 0.0
          %1895 = vmatprep.subr.mxu0 0.0
          %1896 = vmatpush1.msra.mxu0 0.0
          %1897 = vmatprep.mubr.f32.mxu0 0.0
          %v1898 = vand.u32 %v1549, 4294901760
          %1899 = vmatmul.mubr.f32.gmra.mrb[0].mxu0 %v1898
          %v1900 = vpop.f32.mrb[0].mxu0
          %v1901 = vadd.f32 %v1669, %v1900
          %v1902 = vpop.f32.mrb[0].mxu0
          %v1903 = vadd.f32 %v1671, %v1902
          %1904 = vdwg.mxu0
          %v1905 = vand.u32 %v1502, 4294901760
          %v1906 = vsub.f32 %v1502, %v1905
          %1907 = vmatprep.subr.mxu0 %v1906
          %v1908 = vand.u32 %v1501, 4294901760
          %v1909 = vsub.f32 %v1501, %v1908
          %1910 = vmatpush1.msra.mxu0 %v1909
          %v1911 = vand.u32 %v1504, 4294901760
          %v1912 = vsub.f32 %v1504, %v1911
          %1913 = vmatprep.subr.mxu0 %v1912
          %v1914 = vand.u32 %v1503, 4294901760
          %v1915 = vsub.f32 %v1503, %v1914
          %1916 = vmatpush1.msra.mxu0 %v1915
          %v1917 = vand.u32 %v1506, 4294901760
          %v1918 = vsub.f32 %v1506, %v1917
          %1919 = vmatprep.subr.mxu0 %v1918
          %v1920 = vand.u32 %v1505, 4294901760
          %v1921 = vsub.f32 %v1505, %v1920
          %1922 = vmatpush1.msra.mxu0 %v1921
          %v1923 = vand.u32 %v1508, 4294901760
          %v1924 = vsub.f32 %v1508, %v1923
          %1925 = vmatprep.subr.mxu0 %v1924
          %v1926 = vand.u32 %v1507, 4294901760
          %v1927 = vsub.f32 %v1507, %v1926
          %1928 = vmatpush1.msra.mxu0 %v1927
          %v1929 = vand.u32 %v1510, 4294901760
          %v1930 = vsub.f32 %v1510, %v1929
          %1931 = vmatprep.subr.mxu0 %v1930
          %v1932 = vand.u32 %v1509, 4294901760
          %v1933 = vsub.f32 %v1509, %v1932
          %1934 = vmatpush1.msra.mxu0 %v1933
          %v1935 = vand.u32 %v1512, 4294901760
          %v1936 = vsub.f32 %v1512, %v1935
          %1937 = vmatprep.subr.mxu0 %v1936
          %v1938 = vand.u32 %v1511, 4294901760
          %v1939 = vsub.f32 %v1511, %v1938
          %1940 = vmatpush1.msra.mxu0 %v1939
          %v1941 = vand.u32 %v1514, 4294901760
          %v1942 = vsub.f32 %v1514, %v1941
          %1943 = vmatprep.subr.mxu0 %v1942
          %v1944 = vand.u32 %v1513, 4294901760
          %v1945 = vsub.f32 %v1513, %v1944
          %1946 = vmatpush1.msra.mxu0 %v1945
          %v1947 = vand.u32 %v1516, 4294901760
          %v1948 = vsub.f32 %v1516, %v1947
          %1949 = vmatprep.subr.mxu0 %v1948
          %v1950 = vand.u32 %v1515, 4294901760
          %v1951 = vsub.f32 %v1515, %v1950
          %1952 = vmatpush1.msra.mxu0 %v1951
          %v1953 = vand.u32 %v1518, 4294901760
          %v1954 = vsub.f32 %v1518, %v1953
          %1955 = vmatprep.subr.mxu0 %v1954
          %v1956 = vand.u32 %v1517, 4294901760
          %v1957 = vsub.f32 %v1517, %v1956
          %1958 = vmatpush1.msra.mxu0 %v1957
          %v1959 = vand.u32 %v1520, 4294901760
          %v1960 = vsub.f32 %v1520, %v1959
          %1961 = vmatprep.subr.mxu0 %v1960
          %v1962 = vand.u32 %v1519, 4294901760
          %v1963 = vsub.f32 %v1519, %v1962
          %1964 = vmatpush1.msra.mxu0 %v1963
          %v1965 = vand.u32 %v1522, 4294901760
          %v1966 = vsub.f32 %v1522, %v1965
          %1967 = vmatprep.subr.mxu0 %v1966
          %v1968 = vand.u32 %v1521, 4294901760
          %v1969 = vsub.f32 %v1521, %v1968
          %1970 = vmatpush1.msra.mxu0 %v1969
          %v1971 = vand.u32 %v1524, 4294901760
          %v1972 = vsub.f32 %v1524, %v1971
          %1973 = vmatprep.subr.mxu0 %v1972
          %v1974 = vand.u32 %v1523, 4294901760
          %v1975 = vsub.f32 %v1523, %v1974
          %1976 = vmatpush1.msra.mxu0 %v1975
          %v1977 = vand.u32 %v1526, 4294901760
          %v1978 = vsub.f32 %v1526, %v1977
          %1979 = vmatprep.subr.mxu0 %v1978
          %v1980 = vand.u32 %v1525, 4294901760
          %v1981 = vsub.f32 %v1525, %v1980
          %1982 = vmatpush1.msra.mxu0 %v1981
          %v1983 = vand.u32 %v1528, 4294901760
          %v1984 = vsub.f32 %v1528, %v1983
          %1985 = vmatprep.subr.mxu0 %v1984
          %v1986 = vand.u32 %v1527, 4294901760
          %v1987 = vsub.f32 %v1527, %v1986
          %1988 = vmatpush1.msra.mxu0 %v1987
          %v1989 = vand.u32 %v1530, 4294901760
          %v1990 = vsub.f32 %v1530, %v1989
          %1991 = vmatprep.subr.mxu0 %v1990
          %v1992 = vand.u32 %v1529, 4294901760
          %v1993 = vsub.f32 %v1529, %v1992
          %1994 = vmatpush1.msra.mxu0 %v1993
          %v1995 = vand.u32 %v1532, 4294901760
          %v1996 = vsub.f32 %v1532, %v1995
          %1997 = vmatprep.subr.mxu0 %v1996
          %v1998 = vand.u32 %v1531, 4294901760
          %v1999 = vsub.f32 %v1531, %v1998
          %2000 = vmatpush1.msra.mxu0 %v1999
          %2001 = vmatprep.subr.mxu0 0.0
          %2002 = vmatpush1.msra.mxu0 0.0
          %2003 = vmatprep.subr.mxu0 0.0
          %2004 = vmatpush1.msra.mxu0 0.0
          %2005 = vmatprep.subr.mxu0 0.0
          %2006 = vmatpush1.msra.mxu0 0.0
          %2007 = vmatprep.subr.mxu0 0.0
          %2008 = vmatpush1.msra.mxu0 0.0
          %2009 = vmatprep.subr.mxu0 0.0
          %2010 = vmatpush1.msra.mxu0 0.0
          %2011 = vmatprep.subr.mxu0 0.0
          %2012 = vmatpush1.msra.mxu0 0.0
          %2013 = vmatprep.subr.mxu0 0.0
          %2014 = vmatpush1.msra.mxu0 0.0
          %2015 = vmatprep.subr.mxu0 0.0
          %2016 = vmatpush1.msra.mxu0 0.0
          %2017 = vmatprep.subr.mxu0 0.0
          %2018 = vmatpush1.msra.mxu0 0.0
          %2019 = vmatprep.subr.mxu0 0.0
          %2020 = vmatpush1.msra.mxu0 0.0
          %2021 = vmatprep.subr.mxu0 0.0
          %2022 = vmatpush1.msra.mxu0 0.0
          %2023 = vmatprep.subr.mxu0 0.0
          %2024 = vmatpush1.msra.mxu0 0.0
          %2025 = vmatprep.subr.mxu0 0.0
          %2026 = vmatpush1.msra.mxu0 0.0
          %2027 = vmatprep.subr.mxu0 0.0
          %2028 = vmatpush1.msra.mxu0 0.0
          %2029 = vmatprep.subr.mxu0 0.0
          %2030 = vmatpush1.msra.mxu0 0.0
          %2031 = vmatprep.subr.mxu0 0.0
          %2032 = vmatpush1.msra.mxu0 0.0
          %2033 = vmatprep.mubr.f32.mxu0 0.0
          %v2034 = vand.u32 %v1549, 4294901760
          %v2035 = vsub.f32 %v1549, %v2034
          %2036 = vmatmul.mubr.f32.gmra.mrb[0].mxu0 %v2035
          %v2037 = vpop.f32.mrb[0].mxu0
          %v2038 = vadd.f32 %v1901, %v2037
          %v2039 = vpop.f32.mrb[0].mxu0
          %v2040 = vadd.f32 %v1903, %v2039
          %2041 = vdwg.mxu0
          %v2042 = vand.u32 %v1502, 4294901760
          %2043 = vmatprep.subr.mxu0 %v2042
          %v2044 = vand.u32 %v1501, 4294901760
          %2045 = vmatpush1.msra.mxu0 %v2044
          %v2046 = vand.u32 %v1504, 4294901760
          %2047 = vmatprep.subr.mxu0 %v2046
          %v2048 = vand.u32 %v1503, 4294901760
          %2049 = vmatpush1.msra.mxu0 %v2048
          %v2050 = vand.u32 %v1506, 4294901760
          %2051 = vmatprep.subr.mxu0 %v2050
          %v2052 = vand.u32 %v1505, 4294901760
          %2053 = vmatpush1.msra.mxu0 %v2052
          %v2054 = vand.u32 %v1508, 4294901760
          %2055 = vmatprep.subr.mxu0 %v2054
          %v2056 = vand.u32 %v1507, 4294901760
          %2057 = vmatpush1.msra.mxu0 %v2056
          %v2058 = vand.u32 %v1510, 4294901760
          %2059 = vmatprep.subr.mxu0 %v2058
          %v2060 = vand.u32 %v1509, 4294901760
          %2061 = vmatpush1.msra.mxu0 %v2060
          %v2062 = vand.u32 %v1512, 4294901760
          %2063 = vmatprep.subr.mxu0 %v2062
          %v2064 = vand.u32 %v1511, 4294901760
          %2065 = vmatpush1.msra.mxu0 %v2064
          %v2066 = vand.u32 %v1514, 4294901760
          %2067 = vmatprep.subr.mxu0 %v2066
          %v2068 = vand.u32 %v1513, 4294901760
          %2069 = vmatpush1.msra.mxu0 %v2068
          %v2070 = vand.u32 %v1516, 4294901760
          %2071 = vmatprep.subr.mxu0 %v2070
          %v2072 = vand.u32 %v1515, 4294901760
          %2073 = vmatpush1.msra.mxu0 %v2072
          %v2074 = vand.u32 %v1518, 4294901760
          %2075 = vmatprep.subr.mxu0 %v2074
          %v2076 = vand.u32 %v1517, 4294901760
          %2077 = vmatpush1.msra.mxu0 %v2076
          %v2078 = vand.u32 %v1520, 4294901760
          %2079 = vmatprep.subr.mxu0 %v2078
          %v2080 = vand.u32 %v1519, 4294901760
          %2081 = vmatpush1.msra.mxu0 %v2080
          %v2082 = vand.u32 %v1522, 4294901760
          %2083 = vmatprep.subr.mxu0 %v2082
          %v2084 = vand.u32 %v1521, 4294901760
          %2085 = vmatpush1.msra.mxu0 %v2084
          %v2086 = vand.u32 %v1524, 4294901760
          %2087 = vmatprep.subr.mxu0 %v2086
          %v2088 = vand.u32 %v1523, 4294901760
          %2089 = vmatpush1.msra.mxu0 %v2088
          %v2090 = vand.u32 %v1526, 4294901760
          %2091 = vmatprep.subr.mxu0 %v2090
          %v2092 = vand.u32 %v1525, 4294901760
          %2093 = vmatpush1.msra.mxu0 %v2092
          %v2094 = vand.u32 %v1528, 4294901760
          %2095 = vmatprep.subr.mxu0 %v2094
          %v2096 = vand.u32 %v1527, 4294901760
          %2097 = vmatpush1.msra.mxu0 %v2096
          %v2098 = vand.u32 %v1530, 4294901760
          %2099 = vmatprep.subr.mxu0 %v2098
          %v2100 = vand.u32 %v1529, 4294901760
          %2101 = vmatpush1.msra.mxu0 %v2100
          %v2102 = vand.u32 %v1532, 4294901760
          %2103 = vmatprep.subr.mxu0 %v2102
          %v2104 = vand.u32 %v1531, 4294901760
          %2105 = vmatpush1.msra.mxu0 %v2104
          %2106 = vmatprep.subr.mxu0 0.0
          %2107 = vmatpush1.msra.mxu0 0.0
          %2108 = vmatprep.subr.mxu0 0.0
          %2109 = vmatpush1.msra.mxu0 0.0
          %2110 = vmatprep.subr.mxu0 0.0
          %2111 = vmatpush1.msra.mxu0 0.0
          %2112 = vmatprep.subr.mxu0 0.0
          %2113 = vmatpush1.msra.mxu0 0.0
          %2114 = vmatprep.subr.mxu0 0.0
          %2115 = vmatpush1.msra.mxu0 0.0
          %2116 = vmatprep.subr.mxu0 0.0
          %2117 = vmatpush1.msra.mxu0 0.0
          %2118 = vmatprep.subr.mxu0 0.0
          %2119 = vmatpush1.msra.mxu0 0.0
          %2120 = vmatprep.subr.mxu0 0.0
          %2121 = vmatpush1.msra.mxu0 0.0
          %2122 = vmatprep.subr.mxu0 0.0
          %2123 = vmatpush1.msra.mxu0 0.0
          %2124 = vmatprep.subr.mxu0 0.0
          %2125 = vmatpush1.msra.mxu0 0.0
          %2126 = vmatprep.subr.mxu0 0.0
          %2127 = vmatpush1.msra.mxu0 0.0
          %2128 = vmatprep.subr.mxu0 0.0
          %2129 = vmatpush1.msra.mxu0 0.0
          %2130 = vmatprep.subr.mxu0 0.0
          %2131 = vmatpush1.msra.mxu0 0.0
          %2132 = vmatprep.subr.mxu0 0.0
          %2133 = vmatpush1.msra.mxu0 0.0
          %2134 = vmatprep.subr.mxu0 0.0
          %2135 = vmatpush1.msra.mxu0 0.0
          %2136 = vmatprep.subr.mxu0 0.0
          %2137 = vmatpush1.msra.mxu0 0.0
          %2138 = vmatprep.mubr.f32.mxu0 0.0
          %v2139 = vand.u32 %v1549, 4294901760
          %v2140 = vsub.f32 %v1549, %v2139
          %v2141 = vand.u32 %v2140, 4294901760
          %2142 = vmatmul.mubr.f32.gmra.mrb[0].mxu0 %v2141
          %v2143 = vpop.f32.mrb[0].mxu0
          %v2144 = vadd.f32 %v2038, %v2143
          %v2145 = vpop.f32.mrb[0].mxu0
          %v2146 = vadd.f32 %v2040, %v2145
          %2147 = vdwg.mxu0
          %v2148 = vand.u32 %v1502, 4294901760
          %v2149 = vsub.f32 %v1502, %v2148
          %v2150 = vand.u32 %v2149, 4294901760
          %2151 = vmatprep.subr.mxu0 %v2150
          %v2152 = vand.u32 %v1501, 4294901760
          %v2153 = vsub.f32 %v1501, %v2152
          %v2154 = vand.u32 %v2153, 4294901760
          %2155 = vmatpush1.msra.mxu0 %v2154
          %v2156 = vand.u32 %v1504, 4294901760
          %v2157 = vsub.f32 %v1504, %v2156
          %v2158 = vand.u32 %v2157, 4294901760
          %2159 = vmatprep.subr.mxu0 %v2158
          %v2160 = vand.u32 %v1503, 4294901760
          %v2161 = vsub.f32 %v1503, %v2160
          %v2162 = vand.u32 %v2161, 4294901760
          %2163 = vmatpush1.msra.mxu0 %v2162
          %v2164 = vand.u32 %v1506, 4294901760
          %v2165 = vsub.f32 %v1506, %v2164
          %v2166 = vand.u32 %v2165, 4294901760
          %2167 = vmatprep.subr.mxu0 %v2166
          %v2168 = vand.u32 %v1505, 4294901760
          %v2169 = vsub.f32 %v1505, %v2168
          %v2170 = vand.u32 %v2169, 4294901760
          %2171 = vmatpush1.msra.mxu0 %v2170
          %v2172 = vand.u32 %v1508, 4294901760
          %v2173 = vsub.f32 %v1508, %v2172
          %v2174 = vand.u32 %v2173, 4294901760
          %2175 = vmatprep.subr.mxu0 %v2174
          %v2176 = vand.u32 %v1507, 4294901760
          %v2177 = vsub.f32 %v1507, %v2176
          %v2178 = vand.u32 %v2177, 4294901760
          %2179 = vmatpush1.msra.mxu0 %v2178
          %v2180 = vand.u32 %v1510, 4294901760
          %v2181 = vsub.f32 %v1510, %v2180
          %v2182 = vand.u32 %v2181, 4294901760
          %2183 = vmatprep.subr.mxu0 %v2182
          %v2184 = vand.u32 %v1509, 4294901760
          %v2185 = vsub.f32 %v1509, %v2184
          %v2186 = vand.u32 %v2185, 4294901760
          %2187 = vmatpush1.msra.mxu0 %v2186
          %v2188 = vand.u32 %v1512, 4294901760
          %v2189 = vsub.f32 %v1512, %v2188
          %v2190 = vand.u32 %v2189, 4294901760
          %2191 = vmatprep.subr.mxu0 %v2190
          %v2192 = vand.u32 %v1511, 4294901760
          %v2193 = vsub.f32 %v1511, %v2192
          %v2194 = vand.u32 %v2193, 4294901760
          %2195 = vmatpush1.msra.mxu0 %v2194
          %v2196 = vand.u32 %v1514, 4294901760
          %v2197 = vsub.f32 %v1514, %v2196
          %v2198 = vand.u32 %v2197, 4294901760
          %2199 = vmatprep.subr.mxu0 %v2198
          %v2200 = vand.u32 %v1513, 4294901760
          %v2201 = vsub.f32 %v1513, %v2200
          %v2202 = vand.u32 %v2201, 4294901760
          %2203 = vmatpush1.msra.mxu0 %v2202
          %v2204 = vand.u32 %v1516, 4294901760
          %v2205 = vsub.f32 %v1516, %v2204
          %v2206 = vand.u32 %v2205, 4294901760
          %2207 = vmatprep.subr.mxu0 %v2206
          %v2208 = vand.u32 %v1515, 4294901760
          %v2209 = vsub.f32 %v1515, %v2208
          %v2210 = vand.u32 %v2209, 4294901760
          %2211 = vmatpush1.msra.mxu0 %v2210
          %v2212 = vand.u32 %v1518, 4294901760
          %v2213 = vsub.f32 %v1518, %v2212
          %v2214 = vand.u32 %v2213, 4294901760
          %2215 = vmatprep.subr.mxu0 %v2214
          %v2216 = vand.u32 %v1517, 4294901760
          %v2217 = vsub.f32 %v1517, %v2216
          %v2218 = vand.u32 %v2217, 4294901760
          %2219 = vmatpush1.msra.mxu0 %v2218
          %v2220 = vand.u32 %v1520, 4294901760
          %v2221 = vsub.f32 %v1520, %v2220
          %v2222 = vand.u32 %v2221, 4294901760
          %2223 = vmatprep.subr.mxu0 %v2222
          %v2224 = vand.u32 %v1519, 4294901760
          %v2225 = vsub.f32 %v1519, %v2224
          %v2226 = vand.u32 %v2225, 4294901760
          %2227 = vmatpush1.msra.mxu0 %v2226
          %v2228 = vand.u32 %v1522, 4294901760
          %v2229 = vsub.f32 %v1522, %v2228
          %v2230 = vand.u32 %v2229, 4294901760
          %2231 = vmatprep.subr.mxu0 %v2230
          %v2232 = vand.u32 %v1521, 4294901760
          %v2233 = vsub.f32 %v1521, %v2232
          %v2234 = vand.u32 %v2233, 4294901760
          %2235 = vmatpush1.msra.mxu0 %v2234
          %v2236 = vand.u32 %v1524, 4294901760
          %v2237 = vsub.f32 %v1524, %v2236
          %v2238 = vand.u32 %v2237, 4294901760
          %2239 = vmatprep.subr.mxu0 %v2238
          %v2240 = vand.u32 %v1523, 4294901760
          %v2241 = vsub.f32 %v1523, %v2240
          %v2242 = vand.u32 %v2241, 4294901760
          %2243 = vmatpush1.msra.mxu0 %v2242
          %v2244 = vand.u32 %v1526, 4294901760
          %v2245 = vsub.f32 %v1526, %v2244
          %v2246 = vand.u32 %v2245, 4294901760
          %2247 = vmatprep.subr.mxu0 %v2246
          %v2248 = vand.u32 %v1525, 4294901760
          %v2249 = vsub.f32 %v1525, %v2248
          %v2250 = vand.u32 %v2249, 4294901760
          %2251 = vmatpush1.msra.mxu0 %v2250
          %v2252 = vand.u32 %v1528, 4294901760
          %v2253 = vsub.f32 %v1528, %v2252
          %v2254 = vand.u32 %v2253, 4294901760
          %2255 = vmatprep.subr.mxu0 %v2254
          %v2256 = vand.u32 %v1527, 4294901760
          %v2257 = vsub.f32 %v1527, %v2256
          %v2258 = vand.u32 %v2257, 4294901760
          %2259 = vmatpush1.msra.mxu0 %v2258
          %v2260 = vand.u32 %v1530, 4294901760
          %v2261 = vsub.f32 %v1530, %v2260
          %v2262 = vand.u32 %v2261, 4294901760
          %2263 = vmatprep.subr.mxu0 %v2262
          %v2264 = vand.u32 %v1529, 4294901760
          %v2265 = vsub.f32 %v1529, %v2264
          %v2266 = vand.u32 %v2265, 4294901760
          %2267 = vmatpush1.msra.mxu0 %v2266
          %v2268 = vand.u32 %v1532, 4294901760
          %v2269 = vsub.f32 %v1532, %v2268
          %v2270 = vand.u32 %v2269, 4294901760
          %2271 = vmatprep.subr.mxu0 %v2270
          %v2272 = vand.u32 %v1531, 4294901760
          %v2273 = vsub.f32 %v1531, %v2272
          %v2274 = vand.u32 %v2273, 4294901760
          %2275 = vmatpush1.msra.mxu0 %v2274
          %2276 = vmatprep.subr.mxu0 0.0
          %2277 = vmatpush1.msra.mxu0 0.0
          %2278 = vmatprep.subr.mxu0 0.0
          %2279 = vmatpush1.msra.mxu0 0.0
          %2280 = vmatprep.subr.mxu0 0.0
          %2281 = vmatpush1.msra.mxu0 0.0
          %2282 = vmatprep.subr.mxu0 0.0
          %2283 = vmatpush1.msra.mxu0 0.0
          %2284 = vmatprep.subr.mxu0 0.0
          %2285 = vmatpush1.msra.mxu0 0.0
          %2286 = vmatprep.subr.mxu0 0.0
          %2287 = vmatpush1.msra.mxu0 0.0
          %2288 = vmatprep.subr.mxu0 0.0
          %2289 = vmatpush1.msra.mxu0 0.0
          %2290 = vmatprep.subr.mxu0 0.0
          %2291 = vmatpush1.msra.mxu0 0.0
          %2292 = vmatprep.subr.mxu0 0.0
          %2293 = vmatpush1.msra.mxu0 0.0
          %2294 = vmatprep.subr.mxu0 0.0
          %2295 = vmatpush1.msra.mxu0 0.0
          %2296 = vmatprep.subr.mxu0 0.0
          %2297 = vmatpush1.msra.mxu0 0.0
          %2298 = vmatprep.subr.mxu0 0.0
          %2299 = vmatpush1.msra.mxu0 0.0
          %2300 = vmatprep.subr.mxu0 0.0
          %2301 = vmatpush1.msra.mxu0 0.0
          %2302 = vmatprep.subr.mxu0 0.0
          %2303 = vmatpush1.msra.mxu0 0.0
          %2304 = vmatprep.subr.mxu0 0.0
          %2305 = vmatpush1.msra.mxu0 0.0
          %2306 = vmatprep.subr.mxu0 0.0
          %2307 = vmatpush1.msra.mxu0 0.0
          %2308 = vmatprep.mubr.f32.mxu0 0.0
          %v2309 = vand.u32 %v1549, 4294901760
          %2310 = vmatmul.mubr.f32.gmra.mrb[0].mxu0 %v2309
          %v2311 = vpop.f32.mrb[0].mxu0
          %v2312 = vadd.f32 %v2144, %v2311
          %v2313 = vpop.f32.mrb[0].mxu0
          %v2314 = vadd.f32 %v2146, %v2313
          %2315 = vdwg.mxu0
          %v2316 = vand.u32 %v1502, 4294901760
          %2317 = vmatprep.subr.mxu0 %v2316
          %v2318 = vand.u32 %v1501, 4294901760
          %2319 = vmatpush1.msra.mxu0 %v2318
          %v2320 = vand.u32 %v1504, 4294901760
          %2321 = vmatprep.subr.mxu0 %v2320
          %v2322 = vand.u32 %v1503, 4294901760
          %2323 = vmatpush1.msra.mxu0 %v2322
          %v2324 = vand.u32 %v1506, 4294901760
          %2325 = vmatprep.subr.mxu0 %v2324
          %v2326 = vand.u32 %v1505, 4294901760
          %2327 = vmatpush1.msra.mxu0 %v2326
          %v2328 = vand.u32 %v1508, 4294901760
          %2329 = vmatprep.subr.mxu0 %v2328
          %v2330 = vand.u32 %v1507, 4294901760
          %2331 = vmatpush1.msra.mxu0 %v2330
          %v2332 = vand.u32 %v1510, 4294901760
          %2333 = vmatprep.subr.mxu0 %v2332
          %v2334 = vand.u32 %v1509, 4294901760
          %2335 = vmatpush1.msra.mxu0 %v2334
          %v2336 = vand.u32 %v1512, 4294901760
          %2337 = vmatprep.subr.mxu0 %v2336
          %v2338 = vand.u32 %v1511, 4294901760
          %2339 = vmatpush1.msra.mxu0 %v2338
          %v2340 = vand.u32 %v1514, 4294901760
          %2341 = vmatprep.subr.mxu0 %v2340
          %v2342 = vand.u32 %v1513, 4294901760
          %2343 = vmatpush1.msra.mxu0 %v2342
          %v2344 = vand.u32 %v1516, 4294901760
          %2345 = vmatprep.subr.mxu0 %v2344
          %v2346 = vand.u32 %v1515, 4294901760
          %2347 = vmatpush1.msra.mxu0 %v2346
          %v2348 = vand.u32 %v1518, 4294901760
          %2349 = vmatprep.subr.mxu0 %v2348
          %v2350 = vand.u32 %v1517, 4294901760
          %2351 = vmatpush1.msra.mxu0 %v2350
          %v2352 = vand.u32 %v1520, 4294901760
          %2353 = vmatprep.subr.mxu0 %v2352
          %v2354 = vand.u32 %v1519, 4294901760
          %2355 = vmatpush1.msra.mxu0 %v2354
          %v2356 = vand.u32 %v1522, 4294901760
          %2357 = vmatprep.subr.mxu0 %v2356
          %v2358 = vand.u32 %v1521, 4294901760
          %2359 = vmatpush1.msra.mxu0 %v2358
          %v2360 = vand.u32 %v1524, 4294901760
          %2361 = vmatprep.subr.mxu0 %v2360
          %v2362 = vand.u32 %v1523, 4294901760
          %2363 = vmatpush1.msra.mxu0 %v2362
          %v2364 = vand.u32 %v1526, 4294901760
          %2365 = vmatprep.subr.mxu0 %v2364
          %v2366 = vand.u32 %v1525, 4294901760
          %2367 = vmatpush1.msra.mxu0 %v2366
          %v2368 = vand.u32 %v1528, 4294901760
          %2369 = vmatprep.subr.mxu0 %v2368
          %v2370 = vand.u32 %v1527, 4294901760
          %2371 = vmatpush1.msra.mxu0 %v2370
          %v2372 = vand.u32 %v1530, 4294901760
          %2373 = vmatprep.subr.mxu0 %v2372
          %v2374 = vand.u32 %v1529, 4294901760
          %2375 = vmatpush1.msra.mxu0 %v2374
          %v2376 = vand.u32 %v1532, 4294901760
          %2377 = vmatprep.subr.mxu0 %v2376
          %v2378 = vand.u32 %v1531, 4294901760
          %2379 = vmatpush1.msra.mxu0 %v2378
          %2380 = vmatprep.subr.mxu0 0.0
          %2381 = vmatpush1.msra.mxu0 0.0
          %2382 = vmatprep.subr.mxu0 0.0
          %2383 = vmatpush1.msra.mxu0 0.0
          %2384 = vmatprep.subr.mxu0 0.0
          %2385 = vmatpush1.msra.mxu0 0.0
          %2386 = vmatprep.subr.mxu0 0.0
          %2387 = vmatpush1.msra.mxu0 0.0
          %2388 = vmatprep.subr.mxu0 0.0
          %2389 = vmatpush1.msra.mxu0 0.0
          %2390 = vmatprep.subr.mxu0 0.0
          %2391 = vmatpush1.msra.mxu0 0.0
          %2392 = vmatprep.subr.mxu0 0.0
          %2393 = vmatpush1.msra.mxu0 0.0
          %2394 = vmatprep.subr.mxu0 0.0
          %2395 = vmatpush1.msra.mxu0 0.0
          %2396 = vmatprep.subr.mxu0 0.0
          %2397 = vmatpush1.msra.mxu0 0.0
          %2398 = vmatprep.subr.mxu0 0.0
          %2399 = vmatpush1.msra.mxu0 0.0
          %2400 = vmatprep.subr.mxu0 0.0
          %2401 = vmatpush1.msra.mxu0 0.0
          %2402 = vmatprep.subr.mxu0 0.0
          %2403 = vmatpush1.msra.mxu0 0.0
          %2404 = vmatprep.subr.mxu0 0.0
          %2405 = vmatpush1.msra.mxu0 0.0
          %2406 = vmatprep.subr.mxu0 0.0
          %2407 = vmatpush1.msra.mxu0 0.0
          %2408 = vmatprep.subr.mxu0 0.0
          %2409 = vmatpush1.msra.mxu0 0.0
          %2410 = vmatprep.subr.mxu0 0.0
          %2411 = vmatpush1.msra.mxu0 0.0
          %2412 = vmatprep.mubr.f32.mxu0 0.0
          %v2413 = vand.u32 %v1549, 4294901760
          %2414 = vmatmul.mubr.f32.gmra.mrb[0].mxu0 %v2413
          %v2415 = vpop.f32.mrb[0].mxu0
          %v2416 = vadd.f32 %v2312, %v2415
          %v2417 = vpop.f32.mrb[0].mxu0
          %v2418 = vadd.f32 %v2314, %v2417
          %2419 = vdwg.mxu0
          %v2420 = vld [vmem:[%s209] sm:$0xff]
          %v2421 = vld [vmem:[%s209 + $0x8] sm:$0xff]
          %v2422 = vadd.f32 %v2420, %v2416
          %v2423 = vadd.f32 %v2421, %v2418
          %2424 = vst [vmem:[%s209] sm:$0xff] %v2422
          %2425 = vst [vmem:[%s209 + $0x8] sm:$0xff] %v2423
        $region36: #{tpu_custom_call.1} parent=27 // pred_fallthru
          _
        %p2426 = scmp.le.s32.totalorder %s234, 2
        %p2427 = scmp.gt.s32.totalorder %s235, 2
        %p2428 = pnand %p2426, %p2427
        %p2429 = pneg %p2428
        // Predicated region
        $region37: #{tpu_custom_call.1} parent=27 // pred_check
          _
        $region38: #{tpu_custom_call.1} parent=27 // pred_check_branch
          %2431 = sbr.rel (%p2428) target = $region40
        $region39: #{tpu_custom_call.1} parent=27 // pred_region
          %v2432 = vld [vmem:[%s227] sm:$0xff]
          %v2433 = vld [vmem:[%s227 + $0x8] sm:$0xff]
          %v2434 = vld [vmem:[%s227 + $0x10] sm:$0xff]
          %v2435 = vld [vmem:[%s227 + $0x18] sm:$0xff]
          %v2436 = vld [vmem:[%s227 + $0x20] sm:$0xff]
          %v2437 = vld [vmem:[%s227 + $0x28] sm:$0xff]
          %v2438 = vld [vmem:[%s227 + $0x30] sm:$0xff]
          %v2439 = vld [vmem:[%s227 + $0x38] sm:$0xff]
          %v2440 = vld [vmem:[%s227 + $0x40] sm:$0xff]
          %v2441 = vld [vmem:[%s227 + $0x48] sm:$0xff]
          %v2442 = vld [vmem:[%s227 + $0x50] sm:$0xff]
          %v2443 = vld [vmem:[%s227 + $0x58] sm:$0xff]
          %v2444 = vld [vmem:[%s227 + $0x60] sm:$0xff]
          %v2445 = vld [vmem:[%s227 + $0x68] sm:$0xff]
          %v2446 = vld [vmem:[%s227 + $0x70] sm:$0xff]
          %v2447 = vld [vmem:[%s227 + $0x78] sm:$0xff]
          %v2464 = vstv %s236
          %v2465 = vsub.s32 %v2432, %v2464
          %v2466 = vsub.s32 %v2433, %v2464
          %v2467 = vsub.s32 %v2434, %v2464
          %v2468 = vsub.s32 %v2435, %v2464
          %v2469 = vsub.s32 %v2436, %v2464
          %v2470 = vsub.s32 %v2437, %v2464
          %v2471 = vsub.s32 %v2438, %v2464
          %v2472 = vsub.s32 %v2439, %v2464
          %v2473 = vsub.s32 %v2440, %v2464
          %v2474 = vsub.s32 %v2441, %v2464
          %v2475 = vsub.s32 %v2442, %v2464
          %v2476 = vsub.s32 %v2443, %v2464
          %v2477 = vsub.s32 %v2444, %v2464
          %v2478 = vsub.s32 %v2445, %v2464
          %v2479 = vsub.s32 %v2446, %v2464
          %v2480 = vsub.s32 %v2447, %v2464
          %2481 = vset.pattern.permute.xlu0 7
          %2482 = vperm.xlu0 %2481, %v2465
          %v2483 = vpop.permute.xlu0 %2482
          %2484 = vset.pattern.permute.xlu0 7
          %2485 = vperm.xlu0 %2484, %v2466
          %v2486 = vpop.permute.xlu0 %2485
          %2487 = vset.pattern.permute.xlu0 7
          %2488 = vperm.xlu0 %2487, %v2467
          %v2489 = vpop.permute.xlu0 %2488
          %2490 = vset.pattern.permute.xlu0 7
          %2491 = vperm.xlu0 %2490, %v2468
          %v2492 = vpop.permute.xlu0 %2491
          %2493 = vset.pattern.permute.xlu0 7
          %2494 = vperm.xlu0 %2493, %v2469
          %v2495 = vpop.permute.xlu0 %2494
          %2496 = vset.pattern.permute.xlu0 7
          %2497 = vperm.xlu0 %2496, %v2470
          %v2498 = vpop.permute.xlu0 %2497
          %2499 = vset.pattern.permute.xlu0 7
          %2500 = vperm.xlu0 %2499, %v2471
          %v2501 = vpop.permute.xlu0 %2500
          %2502 = vset.pattern.permute.xlu0 7
          %2503 = vperm.xlu0 %2502, %v2472
          %v2504 = vpop.permute.xlu0 %2503
          %2505 = vset.pattern.permute.xlu0 7
          %2506 = vperm.xlu0 %2505, %v2473
          %v2507 = vpop.permute.xlu0 %2506
          %2508 = vset.pattern.permute.xlu0 7
          %2509 = vperm.xlu0 %2508, %v2474
          %v2510 = vpop.permute.xlu0 %2509
          %2511 = vset.pattern.permute.xlu0 7
          %2512 = vperm.xlu0 %2511, %v2475
          %v2513 = vpop.permute.xlu0 %2512
          %2514 = vset.pattern.permute.xlu0 7
          %2515 = vperm.xlu0 %2514, %v2476
          %v2516 = vpop.permute.xlu0 %2515
          %2517 = vset.pattern.permute.xlu0 7
          %2518 = vperm.xlu0 %2517, %v2477
          %v2519 = vpop.permute.xlu0 %2518
          %2520 = vset.pattern.permute.xlu0 7
          %2521 = vperm.xlu0 %2520, %v2478
          %v2522 = vpop.permute.xlu0 %2521
          %2523 = vset.pattern.permute.xlu0 7
          %2524 = vperm.xlu0 %2523, %v2479
          %v2525 = vpop.permute.xlu0 %2524
          %2526 = vset.pattern.permute.xlu0 7
          %2527 = vperm.xlu0 %2526, %v2480
          %v2528 = vpop.permute.xlu0 %2527
          %vm2529 = vcmp.eq.s32.totalorder %v2483, %v238
          %vm2530 = vcmp.eq.s32.totalorder %v2483, %v239
          %vm2531 = vcmp.eq.s32.totalorder %v2486, %v238
          %vm2532 = vcmp.eq.s32.totalorder %v2486, %v239
          %vm2533 = vcmp.eq.s32.totalorder %v2489, %v238
          %vm2534 = vcmp.eq.s32.totalorder %v2489, %v239
          %vm2535 = vcmp.eq.s32.totalorder %v2492, %v238
          %vm2536 = vcmp.eq.s32.totalorder %v2492, %v239
          %vm2537 = vcmp.eq.s32.totalorder %v2495, %v238
          %vm2538 = vcmp.eq.s32.totalorder %v2495, %v239
          %vm2539 = vcmp.eq.s32.totalorder %v2498, %v238
          %vm2540 = vcmp.eq.s32.totalorder %v2498, %v239
          %vm2541 = vcmp.eq.s32.totalorder %v2501, %v238
          %vm2542 = vcmp.eq.s32.totalorder %v2501, %v239
          %vm2543 = vcmp.eq.s32.totalorder %v2504, %v238
          %vm2544 = vcmp.eq.s32.totalorder %v2504, %v239
          %vm2545 = vcmp.eq.s32.totalorder %v2507, %v238
          %vm2546 = vcmp.eq.s32.totalorder %v2507, %v239
          %vm2547 = vcmp.eq.s32.totalorder %v2510, %v238
          %vm2548 = vcmp.eq.s32.totalorder %v2510, %v239
          %vm2549 = vcmp.eq.s32.totalorder %v2513, %v238
          %vm2550 = vcmp.eq.s32.totalorder %v2513, %v239
          %vm2551 = vcmp.eq.s32.totalorder %v2516, %v238
          %vm2552 = vcmp.eq.s32.totalorder %v2516, %v239
          %vm2553 = vcmp.eq.s32.totalorder %v2519, %v238
          %vm2554 = vcmp.eq.s32.totalorder %v2519, %v239
          %vm2555 = vcmp.eq.s32.totalorder %v2522, %v238
          %vm2556 = vcmp.eq.s32.totalorder %v2522, %v239
          %vm2557 = vcmp.eq.s32.totalorder %v2525, %v238
          %vm2558 = vcmp.eq.s32.totalorder %v2525, %v239
          %vm2559 = vcmp.eq.s32.totalorder %v2528, %v238
          %vm2560 = vcmp.eq.s32.totalorder %v2528, %v239
          %v2561 = vsel %vm2529, 1, 0
          %v2562 = vsel %vm2530, 1, 0
          %v2563 = vsel %vm2531, 1, 0
          %v2564 = vsel %vm2532, 1, 0
          %v2565 = vsel %vm2533, 1, 0
          %v2566 = vsel %vm2534, 1, 0
          %v2567 = vsel %vm2535, 1, 0
          %v2568 = vsel %vm2536, 1, 0
          %v2569 = vsel %vm2537, 1, 0
          %v2570 = vsel %vm2538, 1, 0
          %v2571 = vsel %vm2539, 1, 0
          %v2572 = vsel %vm2540, 1, 0
          %v2573 = vsel %vm2541, 1, 0
          %v2574 = vsel %vm2542, 1, 0
          %v2575 = vsel %vm2543, 1, 0
          %v2576 = vsel %vm2544, 1, 0
          %v2577 = vsel %vm2545, 1, 0
          %v2578 = vsel %vm2546, 1, 0
          %v2579 = vsel %vm2547, 1, 0
          %v2580 = vsel %vm2548, 1, 0
          %v2581 = vsel %vm2549, 1, 0
          %v2582 = vsel %vm2550, 1, 0
          %v2583 = vsel %vm2551, 1, 0
          %v2584 = vsel %vm2552, 1, 0
          %v2585 = vsel %vm2553, 1, 0
          %v2586 = vsel %vm2554, 1, 0
          %v2587 = vsel %vm2555, 1, 0
          %v2588 = vsel %vm2556, 1, 0
          %v2589 = vsel %vm2557, 1, 0
          %v2590 = vsel %vm2558, 1, 0
          %v2591 = vsel %vm2559, 1, 0
          %v2592 = vsel %vm2560, 1, 0
          %v2593 = vcvt.s32.f32 %v2561
          %v2594 = vcvt.s32.f32 %v2562
          %v2595 = vcvt.s32.f32 %v2563
          %v2596 = vcvt.s32.f32 %v2564
          %v2597 = vcvt.s32.f32 %v2565
          %v2598 = vcvt.s32.f32 %v2566
          %v2599 = vcvt.s32.f32 %v2567
          %v2600 = vcvt.s32.f32 %v2568
          %v2601 = vcvt.s32.f32 %v2569
          %v2602 = vcvt.s32.f32 %v2570
          %v2603 = vcvt.s32.f32 %v2571
          %v2604 = vcvt.s32.f32 %v2572
          %v2605 = vcvt.s32.f32 %v2573
          %v2606 = vcvt.s32.f32 %v2574
          %v2607 = vcvt.s32.f32 %v2575
          %v2608 = vcvt.s32.f32 %v2576
          %v2609 = vcvt.s32.f32 %v2577
          %v2610 = vcvt.s32.f32 %v2578
          %v2611 = vcvt.s32.f32 %v2579
          %v2612 = vcvt.s32.f32 %v2580
          %v2613 = vcvt.s32.f32 %v2581
          %v2614 = vcvt.s32.f32 %v2582
          %v2615 = vcvt.s32.f32 %v2583
          %v2616 = vcvt.s32.f32 %v2584
          %v2617 = vcvt.s32.f32 %v2585
          %v2618 = vcvt.s32.f32 %v2586
          %v2619 = vcvt.s32.f32 %v2587
          %v2620 = vcvt.s32.f32 %v2588
          %v2621 = vcvt.s32.f32 %v2589
          %v2622 = vcvt.s32.f32 %v2590
          %v2623 = vcvt.s32.f32 %v2591
          %v2624 = vcvt.s32.f32 %v2592
          %2625 = vxpose.xlu0.b32.start [1/16] %v2432, 128
          %2626 = vxpose.xlu0.b32.cont [2/16] %v2433, 128
          %2627 = vxpose.xlu0.b32.cont [3/16] %v2434, 128
          %2628 = vxpose.xlu0.b32.cont [4/16] %v2435, 128
          %2629 = vxpose.xlu0.b32.cont [5/16] %v2436, 128
          %2630 = vxpose.xlu0.b32.cont [6/16] %v2437, 128
          %2631 = vxpose.xlu0.b32.cont [7/16] %v2438, 128
          %2632 = vxpose.xlu0.b32.cont [8/16] %v2439, 128
          %2633 = vxpose.xlu0.b32.cont [9/16] %v2440, 128
          %2634 = vxpose.xlu0.b32.cont [10/16] %v2441, 128
          %2635 = vxpose.xlu0.b32.cont [11/16] %v2442, 128
          %2636 = vxpose.xlu0.b32.cont [12/16] %v2443, 128
          %2637 = vxpose.xlu0.b32.cont [13/16] %v2444, 128
          %2638 = vxpose.xlu0.b32.cont [14/16] %v2445, 128
          %2639 = vxpose.xlu0.b32.cont [15/16] %v2446, 128
          %2640 = vxpose.xlu0.b32.end [16/16] %v2447, 128
          %v2641 = vpop.trf.xlu0
          %v2642 = vpop.trf.xlu0
          %v2643 = vpop.trf.xlu0
          %v2644 = vpop.trf.xlu0
          %v2645 = vpop.trf.xlu0
          %v2646 = vpop.trf.xlu0
          %v2647 = vpop.trf.xlu0
          %v2648 = vpop.trf.xlu0
          %v2649 = vpop.trf.xlu0
          %v2650 = vpop.trf.xlu0
          %v2651 = vpop.trf.xlu0
          %v2652 = vpop.trf.xlu0
          %v2653 = vpop.trf.xlu0
          %v2654 = vpop.trf.xlu0
          %v2655 = vpop.trf.xlu0
          %v2656 = vpop.trf.xlu0
          %v2657 = vand.u32 %v2594, 4294901760
          %2658 = vmatprep.subr.mxu0 %v2657
          %v2659 = vand.u32 %v2593, 4294901760
          %2660 = vmatpush1.msra.mxu0 %v2659
          %v2661 = vand.u32 %v2596, 4294901760
          %2662 = vmatprep.subr.mxu0 %v2661
          %v2663 = vand.u32 %v2595, 4294901760
          %2664 = vmatpush1.msra.mxu0 %v2663
          %v2665 = vand.u32 %v2598, 4294901760
          %2666 = vmatprep.subr.mxu0 %v2665
          %v2667 = vand.u32 %v2597, 4294901760
          %2668 = vmatpush1.msra.mxu0 %v2667
          %v2669 = vand.u32 %v2600, 4294901760
          %2670 = vmatprep.subr.mxu0 %v2669
          %v2671 = vand.u32 %v2599, 4294901760
          %2672 = vmatpush1.msra.mxu0 %v2671
          %v2673 = vand.u32 %v2602, 4294901760
          %2674 = vmatprep.subr.mxu0 %v2673
          %v2675 = vand.u32 %v2601, 4294901760
          %2676 = vmatpush1.msra.mxu0 %v2675
          %v2677 = vand.u32 %v2604, 4294901760
          %2678 = vmatprep.subr.mxu0 %v2677
          %v2679 = vand.u32 %v2603, 4294901760
          %2680 = vmatpush1.msra.mxu0 %v2679
          %v2681 = vand.u32 %v2606, 4294901760
          %2682 = vmatprep.subr.mxu0 %v2681
          %v2683 = vand.u32 %v2605, 4294901760
          %2684 = vmatpush1.msra.mxu0 %v2683
          %v2685 = vand.u32 %v2608, 4294901760
          %2686 = vmatprep.subr.mxu0 %v2685
          %v2687 = vand.u32 %v2607, 4294901760
          %2688 = vmatpush1.msra.mxu0 %v2687
          %v2689 = vand.u32 %v2610, 4294901760
          %2690 = vmatprep.subr.mxu0 %v2689
          %v2691 = vand.u32 %v2609, 4294901760
          %2692 = vmatpush1.msra.mxu0 %v2691
          %v2693 = vand.u32 %v2612, 4294901760
          %2694 = vmatprep.subr.mxu0 %v2693
          %v2695 = vand.u32 %v2611, 4294901760
          %2696 = vmatpush1.msra.mxu0 %v2695
          %v2697 = vand.u32 %v2614, 4294901760
          %2698 = vmatprep.subr.mxu0 %v2697
          %v2699 = vand.u32 %v2613, 4294901760
          %2700 = vmatpush1.msra.mxu0 %v2699
          %v2701 = vand.u32 %v2616, 4294901760
          %2702 = vmatprep.subr.mxu0 %v2701
          %v2703 = vand.u32 %v2615, 4294901760
          %2704 = vmatpush1.msra.mxu0 %v2703
          %v2705 = vand.u32 %v2618, 4294901760
          %2706 = vmatprep.subr.mxu0 %v2705
          %v2707 = vand.u32 %v2617, 4294901760
          %2708 = vmatpush1.msra.mxu0 %v2707
          %v2709 = vand.u32 %v2620, 4294901760
          %2710 = vmatprep.subr.mxu0 %v2709
          %v2711 = vand.u32 %v2619, 4294901760
          %2712 = vmatpush1.msra.mxu0 %v2711
          %v2713 = vand.u32 %v2622, 4294901760
          %2714 = vmatprep.subr.mxu0 %v2713
          %v2715 = vand.u32 %v2621, 4294901760
          %2716 = vmatpush1.msra.mxu0 %v2715
          %v2717 = vand.u32 %v2624, 4294901760
          %2718 = vmatprep.subr.mxu0 %v2717
          %v2719 = vand.u32 %v2623, 4294901760
          %2720 = vmatpush1.msra.mxu0 %v2719
          %2721 = vmatprep.subr.mxu0 0.0
          %2722 = vmatpush1.msra.mxu0 0.0
          %2723 = vmatprep.subr.mxu0 0.0
          %2724 = vmatpush1.msra.mxu0 0.0
          %2725 = vmatprep.subr.mxu0 0.0
          %2726 = vmatpush1.msra.mxu0 0.0
          %2727 = vmatprep.subr.mxu0 0.0
          %2728 = vmatpush1.msra.mxu0 0.0
          %2729 = vmatprep.subr.mxu0 0.0
          %2730 = vmatpush1.msra.mxu0 0.0
          %2731 = vmatprep.subr.mxu0 0.0
          %2732 = vmatpush1.msra.mxu0 0.0
          %2733 = vmatprep.subr.mxu0 0.0
          %2734 = vmatpush1.msra.mxu0 0.0
          %2735 = vmatprep.subr.mxu0 0.0
          %2736 = vmatpush1.msra.mxu0 0.0
          %2737 = vmatprep.subr.mxu0 0.0
          %2738 = vmatpush1.msra.mxu0 0.0
          %2739 = vmatprep.subr.mxu0 0.0
          %2740 = vmatpush1.msra.mxu0 0.0
          %2741 = vmatprep.subr.mxu0 0.0
          %2742 = vmatpush1.msra.mxu0 0.0
          %2743 = vmatprep.subr.mxu0 0.0
          %2744 = vmatpush1.msra.mxu0 0.0
          %2745 = vmatprep.subr.mxu0 0.0
          %2746 = vmatpush1.msra.mxu0 0.0
          %2747 = vmatprep.subr.mxu0 0.0
          %2748 = vmatpush1.msra.mxu0 0.0
          %2749 = vmatprep.subr.mxu0 0.0
          %2750 = vmatpush1.msra.mxu0 0.0
          %2751 = vmatprep.subr.mxu0 0.0
          %2752 = vmatpush1.msra.mxu0 0.0
          %2753 = vmatprep.mubr.f32.mxu0 0.0
          %v2754 = vand.u32 %v2641, 4294901760
          %v2755 = vsub.f32 %v2641, %v2754
          %v2756 = vand.u32 %v2755, 4294901760
          %v2757 = vsub.f32 %v2755, %v2756
          %v2758 = vand.u32 %v2757, 4294901760
          %2759 = vmatmul.mubr.f32.gmra.mrb[0].mxu0 %v2758
          %v2760 = vpop.f32.mrb[0].mxu0
          %v2761 = vadd.f32 0.0, %v2760
          %v2762 = vpop.f32.mrb[0].mxu0
          %v2763 = vadd.f32 0.0, %v2762
          %2764 = vdwg.mxu0
          %v2765 = vand.u32 %v2594, 4294901760
          %v2766 = vsub.f32 %v2594, %v2765
          %v2767 = vand.u32 %v2766, 4294901760
          %v2768 = vsub.f32 %v2766, %v2767
          %v2769 = vand.u32 %v2768, 4294901760
          %2770 = vmatprep.subr.mxu0 %v2769
          %v2771 = vand.u32 %v2593, 4294901760
          %v2772 = vsub.f32 %v2593, %v2771
          %v2773 = vand.u32 %v2772, 4294901760
          %v2774 = vsub.f32 %v2772, %v2773
          %v2775 = vand.u32 %v2774, 4294901760
          %2776 = vmatpush1.msra.mxu0 %v2775
          %v2777 = vand.u32 %v2596, 4294901760
          %v2778 = vsub.f32 %v2596, %v2777
          %v2779 = vand.u32 %v2778, 4294901760
          %v2780 = vsub.f32 %v2778, %v2779
          %v2781 = vand.u32 %v2780, 4294901760
          %2782 = vmatprep.subr.mxu0 %v2781
          %v2783 = vand.u32 %v2595, 4294901760
          %v2784 = vsub.f32 %v2595, %v2783
          %v2785 = vand.u32 %v2784, 4294901760
          %v2786 = vsub.f32 %v2784, %v2785
          %v2787 = vand.u32 %v2786, 4294901760
          %2788 = vmatpush1.msra.mxu0 %v2787
          %v2789 = vand.u32 %v2598, 4294901760
          %v2790 = vsub.f32 %v2598, %v2789
          %v2791 = vand.u32 %v2790, 4294901760
          %v2792 = vsub.f32 %v2790, %v2791
          %v2793 = vand.u32 %v2792, 4294901760
          %2794 = vmatprep.subr.mxu0 %v2793
          %v2795 = vand.u32 %v2597, 4294901760
          %v2796 = vsub.f32 %v2597, %v2795
          %v2797 = vand.u32 %v2796, 4294901760
          %v2798 = vsub.f32 %v2796, %v2797
          %v2799 = vand.u32 %v2798, 4294901760
          %2800 = vmatpush1.msra.mxu0 %v2799
          %v2801 = vand.u32 %v2600, 4294901760
          %v2802 = vsub.f32 %v2600, %v2801
          %v2803 = vand.u32 %v2802, 4294901760
          %v2804 = vsub.f32 %v2802, %v2803
          %v2805 = vand.u32 %v2804, 4294901760
          %2806 = vmatprep.subr.mxu0 %v2805
          %v2807 = vand.u32 %v2599, 4294901760
          %v2808 = vsub.f32 %v2599, %v2807
          %v2809 = vand.u32 %v2808, 4294901760
          %v2810 = vsub.f32 %v2808, %v2809
          %v2811 = vand.u32 %v2810, 4294901760
          %2812 = vmatpush1.msra.mxu0 %v2811
          %v2813 = vand.u32 %v2602, 4294901760
          %v2814 = vsub.f32 %v2602, %v2813
          %v2815 = vand.u32 %v2814, 4294901760
          %v2816 = vsub.f32 %v2814, %v2815
          %v2817 = vand.u32 %v2816, 4294901760
          %2818 = vmatprep.subr.mxu0 %v2817
          %v2819 = vand.u32 %v2601, 4294901760
          %v2820 = vsub.f32 %v2601, %v2819
          %v2821 = vand.u32 %v2820, 4294901760
          %v2822 = vsub.f32 %v2820, %v2821
          %v2823 = vand.u32 %v2822, 4294901760
          %2824 = vmatpush1.msra.mxu0 %v2823
          %v2825 = vand.u32 %v2604, 4294901760
          %v2826 = vsub.f32 %v2604, %v2825
          %v2827 = vand.u32 %v2826, 4294901760
          %v2828 = vsub.f32 %v2826, %v2827
          %v2829 = vand.u32 %v2828, 4294901760
          %2830 = vmatprep.subr.mxu0 %v2829
          %v2831 = vand.u32 %v2603, 4294901760
          %v2832 = vsub.f32 %v2603, %v2831
          %v2833 = vand.u32 %v2832, 4294901760
          %v2834 = vsub.f32 %v2832, %v2833
          %v2835 = vand.u32 %v2834, 4294901760
          %2836 = vmatpush1.msra.mxu0 %v2835
          %v2837 = vand.u32 %v2606, 4294901760
          %v2838 = vsub.f32 %v2606, %v2837
          %v2839 = vand.u32 %v2838, 4294901760
          %v2840 = vsub.f32 %v2838, %v2839
          %v2841 = vand.u32 %v2840, 4294901760
          %2842 = vmatprep.subr.mxu0 %v2841
          %v2843 = vand.u32 %v2605, 4294901760
          %v2844 = vsub.f32 %v2605, %v2843
          %v2845 = vand.u32 %v2844, 4294901760
          %v2846 = vsub.f32 %v2844, %v2845
          %v2847 = vand.u32 %v2846, 4294901760
          %2848 = vmatpush1.msra.mxu0 %v2847
          %v2849 = vand.u32 %v2608, 4294901760
          %v2850 = vsub.f32 %v2608, %v2849
          %v2851 = vand.u32 %v2850, 4294901760
          %v2852 = vsub.f32 %v2850, %v2851
          %v2853 = vand.u32 %v2852, 4294901760
          %2854 = vmatprep.subr.mxu0 %v2853
          %v2855 = vand.u32 %v2607, 4294901760
          %v2856 = vsub.f32 %v2607, %v2855
          %v2857 = vand.u32 %v2856, 4294901760
          %v2858 = vsub.f32 %v2856, %v2857
          %v2859 = vand.u32 %v2858, 4294901760
          %2860 = vmatpush1.msra.mxu0 %v2859
          %v2861 = vand.u32 %v2610, 4294901760
          %v2862 = vsub.f32 %v2610, %v2861
          %v2863 = vand.u32 %v2862, 4294901760
          %v2864 = vsub.f32 %v2862, %v2863
          %v2865 = vand.u32 %v2864, 4294901760
          %2866 = vmatprep.subr.mxu0 %v2865
          %v2867 = vand.u32 %v2609, 4294901760
          %v2868 = vsub.f32 %v2609, %v2867
          %v2869 = vand.u32 %v2868, 4294901760
          %v2870 = vsub.f32 %v2868, %v2869
          %v2871 = vand.u32 %v2870, 4294901760
          %2872 = vmatpush1.msra.mxu0 %v2871
          %v2873 = vand.u32 %v2612, 4294901760
          %v2874 = vsub.f32 %v2612, %v2873
          %v2875 = vand.u32 %v2874, 4294901760
          %v2876 = vsub.f32 %v2874, %v2875
          %v2877 = vand.u32 %v2876, 4294901760
          %2878 = vmatprep.subr.mxu0 %v2877
          %v2879 = vand.u32 %v2611, 4294901760
          %v2880 = vsub.f32 %v2611, %v2879
          %v2881 = vand.u32 %v2880, 4294901760
          %v2882 = vsub.f32 %v2880, %v2881
          %v2883 = vand.u32 %v2882, 4294901760
          %2884 = vmatpush1.msra.mxu0 %v2883
          %v2885 = vand.u32 %v2614, 4294901760
          %v2886 = vsub.f32 %v2614, %v2885
          %v2887 = vand.u32 %v2886, 4294901760
          %v2888 = vsub.f32 %v2886, %v2887
          %v2889 = vand.u32 %v2888, 4294901760
          %2890 = vmatprep.subr.mxu0 %v2889
          %v2891 = vand.u32 %v2613, 4294901760
          %v2892 = vsub.f32 %v2613, %v2891
          %v2893 = vand.u32 %v2892, 4294901760
          %v2894 = vsub.f32 %v2892, %v2893
          %v2895 = vand.u32 %v2894, 4294901760
          %2896 = vmatpush1.msra.mxu0 %v2895
          %v2897 = vand.u32 %v2616, 4294901760
          %v2898 = vsub.f32 %v2616, %v2897
          %v2899 = vand.u32 %v2898, 4294901760
          %v2900 = vsub.f32 %v2898, %v2899
          %v2901 = vand.u32 %v2900, 4294901760
          %2902 = vmatprep.subr.mxu0 %v2901
          %v2903 = vand.u32 %v2615, 4294901760
          %v2904 = vsub.f32 %v2615, %v2903
          %v2905 = vand.u32 %v2904, 4294901760
          %v2906 = vsub.f32 %v2904, %v2905
          %v2907 = vand.u32 %v2906, 4294901760
          %2908 = vmatpush1.msra.mxu0 %v2907
          %v2909 = vand.u32 %v2618, 4294901760
          %v2910 = vsub.f32 %v2618, %v2909
          %v2911 = vand.u32 %v2910, 4294901760
          %v2912 = vsub.f32 %v2910, %v2911
          %v2913 = vand.u32 %v2912, 4294901760
          %2914 = vmatprep.subr.mxu0 %v2913
          %v2915 = vand.u32 %v2617, 4294901760
          %v2916 = vsub.f32 %v2617, %v2915
          %v2917 = vand.u32 %v2916, 4294901760
          %v2918 = vsub.f32 %v2916, %v2917
          %v2919 = vand.u32 %v2918, 4294901760
          %2920 = vmatpush1.msra.mxu0 %v2919
          %v2921 = vand.u32 %v2620, 4294901760
          %v2922 = vsub.f32 %v2620, %v2921
          %v2923 = vand.u32 %v2922, 4294901760
          %v2924 = vsub.f32 %v2922, %v2923
          %v2925 = vand.u32 %v2924, 4294901760
          %2926 = vmatprep.subr.mxu0 %v2925
          %v2927 = vand.u32 %v2619, 4294901760
          %v2928 = vsub.f32 %v2619, %v2927
          %v2929 = vand.u32 %v2928, 4294901760
          %v2930 = vsub.f32 %v2928, %v2929
          %v2931 = vand.u32 %v2930, 4294901760
          %2932 = vmatpush1.msra.mxu0 %v2931
          %v2933 = vand.u32 %v2622, 4294901760
          %v2934 = vsub.f32 %v2622, %v2933
          %v2935 = vand.u32 %v2934, 4294901760
          %v2936 = vsub.f32 %v2934, %v2935
          %v2937 = vand.u32 %v2936, 4294901760
          %2938 = vmatprep.subr.mxu0 %v2937
          %v2939 = vand.u32 %v2621, 4294901760
          %v2940 = vsub.f32 %v2621, %v2939
          %v2941 = vand.u32 %v2940, 4294901760
          %v2942 = vsub.f32 %v2940, %v2941
          %v2943 = vand.u32 %v2942, 4294901760
          %2944 = vmatpush1.msra.mxu0 %v2943
          %v2945 = vand.u32 %v2624, 4294901760
          %v2946 = vsub.f32 %v2624, %v2945
          %v2947 = vand.u32 %v2946, 4294901760
          %v2948 = vsub.f32 %v2946, %v2947
          %v2949 = vand.u32 %v2948, 4294901760
          %2950 = vmatprep.subr.mxu0 %v2949
          %v2951 = vand.u32 %v2623, 4294901760
          %v2952 = vsub.f32 %v2623, %v2951
          %v2953 = vand.u32 %v2952, 4294901760
          %v2954 = vsub.f32 %v2952, %v2953
          %v2955 = vand.u32 %v2954, 4294901760
          %2956 = vmatpush1.msra.mxu0 %v2955
          %2957 = vmatprep.subr.mxu0 0.0
          %2958 = vmatpush1.msra.mxu0 0.0
          %2959 = vmatprep.subr.mxu0 0.0
          %2960 = vmatpush1.msra.mxu0 0.0
          %2961 = vmatprep.subr.mxu0 0.0
          %2962 = vmatpush1.msra.mxu0 0.0
          %2963 = vmatprep.subr.mxu0 0.0
          %2964 = vmatpush1.msra.mxu0 0.0
          %2965 = vmatprep.subr.mxu0 0.0
          %2966 = vmatpush1.msra.mxu0 0.0
          %2967 = vmatprep.subr.mxu0 0.0
          %2968 = vmatpush1.msra.mxu0 0.0
          %2969 = vmatprep.subr.mxu0 0.0
          %2970 = vmatpush1.msra.mxu0 0.0
          %2971 = vmatprep.subr.mxu0 0.0
          %2972 = vmatpush1.msra.mxu0 0.0
          %2973 = vmatprep.subr.mxu0 0.0
          %2974 = vmatpush1.msra.mxu0 0.0
          %2975 = vmatprep.subr.mxu0 0.0
          %2976 = vmatpush1.msra.mxu0 0.0
          %2977 = vmatprep.subr.mxu0 0.0
          %2978 = vmatpush1.msra.mxu0 0.0
          %2979 = vmatprep.subr.mxu0 0.0
          %2980 = vmatpush1.msra.mxu0 0.0
          %2981 = vmatprep.subr.mxu0 0.0
          %2982 = vmatpush1.msra.mxu0 0.0
          %2983 = vmatprep.subr.mxu0 0.0
          %2984 = vmatpush1.msra.mxu0 0.0
          %2985 = vmatprep.subr.mxu0 0.0
          %2986 = vmatpush1.msra.mxu0 0.0
          %2987 = vmatprep.subr.mxu0 0.0
          %2988 = vmatpush1.msra.mxu0 0.0
          %2989 = vmatprep.mubr.f32.mxu0 0.0
          %v2990 = vand.u32 %v2641, 4294901760
          %2991 = vmatmul.mubr.f32.gmra.mrb[0].mxu0 %v2990
          %v2992 = vpop.f32.mrb[0].mxu0
          %v2993 = vadd.f32 %v2761, %v2992
          %v2994 = vpop.f32.mrb[0].mxu0
          %v2995 = vadd.f32 %v2763, %v2994
          %2996 = vdwg.mxu0
          %v2997 = vand.u32 %v2594, 4294901760
          %v2998 = vsub.f32 %v2594, %v2997
          %2999 = vmatprep.subr.mxu0 %v2998
          %v3000 = vand.u32 %v2593, 4294901760
          %v3001 = vsub.f32 %v2593, %v3000
          %3002 = vmatpush1.msra.mxu0 %v3001
          %v3003 = vand.u32 %v2596, 4294901760
          %v3004 = vsub.f32 %v2596, %v3003
          %3005 = vmatprep.subr.mxu0 %v3004
          %v3006 = vand.u32 %v2595, 4294901760
          %v3007 = vsub.f32 %v2595, %v3006
          %3008 = vmatpush1.msra.mxu0 %v3007
          %v3009 = vand.u32 %v2598, 4294901760
          %v3010 = vsub.f32 %v2598, %v3009
          %3011 = vmatprep.subr.mxu0 %v3010
          %v3012 = vand.u32 %v2597, 4294901760
          %v3013 = vsub.f32 %v2597, %v3012
          %3014 = vmatpush1.msra.mxu0 %v3013
          %v3015 = vand.u32 %v2600, 4294901760
          %v3016 = vsub.f32 %v2600, %v3015
          %3017 = vmatprep.subr.mxu0 %v3016
          %v3018 = vand.u32 %v2599, 4294901760
          %v3019 = vsub.f32 %v2599, %v3018
          %3020 = vmatpush1.msra.mxu0 %v3019
          %v3021 = vand.u32 %v2602, 4294901760
          %v3022 = vsub.f32 %v2602, %v3021
          %3023 = vmatprep.subr.mxu0 %v3022
          %v3024 = vand.u32 %v2601, 4294901760
          %v3025 = vsub.f32 %v2601, %v3024
          %3026 = vmatpush1.msra.mxu0 %v3025
          %v3027 = vand.u32 %v2604, 4294901760
          %v3028 = vsub.f32 %v2604, %v3027
          %3029 = vmatprep.subr.mxu0 %v3028
          %v3030 = vand.u32 %v2603, 4294901760
          %v3031 = vsub.f32 %v2603, %v3030
          %3032 = vmatpush1.msra.mxu0 %v3031
          %v3033 = vand.u32 %v2606, 4294901760
          %v3034 = vsub.f32 %v2606, %v3033
          %3035 = vmatprep.subr.mxu0 %v3034
          %v3036 = vand.u32 %v2605, 4294901760
          %v3037 = vsub.f32 %v2605, %v3036
          %3038 = vmatpush1.msra.mxu0 %v3037
          %v3039 = vand.u32 %v2608, 4294901760
          %v3040 = vsub.f32 %v2608, %v3039
          %3041 = vmatprep.subr.mxu0 %v3040
          %v3042 = vand.u32 %v2607, 4294901760
          %v3043 = vsub.f32 %v2607, %v3042
          %3044 = vmatpush1.msra.mxu0 %v3043
          %v3045 = vand.u32 %v2610, 4294901760
          %v3046 = vsub.f32 %v2610, %v3045
          %3047 = vmatprep.subr.mxu0 %v3046
          %v3048 = vand.u32 %v2609, 4294901760
          %v3049 = vsub.f32 %v2609, %v3048
          %3050 = vmatpush1.msra.mxu0 %v3049
          %v3051 = vand.u32 %v2612, 4294901760
          %v3052 = vsub.f32 %v2612, %v3051
          %3053 = vmatprep.subr.mxu0 %v3052
          %v3054 = vand.u32 %v2611, 4294901760
          %v3055 = vsub.f32 %v2611, %v3054
          %3056 = vmatpush1.msra.mxu0 %v3055
          %v3057 = vand.u32 %v2614, 4294901760
          %v3058 = vsub.f32 %v2614, %v3057
          %3059 = vmatprep.subr.mxu0 %v3058
          %v3060 = vand.u32 %v2613, 4294901760
          %v3061 = vsub.f32 %v2613, %v3060
          %3062 = vmatpush1.msra.mxu0 %v3061
          %v3063 = vand.u32 %v2616, 4294901760
          %v3064 = vsub.f32 %v2616, %v3063
          %3065 = vmatprep.subr.mxu0 %v3064
          %v3066 = vand.u32 %v2615, 4294901760
          %v3067 = vsub.f32 %v2615, %v3066
          %3068 = vmatpush1.msra.mxu0 %v3067
          %v3069 = vand.u32 %v2618, 4294901760
          %v3070 = vsub.f32 %v2618, %v3069
          %3071 = vmatprep.subr.mxu0 %v3070
          %v3072 = vand.u32 %v2617, 4294901760
          %v3073 = vsub.f32 %v2617, %v3072
          %3074 = vmatpush1.msra.mxu0 %v3073
          %v3075 = vand.u32 %v2620, 4294901760
          %v3076 = vsub.f32 %v2620, %v3075
          %3077 = vmatprep.subr.mxu0 %v3076
          %v3078 = vand.u32 %v2619, 4294901760
          %v3079 = vsub.f32 %v2619, %v3078
          %3080 = vmatpush1.msra.mxu0 %v3079
          %v3081 = vand.u32 %v2622, 4294901760
          %v3082 = vsub.f32 %v2622, %v3081
          %3083 = vmatprep.subr.mxu0 %v3082
          %v3084 = vand.u32 %v2621, 4294901760
          %v3085 = vsub.f32 %v2621, %v3084
          %3086 = vmatpush1.msra.mxu0 %v3085
          %v3087 = vand.u32 %v2624, 4294901760
          %v3088 = vsub.f32 %v2624, %v3087
          %3089 = vmatprep.subr.mxu0 %v3088
          %v3090 = vand.u32 %v2623, 4294901760
          %v3091 = vsub.f32 %v2623, %v3090
          %3092 = vmatpush1.msra.mxu0 %v3091
          %3093 = vmatprep.subr.mxu0 0.0
          %3094 = vmatpush1.msra.mxu0 0.0
          %3095 = vmatprep.subr.mxu0 0.0
          %3096 = vmatpush1.msra.mxu0 0.0
          %3097 = vmatprep.subr.mxu0 0.0
          %3098 = vmatpush1.msra.mxu0 0.0
          %3099 = vmatprep.subr.mxu0 0.0
          %3100 = vmatpush1.msra.mxu0 0.0
          %3101 = vmatprep.subr.mxu0 0.0
          %3102 = vmatpush1.msra.mxu0 0.0
          %3103 = vmatprep.subr.mxu0 0.0
          %3104 = vmatpush1.msra.mxu0 0.0
          %3105 = vmatprep.subr.mxu0 0.0
          %3106 = vmatpush1.msra.mxu0 0.0
          %3107 = vmatprep.subr.mxu0 0.0
          %3108 = vmatpush1.msra.mxu0 0.0
          %3109 = vmatprep.subr.mxu0 0.0
          %3110 = vmatpush1.msra.mxu0 0.0
          %3111 = vmatprep.subr.mxu0 0.0
          %3112 = vmatpush1.msra.mxu0 0.0
          %3113 = vmatprep.subr.mxu0 0.0
          %3114 = vmatpush1.msra.mxu0 0.0
          %3115 = vmatprep.subr.mxu0 0.0
          %3116 = vmatpush1.msra.mxu0 0.0
          %3117 = vmatprep.subr.mxu0 0.0
          %3118 = vmatpush1.msra.mxu0 0.0
          %3119 = vmatprep.subr.mxu0 0.0
          %3120 = vmatpush1.msra.mxu0 0.0
          %3121 = vmatprep.subr.mxu0 0.0
          %3122 = vmatpush1.msra.mxu0 0.0
          %3123 = vmatprep.subr.mxu0 0.0
          %3124 = vmatpush1.msra.mxu0 0.0
          %3125 = vmatprep.mubr.f32.mxu0 0.0
          %v3126 = vand.u32 %v2641, 4294901760
          %v3127 = vsub.f32 %v2641, %v3126
          %3128 = vmatmul.mubr.f32.gmra.mrb[0].mxu0 %v3127
          %v3129 = vpop.f32.mrb[0].mxu0
          %v3130 = vadd.f32 %v2993, %v3129
          %v3131 = vpop.f32.mrb[0].mxu0
          %v3132 = vadd.f32 %v2995, %v3131
          %3133 = vdwg.mxu0
          %v3134 = vand.u32 %v2594, 4294901760
          %3135 = vmatprep.subr.mxu0 %v3134
          %v3136 = vand.u32 %v2593, 4294901760
          %3137 = vmatpush1.msra.mxu0 %v3136
          %v3138 = vand.u32 %v2596, 4294901760
          %3139 = vmatprep.subr.mxu0 %v3138
          %v3140 = vand.u32 %v2595, 4294901760
          %3141 = vmatpush1.msra.mxu0 %v3140
          %v3142 = vand.u32 %v2598, 4294901760
          %3143 = vmatprep.subr.mxu0 %v3142
          %v3144 = vand.u32 %v2597, 4294901760
          %3145 = vmatpush1.msra.mxu0 %v3144
          %v3146 = vand.u32 %v2600, 4294901760
          %3147 = vmatprep.subr.mxu0 %v3146
          %v3148 = vand.u32 %v2599, 4294901760
          %3149 = vmatpush1.msra.mxu0 %v3148
          %v3150 = vand.u32 %v2602, 4294901760
          %3151 = vmatprep.subr.mxu0 %v3150
          %v3152 = vand.u32 %v2601, 4294901760
          %3153 = vmatpush1.msra.mxu0 %v3152
          %v3154 = vand.u32 %v2604, 4294901760
          %3155 = vmatprep.subr.mxu0 %v3154
          %v3156 = vand.u32 %v2603, 4294901760
          %3157 = vmatpush1.msra.mxu0 %v3156
          %v3158 = vand.u32 %v2606, 4294901760
          %3159 = vmatprep.subr.mxu0 %v3158
          %v3160 = vand.u32 %v2605, 4294901760
          %3161 = vmatpush1.msra.mxu0 %v3160
          %v3162 = vand.u32 %v2608, 4294901760
          %3163 = vmatprep.subr.mxu0 %v3162
          %v3164 = vand.u32 %v2607, 4294901760
          %3165 = vmatpush1.msra.mxu0 %v3164
          %v3166 = vand.u32 %v2610, 4294901760
          %3167 = vmatprep.subr.mxu0 %v3166
          %v3168 = vand.u32 %v2609, 4294901760
          %3169 = vmatpush1.msra.mxu0 %v3168
          %v3170 = vand.u32 %v2612, 4294901760
          %3171 = vmatprep.subr.mxu0 %v3170
          %v3172 = vand.u32 %v2611, 4294901760
          %3173 = vmatpush1.msra.mxu0 %v3172
          %v3174 = vand.u32 %v2614, 4294901760
          %3175 = vmatprep.subr.mxu0 %v3174
          %v3176 = vand.u32 %v2613, 4294901760
          %3177 = vmatpush1.msra.mxu0 %v3176
          %v3178 = vand.u32 %v2616, 4294901760
          %3179 = vmatprep.subr.mxu0 %v3178
          %v3180 = vand.u32 %v2615, 4294901760
          %3181 = vmatpush1.msra.mxu0 %v3180
          %v3182 = vand.u32 %v2618, 4294901760
          %3183 = vmatprep.subr.mxu0 %v3182
          %v3184 = vand.u32 %v2617, 4294901760
          %3185 = vmatpush1.msra.mxu0 %v3184
          %v3186 = vand.u32 %v2620, 4294901760
          %3187 = vmatprep.subr.mxu0 %v3186
          %v3188 = vand.u32 %v2619, 4294901760
          %3189 = vmatpush1.msra.mxu0 %v3188
          %v3190 = vand.u32 %v2622, 4294901760
          %3191 = vmatprep.subr.mxu0 %v3190
          %v3192 = vand.u32 %v2621, 4294901760
          %3193 = vmatpush1.msra.mxu0 %v3192
          %v3194 = vand.u32 %v2624, 4294901760
          %3195 = vmatprep.subr.mxu0 %v3194
          %v3196 = vand.u32 %v2623, 4294901760
          %3197 = vmatpush1.msra.mxu0 %v3196
          %3198 = vmatprep.subr.mxu0 0.0
          %3199 = vmatpush1.msra.mxu0 0.0
          %3200 = vmatprep.subr.mxu0 0.0
          %3201 = vmatpush1.msra.mxu0 0.0
          %3202 = vmatprep.subr.mxu0 0.0
          %3203 = vmatpush1.msra.mxu0 0.0
          %3204 = vmatprep.subr.mxu0 0.0
          %3205 = vmatpush1.msra.mxu0 0.0
          %3206 = vmatprep.subr.mxu0 0.0
          %3207 = vmatpush1.msra.mxu0 0.0
          %3208 = vmatprep.subr.mxu0 0.0
          %3209 = vmatpush1.msra.mxu0 0.0
          %3210 = vmatprep.subr.mxu0 0.0
          %3211 = vmatpush1.msra.mxu0 0.0
          %3212 = vmatprep.subr.mxu0 0.0
          %3213 = vmatpush1.msra.mxu0 0.0
          %3214 = vmatprep.subr.mxu0 0.0
          %3215 = vmatpush1.msra.mxu0 0.0
          %3216 = vmatprep.subr.mxu0 0.0
          %3217 = vmatpush1.msra.mxu0 0.0
          %3218 = vmatprep.subr.mxu0 0.0
          %3219 = vmatpush1.msra.mxu0 0.0
          %3220 = vmatprep.subr.mxu0 0.0
          %3221 = vmatpush1.msra.mxu0 0.0
          %3222 = vmatprep.subr.mxu0 0.0
          %3223 = vmatpush1.msra.mxu0 0.0
          %3224 = vmatprep.subr.mxu0 0.0
          %3225 = vmatpush1.msra.mxu0 0.0
          %3226 = vmatprep.subr.mxu0 0.0
          %3227 = vmatpush1.msra.mxu0 0.0
          %3228 = vmatprep.subr.mxu0 0.0
          %3229 = vmatpush1.msra.mxu0 0.0
          %3230 = vmatprep.mubr.f32.mxu0 0.0
          %v3231 = vand.u32 %v2641, 4294901760
          %v3232 = vsub.f32 %v2641, %v3231
          %v3233 = vand.u32 %v3232, 4294901760
          %3234 = vmatmul.mubr.f32.gmra.mrb[0].mxu0 %v3233
          %v3235 = vpop.f32.mrb[0].mxu0
          %v3236 = vadd.f32 %v3130, %v3235
          %v3237 = vpop.f32.mrb[0].mxu0
          %v3238 = vadd.f32 %v3132, %v3237
          %3239 = vdwg.mxu0
          %v3240 = vand.u32 %v2594, 4294901760
          %v3241 = vsub.f32 %v2594, %v3240
          %v3242 = vand.u32 %v3241, 4294901760
          %3243 = vmatprep.subr.mxu0 %v3242
          %v3244 = vand.u32 %v2593, 4294901760
          %v3245 = vsub.f32 %v2593, %v3244
          %v3246 = vand.u32 %v3245, 4294901760
          %3247 = vmatpush1.msra.mxu0 %v3246
          %v3248 = vand.u32 %v2596, 4294901760
          %v3249 = vsub.f32 %v2596, %v3248
          %v3250 = vand.u32 %v3249, 4294901760
          %3251 = vmatprep.subr.mxu0 %v3250
          %v3252 = vand.u32 %v2595, 4294901760
          %v3253 = vsub.f32 %v2595, %v3252
          %v3254 = vand.u32 %v3253, 4294901760
          %3255 = vmatpush1.msra.mxu0 %v3254
          %v3256 = vand.u32 %v2598, 4294901760
          %v3257 = vsub.f32 %v2598, %v3256
          %v3258 = vand.u32 %v3257, 4294901760
          %3259 = vmatprep.subr.mxu0 %v3258
          %v3260 = vand.u32 %v2597, 4294901760
          %v3261 = vsub.f32 %v2597, %v3260
          %v3262 = vand.u32 %v3261, 4294901760
          %3263 = vmatpush1.msra.mxu0 %v3262
          %v3264 = vand.u32 %v2600, 4294901760
          %v3265 = vsub.f32 %v2600, %v3264
          %v3266 = vand.u32 %v3265, 4294901760
          %3267 = vmatprep.subr.mxu0 %v3266
          %v3268 = vand.u32 %v2599, 4294901760
          %v3269 = vsub.f32 %v2599, %v3268
          %v3270 = vand.u32 %v3269, 4294901760
          %3271 = vmatpush1.msra.mxu0 %v3270
          %v3272 = vand.u32 %v2602, 4294901760
          %v3273 = vsub.f32 %v2602, %v3272
          %v3274 = vand.u32 %v3273, 4294901760
          %3275 = vmatprep.subr.mxu0 %v3274
          %v3276 = vand.u32 %v2601, 4294901760
          %v3277 = vsub.f32 %v2601, %v3276
          %v3278 = vand.u32 %v3277, 4294901760
          %3279 = vmatpush1.msra.mxu0 %v3278
          %v3280 = vand.u32 %v2604, 4294901760
          %v3281 = vsub.f32 %v2604, %v3280
          %v3282 = vand.u32 %v3281, 4294901760
          %3283 = vmatprep.subr.mxu0 %v3282
          %v3284 = vand.u32 %v2603, 4294901760
          %v3285 = vsub.f32 %v2603, %v3284
          %v3286 = vand.u32 %v3285, 4294901760
          %3287 = vmatpush1.msra.mxu0 %v3286
          %v3288 = vand.u32 %v2606, 4294901760
          %v3289 = vsub.f32 %v2606, %v3288
          %v3290 = vand.u32 %v3289, 4294901760
          %3291 = vmatprep.subr.mxu0 %v3290
          %v3292 = vand.u32 %v2605, 4294901760
          %v3293 = vsub.f32 %v2605, %v3292
          %v3294 = vand.u32 %v3293, 4294901760
          %3295 = vmatpush1.msra.mxu0 %v3294
          %v3296 = vand.u32 %v2608, 4294901760
          %v3297 = vsub.f32 %v2608, %v3296
          %v3298 = vand.u32 %v3297, 4294901760
          %3299 = vmatprep.subr.mxu0 %v3298
          %v3300 = vand.u32 %v2607, 4294901760
          %v3301 = vsub.f32 %v2607, %v3300
          %v3302 = vand.u32 %v3301, 4294901760
          %3303 = vmatpush1.msra.mxu0 %v3302
          %v3304 = vand.u32 %v2610, 4294901760
          %v3305 = vsub.f32 %v2610, %v3304
          %v3306 = vand.u32 %v3305, 4294901760
          %3307 = vmatprep.subr.mxu0 %v3306
          %v3308 = vand.u32 %v2609, 4294901760
          %v3309 = vsub.f32 %v2609, %v3308
          %v3310 = vand.u32 %v3309, 4294901760
          %3311 = vmatpush1.msra.mxu0 %v3310
          %v3312 = vand.u32 %v2612, 4294901760
          %v3313 = vsub.f32 %v2612, %v3312
          %v3314 = vand.u32 %v3313, 4294901760
          %3315 = vmatprep.subr.mxu0 %v3314
          %v3316 = vand.u32 %v2611, 4294901760
          %v3317 = vsub.f32 %v2611, %v3316
          %v3318 = vand.u32 %v3317, 4294901760
          %3319 = vmatpush1.msra.mxu0 %v3318
          %v3320 = vand.u32 %v2614, 4294901760
          %v3321 = vsub.f32 %v2614, %v3320
          %v3322 = vand.u32 %v3321, 4294901760
          %3323 = vmatprep.subr.mxu0 %v3322
          %v3324 = vand.u32 %v2613, 4294901760
          %v3325 = vsub.f32 %v2613, %v3324
          %v3326 = vand.u32 %v3325, 4294901760
          %3327 = vmatpush1.msra.mxu0 %v3326
          %v3328 = vand.u32 %v2616, 4294901760
          %v3329 = vsub.f32 %v2616, %v3328
          %v3330 = vand.u32 %v3329, 4294901760
          %3331 = vmatprep.subr.mxu0 %v3330
          %v3332 = vand.u32 %v2615, 4294901760
          %v3333 = vsub.f32 %v2615, %v3332
          %v3334 = vand.u32 %v3333, 4294901760
          %3335 = vmatpush1.msra.mxu0 %v3334
          %v3336 = vand.u32 %v2618, 4294901760
          %v3337 = vsub.f32 %v2618, %v3336
          %v3338 = vand.u32 %v3337, 4294901760
          %3339 = vmatprep.subr.mxu0 %v3338
          %v3340 = vand.u32 %v2617, 4294901760
          %v3341 = vsub.f32 %v2617, %v3340
          %v3342 = vand.u32 %v3341, 4294901760
          %3343 = vmatpush1.msra.mxu0 %v3342
          %v3344 = vand.u32 %v2620, 4294901760
          %v3345 = vsub.f32 %v2620, %v3344
          %v3346 = vand.u32 %v3345, 4294901760
          %3347 = vmatprep.subr.mxu0 %v3346
          %v3348 = vand.u32 %v2619, 4294901760
          %v3349 = vsub.f32 %v2619, %v3348
          %v3350 = vand.u32 %v3349, 4294901760
          %3351 = vmatpush1.msra.mxu0 %v3350
          %v3352 = vand.u32 %v2622, 4294901760
          %v3353 = vsub.f32 %v2622, %v3352
          %v3354 = vand.u32 %v3353, 4294901760
          %3355 = vmatprep.subr.mxu0 %v3354
          %v3356 = vand.u32 %v2621, 4294901760
          %v3357 = vsub.f32 %v2621, %v3356
          %v3358 = vand.u32 %v3357, 4294901760
          %3359 = vmatpush1.msra.mxu0 %v3358
          %v3360 = vand.u32 %v2624, 4294901760
          %v3361 = vsub.f32 %v2624, %v3360
          %v3362 = vand.u32 %v3361, 4294901760
          %3363 = vmatprep.subr.mxu0 %v3362
          %v3364 = vand.u32 %v2623, 4294901760
          %v3365 = vsub.f32 %v2623, %v3364
          %v3366 = vand.u32 %v3365, 4294901760
          %3367 = vmatpush1.msra.mxu0 %v3366
          %3368 = vmatprep.subr.mxu0 0.0
          %3369 = vmatpush1.msra.mxu0 0.0
          %3370 = vmatprep.subr.mxu0 0.0
          %3371 = vmatpush1.msra.mxu0 0.0
          %3372 = vmatprep.subr.mxu0 0.0
          %3373 = vmatpush1.msra.mxu0 0.0
          %3374 = vmatprep.subr.mxu0 0.0
          %3375 = vmatpush1.msra.mxu0 0.0
          %3376 = vmatprep.subr.mxu0 0.0
          %3377 = vmatpush1.msra.mxu0 0.0
          %3378 = vmatprep.subr.mxu0 0.0
          %3379 = vmatpush1.msra.mxu0 0.0
          %3380 = vmatprep.subr.mxu0 0.0
          %3381 = vmatpush1.msra.mxu0 0.0
          %3382 = vmatprep.subr.mxu0 0.0
          %3383 = vmatpush1.msra.mxu0 0.0
          %3384 = vmatprep.subr.mxu0 0.0
          %3385 = vmatpush1.msra.mxu0 0.0
          %3386 = vmatprep.subr.mxu0 0.0
          %3387 = vmatpush1.msra.mxu0 0.0
          %3388 = vmatprep.subr.mxu0 0.0
          %3389 = vmatpush1.msra.mxu0 0.0
          %3390 = vmatprep.subr.mxu0 0.0
          %3391 = vmatpush1.msra.mxu0 0.0
          %3392 = vmatprep.subr.mxu0 0.0
          %3393 = vmatpush1.msra.mxu0 0.0
          %3394 = vmatprep.subr.mxu0 0.0
          %3395 = vmatpush1.msra.mxu0 0.0
          %3396 = vmatprep.subr.mxu0 0.0
          %3397 = vmatpush1.msra.mxu0 0.0
          %3398 = vmatprep.subr.mxu0 0.0
          %3399 = vmatpush1.msra.mxu0 0.0
          %3400 = vmatprep.mubr.f32.mxu0 0.0
          %v3401 = vand.u32 %v2641, 4294901760
          %3402 = vmatmul.mubr.f32.gmra.mrb[0].mxu0 %v3401
          %v3403 = vpop.f32.mrb[0].mxu0
          %v3404 = vadd.f32 %v3236, %v3403
          %v3405 = vpop.f32.mrb[0].mxu0
          %v3406 = vadd.f32 %v3238, %v3405
          %3407 = vdwg.mxu0
          %v3408 = vand.u32 %v2594, 4294901760
          %3409 = vmatprep.subr.mxu0 %v3408
          %v3410 = vand.u32 %v2593, 4294901760
          %3411 = vmatpush1.msra.mxu0 %v3410
          %v3412 = vand.u32 %v2596, 4294901760
          %3413 = vmatprep.subr.mxu0 %v3412
          %v3414 = vand.u32 %v2595, 4294901760
          %3415 = vmatpush1.msra.mxu0 %v3414
          %v3416 = vand.u32 %v2598, 4294901760
          %3417 = vmatprep.subr.mxu0 %v3416
          %v3418 = vand.u32 %v2597, 4294901760
          %3419 = vmatpush1.msra.mxu0 %v3418
          %v3420 = vand.u32 %v2600, 4294901760
          %3421 = vmatprep.subr.mxu0 %v3420
          %v3422 = vand.u32 %v2599, 4294901760
          %3423 = vmatpush1.msra.mxu0 %v3422
          %v3424 = vand.u32 %v2602, 4294901760
          %3425 = vmatprep.subr.mxu0 %v3424
          %v3426 = vand.u32 %v2601, 4294901760
          %3427 = vmatpush1.msra.mxu0 %v3426
          %v3428 = vand.u32 %v2604, 4294901760
          %3429 = vmatprep.subr.mxu0 %v3428
          %v3430 = vand.u32 %v2603, 4294901760
          %3431 = vmatpush1.msra.mxu0 %v3430
          %v3432 = vand.u32 %v2606, 4294901760
          %3433 = vmatprep.subr.mxu0 %v3432
          %v3434 = vand.u32 %v2605, 4294901760
          %3435 = vmatpush1.msra.mxu0 %v3434
          %v3436 = vand.u32 %v2608, 4294901760
          %3437 = vmatprep.subr.mxu0 %v3436
          %v3438 = vand.u32 %v2607, 4294901760
          %3439 = vmatpush1.msra.mxu0 %v3438
          %v3440 = vand.u32 %v2610, 4294901760
          %3441 = vmatprep.subr.mxu0 %v3440
          %v3442 = vand.u32 %v2609, 4294901760
          %3443 = vmatpush1.msra.mxu0 %v3442
          %v3444 = vand.u32 %v2612, 4294901760
          %3445 = vmatprep.subr.mxu0 %v3444
          %v3446 = vand.u32 %v2611, 4294901760
          %3447 = vmatpush1.msra.mxu0 %v3446
          %v3448 = vand.u32 %v2614, 4294901760
          %3449 = vmatprep.subr.mxu0 %v3448
          %v3450 = vand.u32 %v2613, 4294901760
          %3451 = vmatpush1.msra.mxu0 %v3450
          %v3452 = vand.u32 %v2616, 4294901760
          %3453 = vmatprep.subr.mxu0 %v3452
          %v3454 = vand.u32 %v2615, 4294901760
          %3455 = vmatpush1.msra.mxu0 %v3454
          %v3456 = vand.u32 %v2618, 4294901760
          %3457 = vmatprep.subr.mxu0 %v3456
          %v3458 = vand.u32 %v2617, 4294901760
          %3459 = vmatpush1.msra.mxu0 %v3458
          %v3460 = vand.u32 %v2620, 4294901760
          %3461 = vmatprep.subr.mxu0 %v3460
          %v3462 = vand.u32 %v2619, 4294901760
          %3463 = vmatpush1.msra.mxu0 %v3462
          %v3464 = vand.u32 %v2622, 4294901760
          %3465 = vmatprep.subr.mxu0 %v3464
          %v3466 = vand.u32 %v2621, 4294901760
          %3467 = vmatpush1.msra.mxu0 %v3466
          %v3468 = vand.u32 %v2624, 4294901760
          %3469 = vmatprep.subr.mxu0 %v3468
          %v3470 = vand.u32 %v2623, 4294901760
          %3471 = vmatpush1.msra.mxu0 %v3470
          %3472 = vmatprep.subr.mxu0 0.0
          %3473 = vmatpush1.msra.mxu0 0.0
          %3474 = vmatprep.subr.mxu0 0.0
          %3475 = vmatpush1.msra.mxu0 0.0
          %3476 = vmatprep.subr.mxu0 0.0
          %3477 = vmatpush1.msra.mxu0 0.0
          %3478 = vmatprep.subr.mxu0 0.0
          %3479 = vmatpush1.msra.mxu0 0.0
          %3480 = vmatprep.subr.mxu0 0.0
          %3481 = vmatpush1.msra.mxu0 0.0
          %3482 = vmatprep.subr.mxu0 0.0
          %3483 = vmatpush1.msra.mxu0 0.0
          %3484 = vmatprep.subr.mxu0 0.0
          %3485 = vmatpush1.msra.mxu0 0.0
          %3486 = vmatprep.subr.mxu0 0.0
          %3487 = vmatpush1.msra.mxu0 0.0
          %3488 = vmatprep.subr.mxu0 0.0
          %3489 = vmatpush1.msra.mxu0 0.0
          %3490 = vmatprep.subr.mxu0 0.0
          %3491 = vmatpush1.msra.mxu0 0.0
          %3492 = vmatprep.subr.mxu0 0.0
          %3493 = vmatpush1.msra.mxu0 0.0
          %3494 = vmatprep.subr.mxu0 0.0
          %3495 = vmatpush1.msra.mxu0 0.0
          %3496 = vmatprep.subr.mxu0 0.0
          %3497 = vmatpush1.msra.mxu0 0.0
          %3498 = vmatprep.subr.mxu0 0.0
          %3499 = vmatpush1.msra.mxu0 0.0
          %3500 = vmatprep.subr.mxu0 0.0
          %3501 = vmatpush1.msra.mxu0 0.0
          %3502 = vmatprep.subr.mxu0 0.0
          %3503 = vmatpush1.msra.mxu0 0.0
          %3504 = vmatprep.mubr.f32.mxu0 0.0
          %v3505 = vand.u32 %v2641, 4294901760
          %3506 = vmatmul.mubr.f32.gmra.mrb[0].mxu0 %v3505
          %v3507 = vpop.f32.mrb[0].mxu0
          %v3508 = vadd.f32 %v3404, %v3507
          %v3509 = vpop.f32.mrb[0].mxu0
          %v3510 = vadd.f32 %v3406, %v3509
          %3511 = vdwg.mxu0
          %v3512 = vld [vmem:[%s209] sm:$0xff]
          %v3513 = vld [vmem:[%s209 + $0x8] sm:$0xff]
          %v3514 = vadd.f32 %v3512, %v3508
          %v3515 = vadd.f32 %v3513, %v3510
          %3516 = vst [vmem:[%s209] sm:$0xff] %v3514
          %3517 = vst [vmem:[%s209 + $0x8] sm:$0xff] %v3515
        $region40: #{tpu_custom_call.1} parent=27 // pred_fallthru
          _
        %p3518 = scmp.le.s32.totalorder %s234, 3
        %p3519 = scmp.gt.s32.totalorder %s235, 3
        %p3520 = pnand %p3518, %p3519
        %p3521 = pneg %p3520
        // Predicated region
        $region41: #{tpu_custom_call.1} parent=27 // pred_check
          _
        $region42: #{tpu_custom_call.1} parent=27 // pred_check_branch
          %3523 = sbr.rel (%p3520) target = $region44
        $region43: #{tpu_custom_call.1} parent=27 // pred_region
          %v3524 = vld [vmem:[%s227 + $0x80] sm:$0xff]
          %v3525 = vld [vmem:[%s227 + $0x88] sm:$0xff]
          %v3526 = vld [vmem:[%s227 + $0x90] sm:$0xff]
          %v3527 = vld [vmem:[%s227 + $0x98] sm:$0xff]
          %v3528 = vld [vmem:[%s227 + $0xa0] sm:$0xff]
          %v3529 = vld [vmem:[%s227 + $0xa8] sm:$0xff]
          %v3530 = vld [vmem:[%s227 + $0xb0] sm:$0xff]
          %v3531 = vld [vmem:[%s227 + $0xb8] sm:$0xff]
          %v3532 = vld [vmem:[%s227 + $0xc0] sm:$0xff]
          %v3533 = vld [vmem:[%s227 + $0xc8] sm:$0xff]
          %v3534 = vld [vmem:[%s227 + $0xd0] sm:$0xff]
          %v3535 = vld [vmem:[%s227 + $0xd8] sm:$0xff]
          %v3536 = vld [vmem:[%s227 + $0xe0] sm:$0xff]
          %v3537 = vld [vmem:[%s227 + $0xe8] sm:$0xff]
          %v3538 = vld [vmem:[%s227 + $0xf0] sm:$0xff]
          %v3539 = vld [vmem:[%s227 + $0xf8] sm:$0xff]
          %v3556 = vstv %s236
          %v3557 = vsub.s32 %v3524, %v3556
          %v3558 = vsub.s32 %v3525, %v3556
          %v3559 = vsub.s32 %v3526, %v3556
          %v3560 = vsub.s32 %v3527, %v3556
          %v3561 = vsub.s32 %v3528, %v3556
          %v3562 = vsub.s32 %v3529, %v3556
          %v3563 = vsub.s32 %v3530, %v3556
          %v3564 = vsub.s32 %v3531, %v3556
          %v3565 = vsub.s32 %v3532, %v3556
          %v3566 = vsub.s32 %v3533, %v3556
          %v3567 = vsub.s32 %v3534, %v3556
          %v3568 = vsub.s32 %v3535, %v3556
          %v3569 = vsub.s32 %v3536, %v3556
          %v3570 = vsub.s32 %v3537, %v3556
          %v3571 = vsub.s32 %v3538, %v3556
          %v3572 = vsub.s32 %v3539, %v3556
          %3573 = vset.pattern.permute.xlu0 7
          %3574 = vperm.xlu0 %3573, %v3557
          %v3575 = vpop.permute.xlu0 %3574
          %3576 = vset.pattern.permute.xlu0 7
          %3577 = vperm.xlu0 %3576, %v3558
          %v3578 = vpop.permute.xlu0 %3577
          %3579 = vset.pattern.permute.xlu0 7
          %3580 = vperm.xlu0 %3579, %v3559
          %v3581 = vpop.permute.xlu0 %3580
          %3582 = vset.pattern.permute.xlu0 7
          %3583 = vperm.xlu0 %3582, %v3560
          %v3584 = vpop.permute.xlu0 %3583
          %3585 = vset.pattern.permute.xlu0 7
          %3586 = vperm.xlu0 %3585, %v3561
          %v3587 = vpop.permute.xlu0 %3586
          %3588 = vset.pattern.permute.xlu0 7
          %3589 = vperm.xlu0 %3588, %v3562
          %v3590 = vpop.permute.xlu0 %3589
          %3591 = vset.pattern.permute.xlu0 7
          %3592 = vperm.xlu0 %3591, %v3563
          %v3593 = vpop.permute.xlu0 %3592
          %3594 = vset.pattern.permute.xlu0 7
          %3595 = vperm.xlu0 %3594, %v3564
          %v3596 = vpop.permute.xlu0 %3595
          %3597 = vset.pattern.permute.xlu0 7
          %3598 = vperm.xlu0 %3597, %v3565
          %v3599 = vpop.permute.xlu0 %3598
          %3600 = vset.pattern.permute.xlu0 7
          %3601 = vperm.xlu0 %3600, %v3566
          %v3602 = vpop.permute.xlu0 %3601
          %3603 = vset.pattern.permute.xlu0 7
          %3604 = vperm.xlu0 %3603, %v3567
          %v3605 = vpop.permute.xlu0 %3604
          %3606 = vset.pattern.permute.xlu0 7
          %3607 = vperm.xlu0 %3606, %v3568
          %v3608 = vpop.permute.xlu0 %3607
          %3609 = vset.pattern.permute.xlu0 7
          %3610 = vperm.xlu0 %3609, %v3569
          %v3611 = vpop.permute.xlu0 %3610
          %3612 = vset.pattern.permute.xlu0 7
          %3613 = vperm.xlu0 %3612, %v3570
          %v3614 = vpop.permute.xlu0 %3613
          %3615 = vset.pattern.permute.xlu0 7
          %3616 = vperm.xlu0 %3615, %v3571
          %v3617 = vpop.permute.xlu0 %3616
          %3618 = vset.pattern.permute.xlu0 7
          %3619 = vperm.xlu0 %3618, %v3572
          %v3620 = vpop.permute.xlu0 %3619
          %vm3621 = vcmp.eq.s32.totalorder %v3575, %v238
          %vm3622 = vcmp.eq.s32.totalorder %v3575, %v239
          %vm3623 = vcmp.eq.s32.totalorder %v3578, %v238
          %vm3624 = vcmp.eq.s32.totalorder %v3578, %v239
          %vm3625 = vcmp.eq.s32.totalorder %v3581, %v238
          %vm3626 = vcmp.eq.s32.totalorder %v3581, %v239
          %vm3627 = vcmp.eq.s32.totalorder %v3584, %v238
          %vm3628 = vcmp.eq.s32.totalorder %v3584, %v239
          %vm3629 = vcmp.eq.s32.totalorder %v3587, %v238
          %vm3630 = vcmp.eq.s32.totalorder %v3587, %v239
          %vm3631 = vcmp.eq.s32.totalorder %v3590, %v238
          %vm3632 = vcmp.eq.s32.totalorder %v3590, %v239
          %vm3633 = vcmp.eq.s32.totalorder %v3593, %v238
          %vm3634 = vcmp.eq.s32.totalorder %v3593, %v239
          %vm3635 = vcmp.eq.s32.totalorder %v3596, %v238
          %vm3636 = vcmp.eq.s32.totalorder %v3596, %v239
          %vm3637 = vcmp.eq.s32.totalorder %v3599, %v238
          %vm3638 = vcmp.eq.s32.totalorder %v3599, %v239
          %vm3639 = vcmp.eq.s32.totalorder %v3602, %v238
          %vm3640 = vcmp.eq.s32.totalorder %v3602, %v239
          %vm3641 = vcmp.eq.s32.totalorder %v3605, %v238
          %vm3642 = vcmp.eq.s32.totalorder %v3605, %v239
          %vm3643 = vcmp.eq.s32.totalorder %v3608, %v238
          %vm3644 = vcmp.eq.s32.totalorder %v3608, %v239
          %vm3645 = vcmp.eq.s32.totalorder %v3611, %v238
          %vm3646 = vcmp.eq.s32.totalorder %v3611, %v239
          %vm3647 = vcmp.eq.s32.totalorder %v3614, %v238
          %vm3648 = vcmp.eq.s32.totalorder %v3614, %v239
          %vm3649 = vcmp.eq.s32.totalorder %v3617, %v238
          %vm3650 = vcmp.eq.s32.totalorder %v3617, %v239
          %vm3651 = vcmp.eq.s32.totalorder %v3620, %v238
          %vm3652 = vcmp.eq.s32.totalorder %v3620, %v239
          %v3653 = vsel %vm3621, 1, 0
          %v3654 = vsel %vm3622, 1, 0
          %v3655 = vsel %vm3623, 1, 0
          %v3656 = vsel %vm3624, 1, 0
          %v3657 = vsel %vm3625, 1, 0
          %v3658 = vsel %vm3626, 1, 0
          %v3659 = vsel %vm3627, 1, 0
          %v3660 = vsel %vm3628, 1, 0
          %v3661 = vsel %vm3629, 1, 0
          %v3662 = vsel %vm3630, 1, 0
          %v3663 = vsel %vm3631, 1, 0
          %v3664 = vsel %vm3632, 1, 0
          %v3665 = vsel %vm3633, 1, 0
          %v3666 = vsel %vm3634, 1, 0
          %v3667 = vsel %vm3635, 1, 0
          %v3668 = vsel %vm3636, 1, 0
          %v3669 = vsel %vm3637, 1, 0
          %v3670 = vsel %vm3638, 1, 0
          %v3671 = vsel %vm3639, 1, 0
          %v3672 = vsel %vm3640, 1, 0
          %v3673 = vsel %vm3641, 1, 0
          %v3674 = vsel %vm3642, 1, 0
          %v3675 = vsel %vm3643, 1, 0
          %v3676 = vsel %vm3644, 1, 0
          %v3677 = vsel %vm3645, 1, 0
          %v3678 = vsel %vm3646, 1, 0
          %v3679 = vsel %vm3647, 1, 0
          %v3680 = vsel %vm3648, 1, 0
          %v3681 = vsel %vm3649, 1, 0
          %v3682 = vsel %vm3650, 1, 0
          %v3683 = vsel %vm3651, 1, 0
          %v3684 = vsel %vm3652, 1, 0
          %v3685 = vcvt.s32.f32 %v3653
          %v3686 = vcvt.s32.f32 %v3654
          %v3687 = vcvt.s32.f32 %v3655
          %v3688 = vcvt.s32.f32 %v3656
          %v3689 = vcvt.s32.f32 %v3657
          %v3690 = vcvt.s32.f32 %v3658
          %v3691 = vcvt.s32.f32 %v3659
          %v3692 = vcvt.s32.f32 %v3660
          %v3693 = vcvt.s32.f32 %v3661
          %v3694 = vcvt.s32.f32 %v3662
          %v3695 = vcvt.s32.f32 %v3663
          %v3696 = vcvt.s32.f32 %v3664
          %v3697 = vcvt.s32.f32 %v3665
          %v3698 = vcvt.s32.f32 %v3666
          %v3699 = vcvt.s32.f32 %v3667
          %v3700 = vcvt.s32.f32 %v3668
          %v3701 = vcvt.s32.f32 %v3669
          %v3702 = vcvt.s32.f32 %v3670
          %v3703 = vcvt.s32.f32 %v3671
          %v3704 = vcvt.s32.f32 %v3672
          %v3705 = vcvt.s32.f32 %v3673
          %v3706 = vcvt.s32.f32 %v3674
          %v3707 = vcvt.s32.f32 %v3675
          %v3708 = vcvt.s32.f32 %v3676
          %v3709 = vcvt.s32.f32 %v3677
          %v3710 = vcvt.s32.f32 %v3678
          %v3711 = vcvt.s32.f32 %v3679
          %v3712 = vcvt.s32.f32 %v3680
          %v3713 = vcvt.s32.f32 %v3681
          %v3714 = vcvt.s32.f32 %v3682
          %v3715 = vcvt.s32.f32 %v3683
          %v3716 = vcvt.s32.f32 %v3684
          %3717 = vxpose.xlu0.b32.start [1/16] %v3524, 128
          %3718 = vxpose.xlu0.b32.cont [2/16] %v3525, 128
          %3719 = vxpose.xlu0.b32.cont [3/16] %v3526, 128
          %3720 = vxpose.xlu0.b32.cont [4/16] %v3527, 128
          %3721 = vxpose.xlu0.b32.cont [5/16] %v3528, 128
          %3722 = vxpose.xlu0.b32.cont [6/16] %v3529, 128
          %3723 = vxpose.xlu0.b32.cont [7/16] %v3530, 128
          %3724 = vxpose.xlu0.b32.cont [8/16] %v3531, 128
          %3725 = vxpose.xlu0.b32.cont [9/16] %v3532, 128
          %3726 = vxpose.xlu0.b32.cont [10/16] %v3533, 128
          %3727 = vxpose.xlu0.b32.cont [11/16] %v3534, 128
          %3728 = vxpose.xlu0.b32.cont [12/16] %v3535, 128
          %3729 = vxpose.xlu0.b32.cont [13/16] %v3536, 128
          %3730 = vxpose.xlu0.b32.cont [14/16] %v3537, 128
          %3731 = vxpose.xlu0.b32.cont [15/16] %v3538, 128
          %3732 = vxpose.xlu0.b32.end [16/16] %v3539, 128
          %v3733 = vpop.trf.xlu0
          %v3734 = vpop.trf.xlu0
          %v3735 = vpop.trf.xlu0
          %v3736 = vpop.trf.xlu0
          %v3737 = vpop.trf.xlu0
          %v3738 = vpop.trf.xlu0
          %v3739 = vpop.trf.xlu0
          %v3740 = vpop.trf.xlu0
          %v3741 = vpop.trf.xlu0
          %v3742 = vpop.trf.xlu0
          %v3743 = vpop.trf.xlu0
          %v3744 = vpop.trf.xlu0
          %v3745 = vpop.trf.xlu0
          %v3746 = vpop.trf.xlu0
          %v3747 = vpop.trf.xlu0
          %v3748 = vpop.trf.xlu0
          %v3749 = vand.u32 %v3686, 4294901760
          %3750 = vmatprep.subr.mxu0 %v3749
          %v3751 = vand.u32 %v3685, 4294901760
          %3752 = vmatpush1.msra.mxu0 %v3751
          %v3753 = vand.u32 %v3688, 4294901760
          %3754 = vmatprep.subr.mxu0 %v3753
          %v3755 = vand.u32 %v3687, 4294901760
          %3756 = vmatpush1.msra.mxu0 %v3755
          %v3757 = vand.u32 %v3690, 4294901760
          %3758 = vmatprep.subr.mxu0 %v3757
          %v3759 = vand.u32 %v3689, 4294901760
          %3760 = vmatpush1.msra.mxu0 %v3759
          %v3761 = vand.u32 %v3692, 4294901760
          %3762 = vmatprep.subr.mxu0 %v3761
          %v3763 = vand.u32 %v3691, 4294901760
          %3764 = vmatpush1.msra.mxu0 %v3763
          %v3765 = vand.u32 %v3694, 4294901760
          %3766 = vmatprep.subr.mxu0 %v3765
          %v3767 = vand.u32 %v3693, 4294901760
          %3768 = vmatpush1.msra.mxu0 %v3767
          %v3769 = vand.u32 %v3696, 4294901760
          %3770 = vmatprep.subr.mxu0 %v3769
          %v3771 = vand.u32 %v3695, 4294901760
          %3772 = vmatpush1.msra.mxu0 %v3771
          %v3773 = vand.u32 %v3698, 4294901760
          %3774 = vmatprep.subr.mxu0 %v3773
          %v3775 = vand.u32 %v3697, 4294901760
          %3776 = vmatpush1.msra.mxu0 %v3775
          %v3777 = vand.u32 %v3700, 4294901760
          %3778 = vmatprep.subr.mxu0 %v3777
          %v3779 = vand.u32 %v3699, 4294901760
          %3780 = vmatpush1.msra.mxu0 %v3779
          %v3781 = vand.u32 %v3702, 4294901760
          %3782 = vmatprep.subr.mxu0 %v3781
          %v3783 = vand.u32 %v3701, 4294901760
          %3784 = vmatpush1.msra.mxu0 %v3783
          %v3785 = vand.u32 %v3704, 4294901760
          %3786 = vmatprep.subr.mxu0 %v3785
          %v3787 = vand.u32 %v3703, 4294901760
          %3788 = vmatpush1.msra.mxu0 %v3787
          %v3789 = vand.u32 %v3706, 4294901760
          %3790 = vmatprep.subr.mxu0 %v3789
          %v3791 = vand.u32 %v3705, 4294901760
          %3792 = vmatpush1.msra.mxu0 %v3791
          %v3793 = vand.u32 %v3708, 4294901760
          %3794 = vmatprep.subr.mxu0 %v3793
          %v3795 = vand.u32 %v3707, 4294901760
          %3796 = vmatpush1.msra.mxu0 %v3795
          %v3797 = vand.u32 %v3710, 4294901760
          %3798 = vmatprep.subr.mxu0 %v3797
          %v3799 = vand.u32 %v3709, 4294901760
          %3800 = vmatpush1.msra.mxu0 %v3799
          %v3801 = vand.u32 %v3712, 4294901760
          %3802 = vmatprep.subr.mxu0 %v3801
          %v3803 = vand.u32 %v3711, 4294901760
          %3804 = vmatpush1.msra.mxu0 %v3803
          %v3805 = vand.u32 %v3714, 4294901760
          %3806 = vmatprep.subr.mxu0 %v3805
          %v3807 = vand.u32 %v3713, 4294901760
          %3808 = vmatpush1.msra.mxu0 %v3807
          %v3809 = vand.u32 %v3716, 4294901760
          %3810 = vmatprep.subr.mxu0 %v3809
          %v3811 = vand.u32 %v3715, 4294901760
          %3812 = vmatpush1.msra.mxu0 %v3811
          %3813 = vmatprep.subr.mxu0 0.0
          %3814 = vmatpush1.msra.mxu0 0.0
          %3815 = vmatprep.subr.mxu0 0.0
          %3816 = vmatpush1.msra.mxu0 0.0
          %3817 = vmatprep.subr.mxu0 0.0
          %3818 = vmatpush1.msra.mxu0 0.0
          %3819 = vmatprep.subr.mxu0 0.0
          %3820 = vmatpush1.msra.mxu0 0.0
          %3821 = vmatprep.subr.mxu0 0.0
          %3822 = vmatpush1.msra.mxu0 0.0
          %3823 = vmatprep.subr.mxu0 0.0
          %3824 = vmatpush1.msra.mxu0 0.0
          %3825 = vmatprep.subr.mxu0 0.0
          %3826 = vmatpush1.msra.mxu0 0.0
          %3827 = vmatprep.subr.mxu0 0.0
          %3828 = vmatpush1.msra.mxu0 0.0
          %3829 = vmatprep.subr.mxu0 0.0
          %3830 = vmatpush1.msra.mxu0 0.0
          %3831 = vmatprep.subr.mxu0 0.0
          %3832 = vmatpush1.msra.mxu0 0.0
          %3833 = vmatprep.subr.mxu0 0.0
          %3834 = vmatpush1.msra.mxu0 0.0
          %3835 = vmatprep.subr.mxu0 0.0
          %3836 = vmatpush1.msra.mxu0 0.0
          %3837 = vmatprep.subr.mxu0 0.0
          %3838 = vmatpush1.msra.mxu0 0.0
          %3839 = vmatprep.subr.mxu0 0.0
          %3840 = vmatpush1.msra.mxu0 0.0
          %3841 = vmatprep.subr.mxu0 0.0
          %3842 = vmatpush1.msra.mxu0 0.0
          %3843 = vmatprep.subr.mxu0 0.0
          %3844 = vmatpush1.msra.mxu0 0.0
          %3845 = vmatprep.mubr.f32.mxu0 0.0
          %v3846 = vand.u32 %v3733, 4294901760
          %v3847 = vsub.f32 %v3733, %v3846
          %v3848 = vand.u32 %v3847, 4294901760
          %v3849 = vsub.f32 %v3847, %v3848
          %v3850 = vand.u32 %v3849, 4294901760
          %3851 = vmatmul.mubr.f32.gmra.mrb[0].mxu0 %v3850
          %v3852 = vpop.f32.mrb[0].mxu0
          %v3853 = vadd.f32 0.0, %v3852
          %v3854 = vpop.f32.mrb[0].mxu0
          %v3855 = vadd.f32 0.0, %v3854
          %3856 = vdwg.mxu0
          %v3857 = vand.u32 %v3686, 4294901760
          %v3858 = vsub.f32 %v3686, %v3857
          %v3859 = vand.u32 %v3858, 4294901760
          %v3860 = vsub.f32 %v3858, %v3859
          %v3861 = vand.u32 %v3860, 4294901760
          %3862 = vmatprep.subr.mxu0 %v3861
          %v3863 = vand.u32 %v3685, 4294901760
          %v3864 = vsub.f32 %v3685, %v3863
          %v3865 = vand.u32 %v3864, 4294901760
          %v3866 = vsub.f32 %v3864, %v3865
          %v3867 = vand.u32 %v3866, 4294901760
          %3868 = vmatpush1.msra.mxu0 %v3867
          %v3869 = vand.u32 %v3688, 4294901760
          %v3870 = vsub.f32 %v3688, %v3869
          %v3871 = vand.u32 %v3870, 4294901760
          %v3872 = vsub.f32 %v3870, %v3871
          %v3873 = vand.u32 %v3872, 4294901760
          %3874 = vmatprep.subr.mxu0 %v3873
          %v3875 = vand.u32 %v3687, 4294901760
          %v3876 = vsub.f32 %v3687, %v3875
          %v3877 = vand.u32 %v3876, 4294901760
          %v3878 = vsub.f32 %v3876, %v3877
          %v3879 = vand.u32 %v3878, 4294901760
          %3880 = vmatpush1.msra.mxu0 %v3879
          %v3881 = vand.u32 %v3690, 4294901760
          %v3882 = vsub.f32 %v3690, %v3881
          %v3883 = vand.u32 %v3882, 4294901760
          %v3884 = vsub.f32 %v3882, %v3883
          %v3885 = vand.u32 %v3884, 4294901760
          %3886 = vmatprep.subr.mxu0 %v3885
          %v3887 = vand.u32 %v3689, 4294901760
          %v3888 = vsub.f32 %v3689, %v3887
          %v3889 = vand.u32 %v3888, 4294901760
          %v3890 = vsub.f32 %v3888, %v3889
          %v3891 = vand.u32 %v3890, 4294901760
          %3892 = vmatpush1.msra.mxu0 %v3891
          %v3893 = vand.u32 %v3692, 4294901760
          %v3894 = vsub.f32 %v3692, %v3893
          %v3895 = vand.u32 %v3894, 4294901760
          %v3896 = vsub.f32 %v3894, %v3895
          %v3897 = vand.u32 %v3896, 4294901760
          %3898 = vmatprep.subr.mxu0 %v3897
          %v3899 = vand.u32 %v3691, 4294901760
          %v3900 = vsub.f32 %v3691, %v3899
          %v3901 = vand.u32 %v3900, 4294901760
          %v3902 = vsub.f32 %v3900, %v3901
          %v3903 = vand.u32 %v3902, 4294901760
          %3904 = vmatpush1.msra.mxu0 %v3903
          %v3905 = vand.u32 %v3694, 4294901760
          %v3906 = vsub.f32 %v3694, %v3905
          %v3907 = vand.u32 %v3906, 4294901760
          %v3908 = vsub.f32 %v3906, %v3907
          %v3909 = vand.u32 %v3908, 4294901760
          %3910 = vmatprep.subr.mxu0 %v3909
          %v3911 = vand.u32 %v3693, 4294901760
          %v3912 = vsub.f32 %v3693, %v3911
          %v3913 = vand.u32 %v3912, 4294901760
          %v3914 = vsub.f32 %v3912, %v3913
          %v3915 = vand.u32 %v3914, 4294901760
          %3916 = vmatpush1.msra.mxu0 %v3915
          %v3917 = vand.u32 %v3696, 4294901760
          %v3918 = vsub.f32 %v3696, %v3917
          %v3919 = vand.u32 %v3918, 4294901760
          %v3920 = vsub.f32 %v3918, %v3919
          %v3921 = vand.u32 %v3920, 4294901760
          %3922 = vmatprep.subr.mxu0 %v3921
          %v3923 = vand.u32 %v3695, 4294901760
          %v3924 = vsub.f32 %v3695, %v3923
          %v3925 = vand.u32 %v3924, 4294901760
          %v3926 = vsub.f32 %v3924, %v3925
          %v3927 = vand.u32 %v3926, 4294901760
          %3928 = vmatpush1.msra.mxu0 %v3927
          %v3929 = vand.u32 %v3698, 4294901760
          %v3930 = vsub.f32 %v3698, %v3929
          %v3931 = vand.u32 %v3930, 4294901760
          %v3932 = vsub.f32 %v3930, %v3931
          %v3933 = vand.u32 %v3932, 4294901760
          %3934 = vmatprep.subr.mxu0 %v3933
          %v3935 = vand.u32 %v3697, 4294901760
          %v3936 = vsub.f32 %v3697, %v3935
          %v3937 = vand.u32 %v3936, 4294901760
          %v3938 = vsub.f32 %v3936, %v3937
          %v3939 = vand.u32 %v3938, 4294901760
          %3940 = vmatpush1.msra.mxu0 %v3939
          %v3941 = vand.u32 %v3700, 4294901760
          %v3942 = vsub.f32 %v3700, %v3941
          %v3943 = vand.u32 %v3942, 4294901760
          %v3944 = vsub.f32 %v3942, %v3943
          %v3945 = vand.u32 %v3944, 4294901760
          %3946 = vmatprep.subr.mxu0 %v3945
          %v3947 = vand.u32 %v3699, 4294901760
          %v3948 = vsub.f32 %v3699, %v3947
          %v3949 = vand.u32 %v3948, 4294901760
          %v3950 = vsub.f32 %v3948, %v3949
          %v3951 = vand.u32 %v3950, 4294901760
          %3952 = vmatpush1.msra.mxu0 %v3951
          %v3953 = vand.u32 %v3702, 4294901760
          %v3954 = vsub.f32 %v3702, %v3953
          %v3955 = vand.u32 %v3954, 4294901760
          %v3956 = vsub.f32 %v3954, %v3955
          %v3957 = vand.u32 %v3956, 4294901760
          %3958 = vmatprep.subr.mxu0 %v3957
          %v3959 = vand.u32 %v3701, 4294901760
          %v3960 = vsub.f32 %v3701, %v3959
          %v3961 = vand.u32 %v3960, 4294901760
          %v3962 = vsub.f32 %v3960, %v3961
          %v3963 = vand.u32 %v3962, 4294901760
          %3964 = vmatpush1.msra.mxu0 %v3963
          %v3965 = vand.u32 %v3704, 4294901760
          %v3966 = vsub.f32 %v3704, %v3965
          %v3967 = vand.u32 %v3966, 4294901760
          %v3968 = vsub.f32 %v3966, %v3967
          %v3969 = vand.u32 %v3968, 4294901760
          %3970 = vmatprep.subr.mxu0 %v3969
          %v3971 = vand.u32 %v3703, 4294901760
          %v3972 = vsub.f32 %v3703, %v3971
          %v3973 = vand.u32 %v3972, 4294901760
          %v3974 = vsub.f32 %v3972, %v3973
          %v3975 = vand.u32 %v3974, 4294901760
          %3976 = vmatpush1.msra.mxu0 %v3975
          %v3977 = vand.u32 %v3706, 4294901760
          %v3978 = vsub.f32 %v3706, %v3977
          %v3979 = vand.u32 %v3978, 4294901760
          %v3980 = vsub.f32 %v3978, %v3979
          %v3981 = vand.u32 %v3980, 4294901760
          %3982 = vmatprep.subr.mxu0 %v3981
          %v3983 = vand.u32 %v3705, 4294901760
          %v3984 = vsub.f32 %v3705, %v3983
          %v3985 = vand.u32 %v3984, 4294901760
          %v3986 = vsub.f32 %v3984, %v3985
          %v3987 = vand.u32 %v3986, 4294901760
          %3988 = vmatpush1.msra.mxu0 %v3987
          %v3989 = vand.u32 %v3708, 4294901760
          %v3990 = vsub.f32 %v3708, %v3989
          %v3991 = vand.u32 %v3990, 4294901760
          %v3992 = vsub.f32 %v3990, %v3991
          %v3993 = vand.u32 %v3992, 4294901760
          %3994 = vmatprep.subr.mxu0 %v3993
          %v3995 = vand.u32 %v3707, 4294901760
          %v3996 = vsub.f32 %v3707, %v3995
          %v3997 = vand.u32 %v3996, 4294901760
          %v3998 = vsub.f32 %v3996, %v3997
          %v3999 = vand.u32 %v3998, 4294901760
          %4000 = vmatpush1.msra.mxu0 %v3999
          %v4001 = vand.u32 %v3710, 4294901760
          %v4002 = vsub.f32 %v3710, %v4001
          %v4003 = vand.u32 %v4002, 4294901760
          %v4004 = vsub.f32 %v4002, %v4003
          %v4005 = vand.u32 %v4004, 4294901760
          %4006 = vmatprep.subr.mxu0 %v4005
          %v4007 = vand.u32 %v3709, 4294901760
          %v4008 = vsub.f32 %v3709, %v4007
          %v4009 = vand.u32 %v4008, 4294901760
          %v4010 = vsub.f32 %v4008, %v4009
          %v4011 = vand.u32 %v4010, 4294901760
          %4012 = vmatpush1.msra.mxu0 %v4011
          %v4013 = vand.u32 %v3712, 4294901760
          %v4014 = vsub.f32 %v3712, %v4013
          %v4015 = vand.u32 %v4014, 4294901760
          %v4016 = vsub.f32 %v4014, %v4015
          %v4017 = vand.u32 %v4016, 4294901760
          %4018 = vmatprep.subr.mxu0 %v4017
          %v4019 = vand.u32 %v3711, 4294901760
          %v4020 = vsub.f32 %v3711, %v4019
          %v4021 = vand.u32 %v4020, 4294901760
          %v4022 = vsub.f32 %v4020, %v4021
          %v4023 = vand.u32 %v4022, 4294901760
          %4024 = vmatpush1.msra.mxu0 %v4023
          %v4025 = vand.u32 %v3714, 4294901760
          %v4026 = vsub.f32 %v3714, %v4025
          %v4027 = vand.u32 %v4026, 4294901760
          %v4028 = vsub.f32 %v4026, %v4027
          %v4029 = vand.u32 %v4028, 4294901760
          %4030 = vmatprep.subr.mxu0 %v4029
          %v4031 = vand.u32 %v3713, 4294901760
          %v4032 = vsub.f32 %v3713, %v4031
          %v4033 = vand.u32 %v4032, 4294901760
          %v4034 = vsub.f32 %v4032, %v4033
          %v4035 = vand.u32 %v4034, 4294901760
          %4036 = vmatpush1.msra.mxu0 %v4035
          %v4037 = vand.u32 %v3716, 4294901760
          %v4038 = vsub.f32 %v3716, %v4037
          %v4039 = vand.u32 %v4038, 4294901760
          %v4040 = vsub.f32 %v4038, %v4039
          %v4041 = vand.u32 %v4040, 4294901760
          %4042 = vmatprep.subr.mxu0 %v4041
          %v4043 = vand.u32 %v3715, 4294901760
          %v4044 = vsub.f32 %v3715, %v4043
          %v4045 = vand.u32 %v4044, 4294901760
          %v4046 = vsub.f32 %v4044, %v4045
          %v4047 = vand.u32 %v4046, 4294901760
          %4048 = vmatpush1.msra.mxu0 %v4047
          %4049 = vmatprep.subr.mxu0 0.0
          %4050 = vmatpush1.msra.mxu0 0.0
          %4051 = vmatprep.subr.mxu0 0.0
          %4052 = vmatpush1.msra.mxu0 0.0
          %4053 = vmatprep.subr.mxu0 0.0
          %4054 = vmatpush1.msra.mxu0 0.0
          %4055 = vmatprep.subr.mxu0 0.0
          %4056 = vmatpush1.msra.mxu0 0.0
          %4057 = vmatprep.subr.mxu0 0.0
          %4058 = vmatpush1.msra.mxu0 0.0
          %4059 = vmatprep.subr.mxu0 0.0
          %4060 = vmatpush1.msra.mxu0 0.0
          %4061 = vmatprep.subr.mxu0 0.0
          %4062 = vmatpush1.msra.mxu0 0.0
          %4063 = vmatprep.subr.mxu0 0.0
          %4064 = vmatpush1.msra.mxu0 0.0
          %4065 = vmatprep.subr.mxu0 0.0
          %4066 = vmatpush1.msra.mxu0 0.0
          %4067 = vmatprep.subr.mxu0 0.0
          %4068 = vmatpush1.msra.mxu0 0.0
          %4069 = vmatprep.subr.mxu0 0.0
          %4070 = vmatpush1.msra.mxu0 0.0
          %4071 = vmatprep.subr.mxu0 0.0
          %4072 = vmatpush1.msra.mxu0 0.0
          %4073 = vmatprep.subr.mxu0 0.0
          %4074 = vmatpush1.msra.mxu0 0.0
          %4075 = vmatprep.subr.mxu0 0.0
          %4076 = vmatpush1.msra.mxu0 0.0
          %4077 = vmatprep.subr.mxu0 0.0
          %4078 = vmatpush1.msra.mxu0 0.0
          %4079 = vmatprep.subr.mxu0 0.0
          %4080 = vmatpush1.msra.mxu0 0.0
          %4081 = vmatprep.mubr.f32.mxu0 0.0
          %v4082 = vand.u32 %v3733, 4294901760
          %4083 = vmatmul.mubr.f32.gmra.mrb[0].mxu0 %v4082
          %v4084 = vpop.f32.mrb[0].mxu0
          %v4085 = vadd.f32 %v3853, %v4084
          %v4086 = vpop.f32.mrb[0].mxu0
          %v4087 = vadd.f32 %v3855, %v4086
          %4088 = vdwg.mxu0
          %v4089 = vand.u32 %v3686, 4294901760
          %v4090 = vsub.f32 %v3686, %v4089
          %4091 = vmatprep.subr.mxu0 %v4090
          %v4092 = vand.u32 %v3685, 4294901760
          %v4093 = vsub.f32 %v3685, %v4092
          %4094 = vmatpush1.msra.mxu0 %v4093
          %v4095 = vand.u32 %v3688, 4294901760
          %v4096 = vsub.f32 %v3688, %v4095
          %4097 = vmatprep.subr.mxu0 %v4096
          %v4098 = vand.u32 %v3687, 4294901760
          %v4099 = vsub.f32 %v3687, %v4098
          %4100 = vmatpush1.msra.mxu0 %v4099
          %v4101 = vand.u32 %v3690, 4294901760
          %v4102 = vsub.f32 %v3690, %v4101
          %4103 = vmatprep.subr.mxu0 %v4102
          %v4104 = vand.u32 %v3689, 4294901760
          %v4105 = vsub.f32 %v3689, %v4104
          %4106 = vmatpush1.msra.mxu0 %v4105
          %v4107 = vand.u32 %v3692, 4294901760
          %v4108 = vsub.f32 %v3692, %v4107
          %4109 = vmatprep.subr.mxu0 %v4108
          %v4110 = vand.u32 %v3691, 4294901760
          %v4111 = vsub.f32 %v3691, %v4110
          %4112 = vmatpush1.msra.mxu0 %v4111
          %v4113 = vand.u32 %v3694, 4294901760
          %v4114 = vsub.f32 %v3694, %v4113
          %4115 = vmatprep.subr.mxu0 %v4114
          %v4116 = vand.u32 %v3693, 4294901760
          %v4117 = vsub.f32 %v3693, %v4116
          %4118 = vmatpush1.msra.mxu0 %v4117
          %v4119 = vand.u32 %v3696, 4294901760
          %v4120 = vsub.f32 %v3696, %v4119
          %4121 = vmatprep.subr.mxu0 %v4120
          %v4122 = vand.u32 %v3695, 4294901760
          %v4123 = vsub.f32 %v3695, %v4122
          %4124 = vmatpush1.msra.mxu0 %v4123
          %v4125 = vand.u32 %v3698, 4294901760
          %v4126 = vsub.f32 %v3698, %v4125
          %4127 = vmatprep.subr.mxu0 %v4126
          %v4128 = vand.u32 %v3697, 4294901760
          %v4129 = vsub.f32 %v3697, %v4128
          %4130 = vmatpush1.msra.mxu0 %v4129
          %v4131 = vand.u32 %v3700, 4294901760
          %v4132 = vsub.f32 %v3700, %v4131
          %4133 = vmatprep.subr.mxu0 %v4132
          %v4134 = vand.u32 %v3699, 4294901760
          %v4135 = vsub.f32 %v3699, %v4134
          %4136 = vmatpush1.msra.mxu0 %v4135
          %v4137 = vand.u32 %v3702, 4294901760
          %v4138 = vsub.f32 %v3702, %v4137
          %4139 = vmatprep.subr.mxu0 %v4138
          %v4140 = vand.u32 %v3701, 4294901760
          %v4141 = vsub.f32 %v3701, %v4140
          %4142 = vmatpush1.msra.mxu0 %v4141
          %v4143 = vand.u32 %v3704, 4294901760
          %v4144 = vsub.f32 %v3704, %v4143
          %4145 = vmatprep.subr.mxu0 %v4144
          %v4146 = vand.u32 %v3703, 4294901760
          %v4147 = vsub.f32 %v3703, %v4146
          %4148 = vmatpush1.msra.mxu0 %v4147
          %v4149 = vand.u32 %v3706, 4294901760
          %v4150 = vsub.f32 %v3706, %v4149
          %4151 = vmatprep.subr.mxu0 %v4150
          %v4152 = vand.u32 %v3705, 4294901760
          %v4153 = vsub.f32 %v3705, %v4152
          %4154 = vmatpush1.msra.mxu0 %v4153
          %v4155 = vand.u32 %v3708, 4294901760
          %v4156 = vsub.f32 %v3708, %v4155
          %4157 = vmatprep.subr.mxu0 %v4156
          %v4158 = vand.u32 %v3707, 4294901760
          %v4159 = vsub.f32 %v3707, %v4158
          %4160 = vmatpush1.msra.mxu0 %v4159
          %v4161 = vand.u32 %v3710, 4294901760
          %v4162 = vsub.f32 %v3710, %v4161
          %4163 = vmatprep.subr.mxu0 %v4162
          %v4164 = vand.u32 %v3709, 4294901760
          %v4165 = vsub.f32 %v3709, %v4164
          %4166 = vmatpush1.msra.mxu0 %v4165
          %v4167 = vand.u32 %v3712, 4294901760
          %v4168 = vsub.f32 %v3712, %v4167
          %4169 = vmatprep.subr.mxu0 %v4168
          %v4170 = vand.u32 %v3711, 4294901760
          %v4171 = vsub.f32 %v3711, %v4170
          %4172 = vmatpush1.msra.mxu0 %v4171
          %v4173 = vand.u32 %v3714, 4294901760
          %v4174 = vsub.f32 %v3714, %v4173
          %4175 = vmatprep.subr.mxu0 %v4174
          %v4176 = vand.u32 %v3713, 4294901760
          %v4177 = vsub.f32 %v3713, %v4176
          %4178 = vmatpush1.msra.mxu0 %v4177
          %v4179 = vand.u32 %v3716, 4294901760
          %v4180 = vsub.f32 %v3716, %v4179
          %4181 = vmatprep.subr.mxu0 %v4180
          %v4182 = vand.u32 %v3715, 4294901760
          %v4183 = vsub.f32 %v3715, %v4182
          %4184 = vmatpush1.msra.mxu0 %v4183
          %4185 = vmatprep.subr.mxu0 0.0
          %4186 = vmatpush1.msra.mxu0 0.0
          %4187 = vmatprep.subr.mxu0 0.0
          %4188 = vmatpush1.msra.mxu0 0.0
          %4189 = vmatprep.subr.mxu0 0.0
          %4190 = vmatpush1.msra.mxu0 0.0
          %4191 = vmatprep.subr.mxu0 0.0
          %4192 = vmatpush1.msra.mxu0 0.0
          %4193 = vmatprep.subr.mxu0 0.0
          %4194 = vmatpush1.msra.mxu0 0.0
          %4195 = vmatprep.subr.mxu0 0.0
          %4196 = vmatpush1.msra.mxu0 0.0
          %4197 = vmatprep.subr.mxu0 0.0
          %4198 = vmatpush1.msra.mxu0 0.0
          %4199 = vmatprep.subr.mxu0 0.0
          %4200 = vmatpush1.msra.mxu0 0.0
          %4201 = vmatprep.subr.mxu0 0.0
          %4202 = vmatpush1.msra.mxu0 0.0
          %4203 = vmatprep.subr.mxu0 0.0
          %4204 = vmatpush1.msra.mxu0 0.0
          %4205 = vmatprep.subr.mxu0 0.0
          %4206 = vmatpush1.msra.mxu0 0.0
          %4207 = vmatprep.subr.mxu0 0.0
          %4208 = vmatpush1.msra.mxu0 0.0
          %4209 = vmatprep.subr.mxu0 0.0
          %4210 = vmatpush1.msra.mxu0 0.0
          %4211 = vmatprep.subr.mxu0 0.0
          %4212 = vmatpush1.msra.mxu0 0.0
          %4213 = vmatprep.subr.mxu0 0.0
          %4214 = vmatpush1.msra.mxu0 0.0
          %4215 = vmatprep.subr.mxu0 0.0
          %4216 = vmatpush1.msra.mxu0 0.0
          %4217 = vmatprep.mubr.f32.mxu0 0.0
          %v4218 = vand.u32 %v3733, 4294901760
          %v4219 = vsub.f32 %v3733, %v4218
          %4220 = vmatmul.mubr.f32.gmra.mrb[0].mxu0 %v4219
          %v4221 = vpop.f32.mrb[0].mxu0
          %v4222 = vadd.f32 %v4085, %v4221
          %v4223 = vpop.f32.mrb[0].mxu0
          %v4224 = vadd.f32 %v4087, %v4223
          %4225 = vdwg.mxu0
          %v4226 = vand.u32 %v3686, 4294901760
          %4227 = vmatprep.subr.mxu0 %v4226
          %v4228 = vand.u32 %v3685, 4294901760
          %4229 = vmatpush1.msra.mxu0 %v4228
          %v4230 = vand.u32 %v3688, 4294901760
          %4231 = vmatprep.subr.mxu0 %v4230
          %v4232 = vand.u32 %v3687, 4294901760
          %4233 = vmatpush1.msra.mxu0 %v4232
          %v4234 = vand.u32 %v3690, 4294901760
          %4235 = vmatprep.subr.mxu0 %v4234
          %v4236 = vand.u32 %v3689, 4294901760
          %4237 = vmatpush1.msra.mxu0 %v4236
          %v4238 = vand.u32 %v3692, 4294901760
          %4239 = vmatprep.subr.mxu0 %v4238
          %v4240 = vand.u32 %v3691, 4294901760
          %4241 = vmatpush1.msra.mxu0 %v4240
          %v4242 = vand.u32 %v3694, 4294901760
          %4243 = vmatprep.subr.mxu0 %v4242
          %v4244 = vand.u32 %v3693, 4294901760
          %4245 = vmatpush1.msra.mxu0 %v4244
          %v4246 = vand.u32 %v3696, 4294901760
          %4247 = vmatprep.subr.mxu0 %v4246
          %v4248 = vand.u32 %v3695, 4294901760
          %4249 = vmatpush1.msra.mxu0 %v4248
          %v4250 = vand.u32 %v3698, 4294901760
          %4251 = vmatprep.subr.mxu0 %v4250
          %v4252 = vand.u32 %v3697, 4294901760
          %4253 = vmatpush1.msra.mxu0 %v4252
          %v4254 = vand.u32 %v3700, 4294901760
          %4255 = vmatprep.subr.mxu0 %v4254
          %v4256 = vand.u32 %v3699, 4294901760
          %4257 = vmatpush1.msra.mxu0 %v4256
          %v4258 = vand.u32 %v3702, 4294901760
          %4259 = vmatprep.subr.mxu0 %v4258
          %v4260 = vand.u32 %v3701, 4294901760
          %4261 = vmatpush1.msra.mxu0 %v4260
          %v4262 = vand.u32 %v3704, 4294901760
          %4263 = vmatprep.subr.mxu0 %v4262
          %v4264 = vand.u32 %v3703, 4294901760
          %4265 = vmatpush1.msra.mxu0 %v4264
          %v4266 = vand.u32 %v3706, 4294901760
          %4267 = vmatprep.subr.mxu0 %v4266
          %v4268 = vand.u32 %v3705, 4294901760
          %4269 = vmatpush1.msra.mxu0 %v4268
          %v4270 = vand.u32 %v3708, 4294901760
          %4271 = vmatprep.subr.mxu0 %v4270
          %v4272 = vand.u32 %v3707, 4294901760
          %4273 = vmatpush1.msra.mxu0 %v4272
          %v4274 = vand.u32 %v3710, 4294901760
          %4275 = vmatprep.subr.mxu0 %v4274
          %v4276 = vand.u32 %v3709, 4294901760
          %4277 = vmatpush1.msra.mxu0 %v4276
          %v4278 = vand.u32 %v3712, 4294901760
          %4279 = vmatprep.subr.mxu0 %v4278
          %v4280 = vand.u32 %v3711, 4294901760
          %4281 = vmatpush1.msra.mxu0 %v4280
          %v4282 = vand.u32 %v3714, 4294901760
          %4283 = vmatprep.subr.mxu0 %v4282
          %v4284 = vand.u32 %v3713, 4294901760
          %4285 = vmatpush1.msra.mxu0 %v4284
          %v4286 = vand.u32 %v3716, 4294901760
          %4287 = vmatprep.subr.mxu0 %v4286
          %v4288 = vand.u32 %v3715, 4294901760
          %4289 = vmatpush1.msra.mxu0 %v4288
          %4290 = vmatprep.subr.mxu0 0.0
          %4291 = vmatpush1.msra.mxu0 0.0
          %4292 = vmatprep.subr.mxu0 0.0
          %4293 = vmatpush1.msra.mxu0 0.0
          %4294 = vmatprep.subr.mxu0 0.0
          %4295 = vmatpush1.msra.mxu0 0.0
          %4296 = vmatprep.subr.mxu0 0.0
          %4297 = vmatpush1.msra.mxu0 0.0
          %4298 = vmatprep.subr.mxu0 0.0
          %4299 = vmatpush1.msra.mxu0 0.0
          %4300 = vmatprep.subr.mxu0 0.0
          %4301 = vmatpush1.msra.mxu0 0.0
          %4302 = vmatprep.subr.mxu0 0.0
          %4303 = vmatpush1.msra.mxu0 0.0
          %4304 = vmatprep.subr.mxu0 0.0
          %4305 = vmatpush1.msra.mxu0 0.0
          %4306 = vmatprep.subr.mxu0 0.0
          %4307 = vmatpush1.msra.mxu0 0.0
          %4308 = vmatprep.subr.mxu0 0.0
          %4309 = vmatpush1.msra.mxu0 0.0
          %4310 = vmatprep.subr.mxu0 0.0
          %4311 = vmatpush1.msra.mxu0 0.0
          %4312 = vmatprep.subr.mxu0 0.0
          %4313 = vmatpush1.msra.mxu0 0.0
          %4314 = vmatprep.subr.mxu0 0.0
          %4315 = vmatpush1.msra.mxu0 0.0
          %4316 = vmatprep.subr.mxu0 0.0
          %4317 = vmatpush1.msra.mxu0 0.0
          %4318 = vmatprep.subr.mxu0 0.0
          %4319 = vmatpush1.msra.mxu0 0.0
          %4320 = vmatprep.subr.mxu0 0.0
          %4321 = vmatpush1.msra.mxu0 0.0
          %4322 = vmatprep.mubr.f32.mxu0 0.0
          %v4323 = vand.u32 %v3733, 4294901760
          %v4324 = vsub.f32 %v3733, %v4323
          %v4325 = vand.u32 %v4324, 4294901760
          %4326 = vmatmul.mubr.f32.gmra.mrb[0].mxu0 %v4325
          %v4327 = vpop.f32.mrb[0].mxu0
          %v4328 = vadd.f32 %v4222, %v4327
          %v4329 = vpop.f32.mrb[0].mxu0
          %v4330 = vadd.f32 %v4224, %v4329
          %4331 = vdwg.mxu0
          %v4332 = vand.u32 %v3686, 4294901760
          %v4333 = vsub.f32 %v3686, %v4332
          %v4334 = vand.u32 %v4333, 4294901760
          %4335 = vmatprep.subr.mxu0 %v4334
          %v4336 = vand.u32 %v3685, 4294901760
          %v4337 = vsub.f32 %v3685, %v4336
          %v4338 = vand.u32 %v4337, 4294901760
          %4339 = vmatpush1.msra.mxu0 %v4338
          %v4340 = vand.u32 %v3688, 4294901760
          %v4341 = vsub.f32 %v3688, %v4340
          %v4342 = vand.u32 %v4341, 4294901760
          %4343 = vmatprep.subr.mxu0 %v4342
          %v4344 = vand.u32 %v3687, 4294901760
          %v4345 = vsub.f32 %v3687, %v4344
          %v4346 = vand.u32 %v4345, 4294901760
          %4347 = vmatpush1.msra.mxu0 %v4346
          %v4348 = vand.u32 %v3690, 4294901760
          %v4349 = vsub.f32 %v3690, %v4348
          %v4350 = vand.u32 %v4349, 4294901760
          %4351 = vmatprep.subr.mxu0 %v4350
          %v4352 = vand.u32 %v3689, 4294901760
          %v4353 = vsub.f32 %v3689, %v4352
          %v4354 = vand.u32 %v4353, 4294901760
          %4355 = vmatpush1.msra.mxu0 %v4354
          %v4356 = vand.u32 %v3692, 4294901760
          %v4357 = vsub.f32 %v3692, %v4356
          %v4358 = vand.u32 %v4357, 4294901760
          %4359 = vmatprep.subr.mxu0 %v4358
          %v4360 = vand.u32 %v3691, 4294901760
          %v4361 = vsub.f32 %v3691, %v4360
          %v4362 = vand.u32 %v4361, 4294901760
          %4363 = vmatpush1.msra.mxu0 %v4362
          %v4364 = vand.u32 %v3694, 4294901760
          %v4365 = vsub.f32 %v3694, %v4364
          %v4366 = vand.u32 %v4365, 4294901760
          %4367 = vmatprep.subr.mxu0 %v4366
          %v4368 = vand.u32 %v3693, 4294901760
          %v4369 = vsub.f32 %v3693, %v4368
          %v4370 = vand.u32 %v4369, 4294901760
          %4371 = vmatpush1.msra.mxu0 %v4370
          %v4372 = vand.u32 %v3696, 4294901760
          %v4373 = vsub.f32 %v3696, %v4372
          %v4374 = vand.u32 %v4373, 4294901760
          %4375 = vmatprep.subr.mxu0 %v4374
          %v4376 = vand.u32 %v3695, 4294901760
          %v4377 = vsub.f32 %v3695, %v4376
          %v4378 = vand.u32 %v4377, 4294901760
          %4379 = vmatpush1.msra.mxu0 %v4378
          %v4380 = vand.u32 %v3698, 4294901760
          %v4381 = vsub.f32 %v3698, %v4380
          %v4382 = vand.u32 %v4381, 4294901760
          %4383 = vmatprep.subr.mxu0 %v4382
          %v4384 = vand.u32 %v3697, 4294901760
          %v4385 = vsub.f32 %v3697, %v4384
          %v4386 = vand.u32 %v4385, 4294901760
          %4387 = vmatpush1.msra.mxu0 %v4386
          %v4388 = vand.u32 %v3700, 4294901760
          %v4389 = vsub.f32 %v3700, %v4388
          %v4390 = vand.u32 %v4389, 4294901760
          %4391 = vmatprep.subr.mxu0 %v4390
          %v4392 = vand.u32 %v3699, 4294901760
          %v4393 = vsub.f32 %v3699, %v4392
          %v4394 = vand.u32 %v4393, 4294901760
          %4395 = vmatpush1.msra.mxu0 %v4394
          %v4396 = vand.u32 %v3702, 4294901760
          %v4397 = vsub.f32 %v3702, %v4396
          %v4398 = vand.u32 %v4397, 4294901760
          %4399 = vmatprep.subr.mxu0 %v4398
          %v4400 = vand.u32 %v3701, 4294901760
          %v4401 = vsub.f32 %v3701, %v4400
          %v4402 = vand.u32 %v4401, 4294901760
          %4403 = vmatpush1.msra.mxu0 %v4402
          %v4404 = vand.u32 %v3704, 4294901760
          %v4405 = vsub.f32 %v3704, %v4404
          %v4406 = vand.u32 %v4405, 4294901760
          %4407 = vmatprep.subr.mxu0 %v4406
          %v4408 = vand.u32 %v3703, 4294901760
          %v4409 = vsub.f32 %v3703, %v4408
          %v4410 = vand.u32 %v4409, 4294901760
          %4411 = vmatpush1.msra.mxu0 %v4410
          %v4412 = vand.u32 %v3706, 4294901760
          %v4413 = vsub.f32 %v3706, %v4412
          %v4414 = vand.u32 %v4413, 4294901760
          %4415 = vmatprep.subr.mxu0 %v4414
          %v4416 = vand.u32 %v3705, 4294901760
          %v4417 = vsub.f32 %v3705, %v4416
          %v4418 = vand.u32 %v4417, 4294901760
          %4419 = vmatpush1.msra.mxu0 %v4418
          %v4420 = vand.u32 %v3708, 4294901760
          %v4421 = vsub.f32 %v3708, %v4420
          %v4422 = vand.u32 %v4421, 4294901760
          %4423 = vmatprep.subr.mxu0 %v4422
          %v4424 = vand.u32 %v3707, 4294901760
          %v4425 = vsub.f32 %v3707, %v4424
          %v4426 = vand.u32 %v4425, 4294901760
          %4427 = vmatpush1.msra.mxu0 %v4426
          %v4428 = vand.u32 %v3710, 4294901760
          %v4429 = vsub.f32 %v3710, %v4428
          %v4430 = vand.u32 %v4429, 4294901760
          %4431 = vmatprep.subr.mxu0 %v4430
          %v4432 = vand.u32 %v3709, 4294901760
          %v4433 = vsub.f32 %v3709, %v4432
          %v4434 = vand.u32 %v4433, 4294901760
          %4435 = vmatpush1.msra.mxu0 %v4434
          %v4436 = vand.u32 %v3712, 4294901760
          %v4437 = vsub.f32 %v3712, %v4436
          %v4438 = vand.u32 %v4437, 4294901760
          %4439 = vmatprep.subr.mxu0 %v4438
          %v4440 = vand.u32 %v3711, 4294901760
          %v4441 = vsub.f32 %v3711, %v4440
          %v4442 = vand.u32 %v4441, 4294901760
          %4443 = vmatpush1.msra.mxu0 %v4442
          %v4444 = vand.u32 %v3714, 4294901760
          %v4445 = vsub.f32 %v3714, %v4444
          %v4446 = vand.u32 %v4445, 4294901760
          %4447 = vmatprep.subr.mxu0 %v4446
          %v4448 = vand.u32 %v3713, 4294901760
          %v4449 = vsub.f32 %v3713, %v4448
          %v4450 = vand.u32 %v4449, 4294901760
          %4451 = vmatpush1.msra.mxu0 %v4450
          %v4452 = vand.u32 %v3716, 4294901760
          %v4453 = vsub.f32 %v3716, %v4452
          %v4454 = vand.u32 %v4453, 4294901760
          %4455 = vmatprep.subr.mxu0 %v4454
          %v4456 = vand.u32 %v3715, 4294901760
          %v4457 = vsub.f32 %v3715, %v4456
          %v4458 = vand.u32 %v4457, 4294901760
          %4459 = vmatpush1.msra.mxu0 %v4458
          %4460 = vmatprep.subr.mxu0 0.0
          %4461 = vmatpush1.msra.mxu0 0.0
          %4462 = vmatprep.subr.mxu0 0.0
          %4463 = vmatpush1.msra.mxu0 0.0
          %4464 = vmatprep.subr.mxu0 0.0
          %4465 = vmatpush1.msra.mxu0 0.0
          %4466 = vmatprep.subr.mxu0 0.0
          %4467 = vmatpush1.msra.mxu0 0.0
          %4468 = vmatprep.subr.mxu0 0.0
          %4469 = vmatpush1.msra.mxu0 0.0
          %4470 = vmatprep.subr.mxu0 0.0
          %4471 = vmatpush1.msra.mxu0 0.0
          %4472 = vmatprep.subr.mxu0 0.0
          %4473 = vmatpush1.msra.mxu0 0.0
          %4474 = vmatprep.subr.mxu0 0.0
          %4475 = vmatpush1.msra.mxu0 0.0
          %4476 = vmatprep.subr.mxu0 0.0
          %4477 = vmatpush1.msra.mxu0 0.0
          %4478 = vmatprep.subr.mxu0 0.0
          %4479 = vmatpush1.msra.mxu0 0.0
          %4480 = vmatprep.subr.mxu0 0.0
          %4481 = vmatpush1.msra.mxu0 0.0
          %4482 = vmatprep.subr.mxu0 0.0
          %4483 = vmatpush1.msra.mxu0 0.0
          %4484 = vmatprep.subr.mxu0 0.0
          %4485 = vmatpush1.msra.mxu0 0.0
          %4486 = vmatprep.subr.mxu0 0.0
          %4487 = vmatpush1.msra.mxu0 0.0
          %4488 = vmatprep.subr.mxu0 0.0
          %4489 = vmatpush1.msra.mxu0 0.0
          %4490 = vmatprep.subr.mxu0 0.0
          %4491 = vmatpush1.msra.mxu0 0.0
          %4492 = vmatprep.mubr.f32.mxu0 0.0
          %v4493 = vand.u32 %v3733, 4294901760
          %4494 = vmatmul.mubr.f32.gmra.mrb[0].mxu0 %v4493
          %v4495 = vpop.f32.mrb[0].mxu0
          %v4496 = vadd.f32 %v4328, %v4495
          %v4497 = vpop.f32.mrb[0].mxu0
          %v4498 = vadd.f32 %v4330, %v4497
          %4499 = vdwg.mxu0
          %v4500 = vand.u32 %v3686, 4294901760
          %4501 = vmatprep.subr.mxu0 %v4500
          %v4502 = vand.u32 %v3685, 4294901760
          %4503 = vmatpush1.msra.mxu0 %v4502
          %v4504 = vand.u32 %v3688, 4294901760
          %4505 = vmatprep.subr.mxu0 %v4504
          %v4506 = vand.u32 %v3687, 4294901760
          %4507 = vmatpush1.msra.mxu0 %v4506
          %v4508 = vand.u32 %v3690, 4294901760
          %4509 = vmatprep.subr.mxu0 %v4508
          %v4510 = vand.u32 %v3689, 4294901760
          %4511 = vmatpush1.msra.mxu0 %v4510
          %v4512 = vand.u32 %v3692, 4294901760
          %4513 = vmatprep.subr.mxu0 %v4512
          %v4514 = vand.u32 %v3691, 4294901760
          %4515 = vmatpush1.msra.mxu0 %v4514
          %v4516 = vand.u32 %v3694, 4294901760
          %4517 = vmatprep.subr.mxu0 %v4516
          %v4518 = vand.u32 %v3693, 4294901760
          %4519 = vmatpush1.msra.mxu0 %v4518
          %v4520 = vand.u32 %v3696, 4294901760
          %4521 = vmatprep.subr.mxu0 %v4520
          %v4522 = vand.u32 %v3695, 4294901760
          %4523 = vmatpush1.msra.mxu0 %v4522
          %v4524 = vand.u32 %v3698, 4294901760
          %4525 = vmatprep.subr.mxu0 %v4524
          %v4526 = vand.u32 %v3697, 4294901760
          %4527 = vmatpush1.msra.mxu0 %v4526
          %v4528 = vand.u32 %v3700, 4294901760
          %4529 = vmatprep.subr.mxu0 %v4528
          %v4530 = vand.u32 %v3699, 4294901760
          %4531 = vmatpush1.msra.mxu0 %v4530
          %v4532 = vand.u32 %v3702, 4294901760
          %4533 = vmatprep.subr.mxu0 %v4532
          %v4534 = vand.u32 %v3701, 4294901760
          %4535 = vmatpush1.msra.mxu0 %v4534
          %v4536 = vand.u32 %v3704, 4294901760
          %4537 = vmatprep.subr.mxu0 %v4536
          %v4538 = vand.u32 %v3703, 4294901760
          %4539 = vmatpush1.msra.mxu0 %v4538
          %v4540 = vand.u32 %v3706, 4294901760
          %4541 = vmatprep.subr.mxu0 %v4540
          %v4542 = vand.u32 %v3705, 4294901760
          %4543 = vmatpush1.msra.mxu0 %v4542
          %v4544 = vand.u32 %v3708, 4294901760
          %4545 = vmatprep.subr.mxu0 %v4544
          %v4546 = vand.u32 %v3707, 4294901760
          %4547 = vmatpush1.msra.mxu0 %v4546
          %v4548 = vand.u32 %v3710, 4294901760
          %4549 = vmatprep.subr.mxu0 %v4548
          %v4550 = vand.u32 %v3709, 4294901760
          %4551 = vmatpush1.msra.mxu0 %v4550
          %v4552 = vand.u32 %v3712, 4294901760
          %4553 = vmatprep.subr.mxu0 %v4552
          %v4554 = vand.u32 %v3711, 4294901760
          %4555 = vmatpush1.msra.mxu0 %v4554
          %v4556 = vand.u32 %v3714, 4294901760
          %4557 = vmatprep.subr.mxu0 %v4556
          %v4558 = vand.u32 %v3713, 4294901760
          %4559 = vmatpush1.msra.mxu0 %v4558
          %v4560 = vand.u32 %v3716, 4294901760
          %4561 = vmatprep.subr.mxu0 %v4560
          %v4562 = vand.u32 %v3715, 4294901760
          %4563 = vmatpush1.msra.mxu0 %v4562
          %4564 = vmatprep.subr.mxu0 0.0
          %4565 = vmatpush1.msra.mxu0 0.0
          %4566 = vmatprep.subr.mxu0 0.0
          %4567 = vmatpush1.msra.mxu0 0.0
          %4568 = vmatprep.subr.mxu0 0.0
          %4569 = vmatpush1.msra.mxu0 0.0
          %4570 = vmatprep.subr.mxu0 0.0
          %4571 = vmatpush1.msra.mxu0 0.0
          %4572 = vmatprep.subr.mxu0 0.0
          %4573 = vmatpush1.msra.mxu0 0.0
          %4574 = vmatprep.subr.mxu0 0.0
          %4575 = vmatpush1.msra.mxu0 0.0
          %4576 = vmatprep.subr.mxu0 0.0
          %4577 = vmatpush1.msra.mxu0 0.0
          %4578 = vmatprep.subr.mxu0 0.0
          %4579 = vmatpush1.msra.mxu0 0.0
          %4580 = vmatprep.subr.mxu0 0.0
          %4581 = vmatpush1.msra.mxu0 0.0
          %4582 = vmatprep.subr.mxu0 0.0
          %4583 = vmatpush1.msra.mxu0 0.0
          %4584 = vmatprep.subr.mxu0 0.0
          %4585 = vmatpush1.msra.mxu0 0.0
          %4586 = vmatprep.subr.mxu0 0.0
          %4587 = vmatpush1.msra.mxu0 0.0
          %4588 = vmatprep.subr.mxu0 0.0
          %4589 = vmatpush1.msra.mxu0 0.0
          %4590 = vmatprep.subr.mxu0 0.0
          %4591 = vmatpush1.msra.mxu0 0.0
          %4592 = vmatprep.subr.mxu0 0.0
          %4593 = vmatpush1.msra.mxu0 0.0
          %4594 = vmatprep.subr.mxu0 0.0
          %4595 = vmatpush1.msra.mxu0 0.0
          %4596 = vmatprep.mubr.f32.mxu0 0.0
          %v4597 = vand.u32 %v3733, 4294901760
          %4598 = vmatmul.mubr.f32.gmra.mrb[0].mxu0 %v4597
          %v4599 = vpop.f32.mrb[0].mxu0
          %v4600 = vadd.f32 %v4496, %v4599
          %v4601 = vpop.f32.mrb[0].mxu0
          %v4602 = vadd.f32 %v4498, %v4601
          %4603 = vdwg.mxu0
          %v4604 = vld [vmem:[%s209] sm:$0xff]
          %v4605 = vld [vmem:[%s209 + $0x8] sm:$0xff]
          %v4606 = vadd.f32 %v4604, %v4600
          %v4607 = vadd.f32 %v4605, %v4602
          %4608 = vst [vmem:[%s209] sm:$0xff] %v4606
          %4609 = vst [vmem:[%s209 + $0x8] sm:$0xff] %v4607
        $region44: #{tpu_custom_call.1} parent=27 // pred_fallthru
          _
        %s4610 = sand.u32 %s117, 1
        %s4611 = scalar_lea.sflag [#allocation7], %s4610
        %s4612 = sand.u32 %s117, 1
        %s4613 = smul.addr %s4612, 16
        %s4614 = scalar_lea.vmem [#allocation6], %s4613
        // Predicated region
        $region45: #{tpu_custom_call.1} parent=27 // pred_check
          %p4615 = pneg %p127
        $region46: #{tpu_custom_call.1} parent=27 // pred_check_branch
          %4617 = sbr.rel (%p4615) target = $region48
        $region47: #{tpu_custom_call.1} parent=27 // pred_region
          %s4618 = smul.u32 2, %s38
          %s4620 = ssub.s32 256, 256
          %4621 = vsyncadd %s4611, %s4620
          %s4622 = smul.addr %s37, 2
          %s4623 = sadd.s32 %s4618, %s4622
          %s4624 = smul.addr %s4623, 128
          %s4625 = scalar_lea.hbm %s5, %s4624
          %s4627 = sshll.u32 %s4614, 4
          %s4628 = int_to_ptr.vmem [resolvable:$true] %s4627
          %4630 = dma.vmem_to_hbm [thread:$0]  %s4628, 256, %s4625, %s4611
        $region48: #{tpu_custom_call.1} parent=27 // pred_fallthru
          _
      $region28: #{tpu_custom_call.1} parent=5 // pred_fallthru
        _
      %p4631 = scmp.le.s32.totalorder 2, %s28
      // Predicated region
      $region49: #{tpu_custom_call.1} parent=5 // pred_check
        %p4632 = pneg %p4631
      $region50: #{tpu_custom_call.1} parent=5 // pred_check_branch
        %4634 = sbr.rel (%p4632) target = $region52
      $region51: #{tpu_custom_call.1} parent=5 // pred_region
        %s4635 = ssub.s32 %s28, 2
        // Predicated region
        $region53: #{tpu_custom_call.1} parent=51 // pred_check
          %p4636 = pneg %p133
        $region54: #{tpu_custom_call.1} parent=51 // pred_check_branch
          %4638 = sbr.rel (%p4636) target = $region56
        $region55: #{tpu_custom_call.1} parent=51 // pred_region
          %s4639 = sand.u32 %s118, 1
          %s4640 = scalar_lea.sflag [#allocation7], %s4639
          %s4641 = sand.u32 %s118, 1
          %s4642 = smul.addr %s4641, 16
          %s4643 = scalar_lea.vmem [#allocation6], %s4642
          %4644 = dma.done %s4640, 256
        $region56: #{tpu_custom_call.1} parent=51 // pred_fallthru
          _
      $region52: #{tpu_custom_call.1} parent=5 // pred_fallthru
        _
    $region6: #{tpu_custom_call.1} parent=1 // loop_footer
      %s32 = sadd.s32 1, %s28
    $region7: #{tpu_custom_call.1} parent=1 // loop_footer_branch
      %27 = sbr.rel target = $region3
    $region8: #{tpu_custom_call.1} parent=1 // loop_exit
      _
    %4645 = vsyncpa [#allocation7], 1
    %s4646 = scalar_lea.sflag [#allocation7], 1
    %4647 = vsyncpa %s4646, 1

</llo_original>
